<compile_context>
chip_gen: v6e
topology: v6e:2x2x1
jax: 0.10.0
libtpu: 0.0.40
codegen_flags: <defaults>
</compile_context>

<pallas_src>
import math
import functools

import jax
import jax.numpy as jnp
from jax.experimental import pallas as pl
from jax.experimental.pallas import tpu as pltpu

KERNEL_SIZE = 2
COMPUTE_DTYPE = jnp.bfloat16          # MXU input dtype; all accumulation stays f32
CARRY_DTYPE = jnp.float32             # residual stream carried in f32 between layers
TILE_M = 1024                         # row tile for the 1x1-conv (dense) kernels
# 32 MiB: default scoped VMEM on v6e/v7x, raises v5e's 16 MiB default, and stays well
# inside v7x's 64 MiB physical VMEM even with double-buffered 1024-row tiles.
VMEM_LIMIT_BYTES = 32 * 1024 * 1024


def _mosaic_params(n_parallel_axes):
    return pltpu.CompilerParams(
        dimension_semantics=("parallel",) * n_parallel_axes,
        vmem_limit_bytes=VMEM_LIMIT_BYTES)


# ------------------------------ Pallas kernels ------------------------------

def _dense_kernel(x_ref, w_ref, b_ref, o_ref):
    """1x1 Conv1d == per-row channel matmul (bf16 MXU inputs, f32 accumulate)."""
    x = x_ref[...].astype(w_ref.dtype)
    y = jnp.dot(x, w_ref[...], preferred_element_type=jnp.float32) + b_ref[...]
    o_ref[...] = y.astype(o_ref.dtype)


def dense(x2d, w, b2d, *, out_dtype=jnp.float32):
    M, cin = x2d.shape
    cout = w.shape[1]
    tm = M if M <= TILE_M else TILE_M           # TILE_M is a multiple of 8
    return pl.pallas_call(
        _dense_kernel,
        out_shape=jax.ShapeDtypeStruct((M, cout), out_dtype),
        grid=(pl.cdiv(M, tm),),
        in_specs=[pl.BlockSpec((tm, cin), lambda i: (i, 0)),
                  pl.BlockSpec((cin, cout), lambda i: (0, 0)),
                  pl.BlockSpec((1, cout), lambda i: (0, 0))],
        out_specs=pl.BlockSpec((tm, cout), lambda i: (i, 0)),
        compiler_params=_mosaic_params(1),
    )(x2d, w, b2d)


def _layer_kernel(r_ref, wfg0_ref, wfg1_ref, bfg_ref, wskip_ref, bskip_ref,
                  wres_ref, bres_ref, x_ref, skip_ref, *, cdil, n_keep):
    """One WaveNet residual layer, fully fused; taps formed in VMEM (no HBM concat).

    r block: (1, L, Cres) f32 dilated residual stream.  Outputs: the next residual
    stream (1, L-1, Cres) f32 and the skip contribution for only the last `n_keep`
    dilated timesteps (1, n_keep, Cskip) f32.
    """
    r = r_ref[0]                                              # (L, Cres) f32
    lm1 = r.shape[0] - 1
    r0 = r[:lm1, :].astype(wfg0_ref.dtype)                    # tap t
    r1 = r[1:, :].astype(wfg0_ref.dtype)                      # tap t+1
    # filter & gate convs as two K=Cres dots into one (L-1, 2*Cdil) f32 accumulator
    fg = (jnp.dot(r0, wfg0_ref[...], preferred_element_type=jnp.float32)
          + jnp.dot(r1, wfg1_ref[...], preferred_element_type=jnp.float32)
          + bfg_ref[...])
    filt = jnp.tanh(fg[:, :cdil])
    gate = 0.5 * jnp.tanh(0.5 * fg[:, cdil:]) + 0.5           # == sigmoid, one EUP op
    gated = filt * gate                                       # f32 elementwise
    gated_c = gated.astype(wres_ref.dtype)
    # residual 1x1 conv + residual tail (residual[:, k-1:, :] == r[1:], kept f32)
    x_ref[0] = (jnp.dot(gated_c, wres_ref[...], preferred_element_type=jnp.float32)
                + bres_ref[...] + r[1:, :]).astype(x_ref.dtype)
    # skip 1x1 conv on only the last n_keep dilated timesteps (in the dilated layout;
    # un-dilation outside is valid since a 1x1 conv commutes with the permutation)
    skip_ref[0] = (jnp.dot(gated_c[lm1 - n_keep:, :], wskip_ref[...],
                           preferred_element_type=jnp.float32)
                   + bskip_ref[...]).astype(skip_ref.dtype)


def fused_layer(residual, wfg0, wfg1, bfg, wskip, bskip, wres, bres, *, n_keep):
    n, l, cres = residual.shape
    lm1 = l - 1
    two_cdil = wfg0.shape[1]
    cdil = two_cdil // 2
    cskip = wskip.shape[1]
    kernel = functools.partial(_layer_kernel, cdil=cdil, n_keep=n_keep)
    return pl.pallas_call(
        kernel,
        out_shape=(jax.ShapeDtypeStruct((n, lm1, cres), CARRY_DTYPE),
                   jax.ShapeDtypeStruct((n, n_keep, cskip), jnp.float32)),
        grid=(n,),
        in_specs=[pl.BlockSpec((1, l, cres), lambda i: (i, 0, 0)),
                  pl.BlockSpec((cres, two_cdil), lambda i: (0, 0)),
                  pl.BlockSpec((cres, two_cdil), lambda i: (0, 0)),
                  pl.BlockSpec((1, two_cdil), lambda i: (0, 0)),
                  pl.BlockSpec((cdil, cskip), lambda i: (0, 0)),
                  pl.BlockSpec((1, cskip), lambda i: (0, 0)),
                  pl.BlockSpec((cdil, cres), lambda i: (0, 0)),
                  pl.BlockSpec((1, cres), lambda i: (0, 0))],
        out_specs=(pl.BlockSpec((1, lm1, cres), lambda i: (i, 0, 0)),
                   pl.BlockSpec((1, n_keep, cskip), lambda i: (i, 0, 0))),
        compiler_params=_mosaic_params(1),
    )(residual, wfg0, wfg1, bfg, wskip, bskip, wres, bres)


def _head_kernel(s_ref, w1_ref, b1_ref, w2_ref, b2_ref, o_ref):
    """relu(skip) -> relu(end_conv_1) -> end_conv_2, hidden h kept in VMEM/vregs."""
    s = jnp.maximum(s_ref[...], 0.0)
    h = (jnp.dot(s.astype(w1_ref.dtype), w1_ref[...],
                 preferred_element_type=jnp.float32) + b1_ref[...])
    h = jnp.maximum(h, 0.0)
    o_ref[...] = (jnp.dot(h.astype(w2_ref.dtype), w2_ref[...],
                          preferred_element_type=jnp.float32)
                  + b2_ref[...]).astype(o_ref.dtype)


def output_head(s2d, w1, b1, w2, b2):
    M, cskip = s2d.shape
    cend = w1.shape[1]
    cls = w2.shape[1]
    tm = M if M <= TILE_M else TILE_M
    return pl.pallas_call(
        _head_kernel,
        out_shape=jax.ShapeDtypeStruct((M, cls), jnp.float32),
        grid=(pl.cdiv(M, tm),),
        in_specs=[pl.BlockSpec((tm, cskip), lambda i: (i, 0)),
                  pl.BlockSpec((cskip, cend), lambda i: (0, 0)),
                  pl.BlockSpec((1, cend), lambda i: (0, 0)),
                  pl.BlockSpec((cend, cls), lambda i: (0, 0)),
                  pl.BlockSpec((1, cls), lambda i: (0, 0))],
        out_specs=pl.BlockSpec((tm, cls), lambda i: (i, 0)),
        compiler_params=_mosaic_params(1),
    )(s2d, w1, b1, w2, b2)


# ------------------------------ JAX glue ------------------------------------

def dilate(x, dilation, init_dilation=1):
    """Channels-last, integer-arithmetic port of pytorch-wavenet `dilate` (pad_start=True).

    x: (n, L, c).  Pure transpose/reshape of the batch/time axes with zero padding at
    the *start* of time when the length is not a multiple of the dilation factor.
    """
    n, l, c = x.shape
    if dilation == init_dilation:
        return x
    if dilation > init_dilation:
        factor = dilation // init_dilation
        new_l = -(-l // factor) * factor           # ceil(l / factor) * factor
        if new_l != l:
            x = jnp.pad(x, ((0, 0), (new_l - l, 0), (0, 0)))
            l = new_l
        l_new, n_new = l // factor, n * factor
    else:
        factor = init_dilation // dilation
        l_new, n_new = l * factor, n // factor
    x = jnp.transpose(x, (1, 0, 2)).reshape(l_new, n_new, c)
    return jnp.transpose(x, (1, 0, 2))


def _conv_params(key, cin, cout, k):
    kw, kb = jax.random.split(key)
    bound = 1.0 / math.sqrt(cin * k)
    # stored as (k, cin, cout) so y[t] = sum_j x[t + j] @ w[j] + b
    w = jax.random.uniform(kw, (k, cin, cout), jnp.float32, -bound, bound)
    b = jax.random.uniform(kb, (cout,), jnp.float32, -bound, bound)
    return w, b


def init_wavenet(key, *, classes, residual_channels, dilation_channels,
                 skip_channels, end_channels, num_blocks, num_layers):
    params = {'filter': [], 'gate': [], 'res': [], 'skip': [], 'dilations': []}
    key, k = jax.random.split(key)
    params['causal'] = _conv_params(k, classes, residual_channels, 1)
    init_dilation = 1
    receptive_field = 1
    for _ in range(num_blocks):
        new_dilation = 1
        additional_scope = KERNEL_SIZE - 1
        for _ in range(num_layers):
            params['dilations'].append((new_dilation, init_dilation))
            key, k1, k2, k3, k4 = jax.random.split(key, 5)
            params['filter'].append(
                _conv_params(k1, residual_channels, dilation_channels, KERNEL_SIZE))
            params['gate'].append(
                _conv_params(k2, residual_channels, dilation_channels, KERNEL_SIZE))
            params['res'].append(_conv_params(k3, dilation_channels, residual_channels, 1))
            params['skip'].append(_conv_params(k4, dilation_channels, skip_channels, 1))
            init_dilation = new_dilation
            new_dilation *= 2
            receptive_field += additional_scope
            additional_scope *= 2
    key, k1, k2 = jax.random.split(key, 3)
    params['end1'] = _conv_params(k1, skip_channels, end_channels, 1)
    params['end2'] = _conv_params(k2, end_channels, classes, 1)
    params['receptive_field'] = receptive_field
    return params


def pack_wavenet_params(params):
    """Pre-pack all kernel weights ONCE (bf16 casts, tap/filter-gate concat, bias 2-D)."""
    packed = {'dilations': list(params['dilations']),
              'receptive_field': params['receptive_field']}
    cw, cb = params['causal']
    packed['causal'] = (cw[0].astype(COMPUTE_DTYPE), cb.reshape(1, -1))
    layers = []
    for i in range(len(params['dilations'])):
        fw, fb = params['filter'][i]
        gw, gb = params['gate'][i]
        sw, sb = params['skip'][i]
        rw, rb = params['res'][i]
        # per-tap weights with [filter | gate] stacked along the output-channel axis
        wfg0 = jnp.concatenate([fw[0], gw[0]], axis=1).astype(COMPUTE_DTYPE)
        wfg1 = jnp.concatenate([fw[1], gw[1]], axis=1).astype(COMPUTE_DTYPE)
        bfg = jnp.concatenate([fb, gb]).reshape(1, -1)
        layers.append((wfg0, wfg1, bfg,
                       sw[0].astype(COMPUTE_DTYPE), sb.reshape(1, -1),
                       rw[0].astype(COMPUTE_DTYPE), rb.reshape(1, -1)))
    packed['layers'] = layers
    e1w, e1b = params['end1']
    e2w, e2b = params['end2']
    packed['end1'] = (e1w[0].astype(COMPUTE_DTYPE), e1b.reshape(1, -1))
    packed['end2'] = (e2w[0].astype(COMPUTE_DTYPE), e2b.reshape(1, -1))
    return packed


def wavenet_forward(packed, x_ncl, *, output_length, generation=False):
    """Matches WaveNet.forward.  x_ncl: (N, classes, L) in the PyTorch NCL layout."""
    x = jnp.transpose(x_ncl, (0, 2, 1))                            # -> (N, L, classes)
    n0, l0, c0 = x.shape

    cw, cb = packed['causal']
    res_ch = cw.shape[1]
    x = dense(x.reshape(n0 * l0, c0).astype(COMPUTE_DTYPE), cw, cb,
              out_dtype=CARRY_DTYPE).reshape(n0, l0, res_ch)       # f32 residual stream

    skip = None
    for (dilation, init_dilation), lw in zip(packed['dilations'], packed['layers']):
        residual = dilate(x, dilation, init_dilation)              # (n_d, L_d, Cres) f32
        lm1 = residual.shape[1] - 1
        if generation:
            n_keep = lm1
        else:
            assert lm1 * dilation >= output_length, (
                "input too short: a layer's contribution is shorter than output_length")
            n_keep = -(-output_length // dilation)                 # ceil(OL / dilation)
        x, contrib = fused_layer(residual, *lw, n_keep=n_keep)
        # skip branch: un-dilate the (small) contribution; a 1x1 conv commutes with the
        # batch/time permutation, so doing it after the conv is equivalent.
        if lm1 != 1:
            contrib = dilate(contrib, 1, init_dilation=dilation)
        if generation:
            skip = contrib if skip is None else contrib + skip[:, -contrib.shape[1]:, :]
        else:
            contrib = contrib[:, -output_length:, :]
            skip = contrib if skip is None else contrib + skip

    # output head: relu(skip) -> relu(end_conv_1) -> end_conv_2 (per-timestep 1x1 convs)
    ns, ls, skip_ch = skip.shape
    e1w, e1b = packed['end1']
    e2w, e2b = packed['end2']
    out = output_head(skip.reshape(ns * ls, skip_ch), e1w, e1b, e2w, e2b)
    if generation:
        return jnp.transpose(out.reshape(ns, ls, -1), (0, 2, 1))   # back to NCL
    return out                                                     # (n*output_length, classes)


# ------------------ pure-JAX reference (full original semantics) ------------------

def wavenet_forward_ref(params, x_ncl, *, output_length, generation=False):
    cd = COMPUTE_DTYPE

    def mm(a, w):
        return jnp.dot(a.astype(cd), w.astype(cd), preferred_element_type=jnp.float32)

    x = jnp.transpose(x_ncl, (0, 2, 1))
    cw, cb = params['causal']
    x = mm(x, cw[0]) + cb                                          # f32 carry
    skip = None
    for i, (dilation, init_dilation) in enumerate(params['dilations']):
        r = dilate(x, dilation, init_dilation)
        r0, r1 = r[:, :-1, :], r[:, 1:, :]
        fw, fb = params['filter'][i]
        gw, gb = params['gate'][i]
        f = mm(r0, fw[0]) + mm(r1, fw[1]) + fb
        g = mm(r0, gw[0]) + mm(r1, gw[1]) + gb
        gated = jnp.tanh(f) * jax.nn.sigmoid(g)
        sw, sb = params['skip'][i]
        contrib = mm(gated, sw[0]) + sb
        if contrib.shape[1] != 1:
            contrib = dilate(contrib, 1, init_dilation=dilation)
        skip = contrib if skip is None else contrib + skip[:, -contrib.shape[1]:, :]
        rw, rb = params['res'][i]
        x = mm(gated, rw[0]) + rb + r[:, 1:, :]
    ns, ls, _ = skip.shape
    if not generation:
        ls = output_length
        skip = skip[:, -ls:, :]
    e1w, e1b = params['end1']
    e2w, e2b = params['end2']
    h = jnp.maximum(skip, 0.0)
    h = jnp.maximum(mm(h, e1w[0]) + e1b, 0.0)
    out = mm(h, e2w[0]) + e2b
    if generation:
        return jnp.transpose(out, (0, 2, 1))
    return out.reshape(ns * ls, -1)


if __name__ == "__main__":
    # Small configuration consistent with the module's forward (the default 3x10 net has
    # a receptive field of 3070 samples, so we shrink depth/width rather than fake shapes).
    classes = 64
    residual_channels = 32
    dilation_channels = 32
    skip_channels = 64
    end_channels = 64
    num_blocks = 2
    num_layers = 3
    output_length = 8

    key = jax.random.PRNGKey(0)
    key, pkey, xkey = jax.random.split(key, 3)
    params = init_wavenet(
        pkey, classes=classes, residual_channels=residual_channels,
        dilation_channels=dilation_channels, skip_channels=skip_channels,
        end_channels=end_channels, num_blocks=num_blocks, num_layers=num_layers)
    packed = pack_wavenet_params(params)      # weight packing done ONCE, outside jit

    batch, length = 2, 48                     # length > receptive_field (15) + output_length
    x = jax.random.normal(xkey, (batch, classes, length), dtype=jnp.float32)

    fwd = jax.jit(lambda inp: wavenet_forward(packed, inp, output_length=output_length))
    out = jax.block_until_ready(fwd(x))

    assert out.shape == (batch * output_length, classes), out.shape
    assert bool(jnp.all(jnp.isfinite(out)))

    # cross-check the Pallas path against a pure-JAX reference implementing the FULL
    # original semantics (full-length skip accumulation, final slice) with matching dtypes
    ref = jax.block_until_ready(
        wavenet_forward_ref(params, x, output_length=output_length))
    max_err = float(jnp.max(jnp.abs(out - ref)))
    assert max_err < 3e-2, f"mismatch vs pure-JAX reference: max |diff| = {max_err}"

    print("KERNEL_OK")
</pallas_src>

<mosaic_0001>
module attributes {stable_mosaic.version = 11 : i64} {
  func.func @_dense_kernel(%arg0: i32, %arg1: memref<96x64xbf16, #tpu.memory_space<vmem>>, %arg2: memref<64x32xbf16, #tpu.memory_space<vmem>>, %arg3: memref<1x32xf32, #tpu.memory_space<vmem>>, %arg4: memref<96x32xf32, #tpu.memory_space<vmem>>) attributes {dimension_semantics = [#tpu.dimension_semantics<parallel>], iteration_bounds = array<i64: 1>, scalar_prefetch = 0 : i64, scratch_operands = 0 : i64, tpu.core_type = #tpu.core_type<tc>, window_params = [{transform_indices = @transform_0, window_bounds = array<i64: 96, 64>}, {pipeline_mode = #tpu.pipeline_mode<synchronous>, transform_indices = @transform_1, window_bounds = array<i64: 64, 32>}, {pipeline_mode = #tpu.pipeline_mode<synchronous>, transform_indices = @transform_2, window_bounds = array<i64: 1, 32>}, {transform_indices = @transform_3, window_bounds = array<i64: 96, 32>}]} {
    %c0 = arith.constant 0 : index
    %c0_0 = arith.constant 0 : index
    %0 = vector.load %arg1[%c0, %c0_0] : memref<96x64xbf16, #tpu.memory_space<vmem>>, vector<96x64xbf16>
    %c0_1 = arith.constant 0 : index
    %c0_2 = arith.constant 0 : index
    %1 = vector.load %arg2[%c0_1, %c0_2] : memref<64x32xbf16, #tpu.memory_space<vmem>>, vector<64x32xbf16>
    %cst = arith.constant dense<0.000000e+00> : vector<96x32xf32>
    %2 = tpu.matmul %0, %1, %cst {dimension_numbers = #tpu.dot_dimension_numbers<[1], [0], [0], [1], [0, 0, 1, 1], [], []>} : vector<96x64xbf16>, vector<64x32xbf16>, vector<96x32xf32> -> vector<96x32xf32>
    %c0_3 = arith.constant 0 : index
    %c0_4 = arith.constant 0 : index
    %3 = vector.load %arg3[%c0_3, %c0_4] : memref<1x32xf32, #tpu.memory_space<vmem>>, vector<1x32xf32>
    %4 = vector.broadcast %3 : vector<1x32xf32> to vector<96x32xf32>
    %5 = arith.addf %2, %4 : vector<96x32xf32>
    %c0_5 = arith.constant 0 : index
    %c0_6 = arith.constant 0 : index
    %6 = vector.load %arg4[%c0_5, %c0_6] : memref<96x32xf32, #tpu.memory_space<vmem>>, vector<96x32xf32>
    tpu.vector_store %arg4[%c0_5, %c0_6], %5 {strides = array<i32>} : memref<96x32xf32, #tpu.memory_space<vmem>>, vector<96x32xf32>,
    return
  }
  func.func @transform_0(%arg0: i32) -> (i32, i32) {
    %c0_i32 = arith.constant 0 : i32
    %c0_i32_0 = arith.constant 0 : i32
    return %arg0, %c0_i32 : i32, i32
  }
  func.func @transform_1(%arg0: i32) -> (i32, i32) {
    %c0_i32 = arith.constant 0 : i32
    %c0_i32_0 = arith.constant 0 : i32
    %c0_i32_1 = arith.constant 0 : i32
    return %c0_i32, %c0_i32_0 : i32, i32
  }
  func.func @transform_2(%arg0: i32) -> (i32, i32) {
    %c0_i32 = arith.constant 0 : i32
    %c0_i32_0 = arith.constant 0 : i32
    %c0_i32_1 = arith.constant 0 : i32
    return %c0_i32, %c0_i32_0 : i32, i32
  }
  func.func @transform_3(%arg0: i32) -> (i32, i32) {
    %c0_i32 = arith.constant 0 : i32
    %c0_i32_0 = arith.constant 0 : i32
    return %arg0, %c0_i32 : i32, i32
  }
}

module attributes {stable_mosaic.version = 11 : i64} {
  func.func @_layer_kernel(%arg0: i32, %arg1: memref<1x48x32xf32, #tpu.memory_space<vmem>>, %arg2: memref<32x64xbf16, #tpu.memory_space<vmem>>, %arg3: memref<32x64xbf16, #tpu.memory_space<vmem>>, %arg4: memref<1x64xf32, #tpu.memory_space<vmem>>, %arg5: memref<32x64xbf16, #tpu.memory_space<vmem>>, %arg6: memref<1x64xf32, #tpu.memory_space<vmem>>, %arg7: memref<32x32xbf16, #tpu.memory_space<vmem>>, %arg8: memref<1x32xf32, #tpu.memory_space<vmem>>, %arg9: memref<1x47x32xf32, #tpu.memory_space<vmem>>, %arg10: memref<1x8x64xf32, #tpu.memory_space<vmem>>) attributes {dimension_semantics = [#tpu.dimension_semantics<parallel>], iteration_bounds = array<i64: 2>, scalar_prefetch = 0 : i64, scratch_operands = 0 : i64, tpu.core_type = #tpu.core_type<tc>, window_params = [{transform_indices = @transform_0, window_bounds = array<i64: 1, 48, 32>}, {pipeline_mode = #tpu.pipeline_mode<synchronous>, transform_indices = @transform_1, window_bounds = array<i64: 32, 64>}, {pipeline_mode = #tpu.pipeline_mode<synchronous>, transform_indices = @transform_2, window_bounds = array<i64: 32, 64>}, {pipeline_mode = #tpu.pipeline_mode<synchronous>, transform_indices = @transform_3, window_bounds = array<i64: 1, 64>}, {pipeline_mode = #tpu.pipeline_mode<synchronous>, transform_indices = @transform_4, window_bounds = array<i64: 32, 64>}, {pipeline_mode = #tpu.pipeline_mode<synchronous>, transform_indices = @transform_5, window_bounds = array<i64: 1, 64>}, {pipeline_mode = #tpu.pipeline_mode<synchronous>, transform_indices = @transform_6, window_bounds = array<i64: 32, 32>}, {pipeline_mode = #tpu.pipeline_mode<synchronous>, transform_indices = @transform_7, window_bounds = array<i64: 1, 32>}, {transform_indices = @transform_8, window_bounds = array<i64: 1, 47, 32>}, {transform_indices = @transform_9, window_bounds = array<i64: 1, 8, 64>}]} {
    %c0 = arith.constant 0 : index
    %c0_0 = arith.constant 0 : index
    %c0_1 = arith.constant 0 : index
    %0 = vector.load %arg1[%c0, %c0_0, %c0_1] : memref<1x48x32xf32, #tpu.memory_space<vmem>>, vector<1x48x32xf32>
    %1 = vector.shape_cast %0 : vector<1x48x32xf32> to vector<48x32xf32>
    %2 = vector.extract_strided_slice %1 {offsets = [0, 0], sizes = [47, 32], strides = [1, 1]} : vector<48x32xf32> to vector<47x32xf32>
    %3 = arith.truncf %2 : vector<47x32xf32> to vector<47x32xbf16>
    %4 = vector.extract_strided_slice %1 {offsets = [1, 0], sizes = [47, 32], strides = [1, 1]} : vector<48x32xf32> to vector<47x32xf32>
    %5 = arith.truncf %4 : vector<47x32xf32> to vector<47x32xbf16>
    %c0_2 = arith.constant 0 : index
    %c0_3 = arith.constant 0 : index
    %6 = vector.load %arg2[%c0_2, %c0_3] : memref<32x64xbf16, #tpu.memory_space<vmem>>, vector<32x64xbf16>
    %cst = arith.constant dense<0.000000e+00> : vector<47x64xf32>
    %7 = tpu.matmul %3, %6, %cst {dimension_numbers = #tpu.dot_dimension_numbers<[1], [0], [0], [1], [0, 0, 1, 1], [], []>} : vector<47x32xbf16>, vector<32x64xbf16>, vector<47x64xf32> -> vector<47x64xf32>
    %c0_4 = arith.constant 0 : index
    %c0_5 = arith.constant 0 : index
    %8 = vector.load %arg3[%c0_4, %c0_5] : memref<32x64xbf16, #tpu.memory_space<vmem>>, vector<32x64xbf16>
    %cst_6 = arith.constant dense<0.000000e+00> : vector<47x64xf32>
    %9 = tpu.matmul %5, %8, %cst_6 {dimension_numbers = #tpu.dot_dimension_numbers<[1], [0], [0], [1], [0, 0, 1, 1], [], []>} : vector<47x32xbf16>, vector<32x64xbf16>, vector<47x64xf32> -> vector<47x64xf32>
    %10 = arith.addf %7, %9 : vector<47x64xf32>
    %c0_7 = arith.constant 0 : index
    %c0_8 = arith.constant 0 : index
    %11 = vector.load %arg4[%c0_7, %c0_8] : memref<1x64xf32, #tpu.memory_space<vmem>>, vector<1x64xf32>
    %12 = vector.broadcast %11 : vector<1x64xf32> to vector<47x64xf32>
    %13 = arith.addf %10, %12 : vector<47x64xf32>
    %14 = vector.extract_strided_slice %13 {offsets = [0, 0], sizes = [47, 32], strides = [1, 1]} : vector<47x64xf32> to vector<47x32xf32>
    %15 = math.tanh %14 : vector<47x32xf32>
    %16 = vector.extract_strided_slice %13 {offsets = [0, 32], sizes = [47, 32], strides = [1, 1]} : vector<47x64xf32> to vector<47x32xf32>
    %cst_9 = arith.constant 5.000000e-01 : f32
    %17 = vector.broadcast %cst_9 : f32 to vector<47x32xf32>
    %18 = arith.mulf %17, %16 : vector<47x32xf32>
    %19 = math.tanh %18 : vector<47x32xf32>
    %cst_10 = arith.constant 5.000000e-01 : f32
    %20 = vector.broadcast %cst_10 : f32 to vector<47x32xf32>
    %21 = arith.mulf %20, %19 : vector<47x32xf32>
    %cst_11 = arith.constant 5.000000e-01 : f32
    %22 = vector.broadcast %cst_11 : f32 to vector<47x32xf32>
    %23 = arith.addf %21, %22 : vector<47x32xf32>
    %24 = arith.mulf %15, %23 : vector<47x32xf32>
    %25 = arith.truncf %24 : vector<47x32xf32> to vector<47x32xbf16>
    %c0_12 = arith.constant 0 : index
    %c0_13 = arith.constant 0 : index
    %26 = vector.load %arg7[%c0_12, %c0_13] : memref<32x32xbf16, #tpu.memory_space<vmem>>, vector<32x32xbf16>
    %cst_14 = arith.constant dense<0.000000e+00> : vector<47x32xf32>
    %27 = tpu.matmul %25, %26, %cst_14 {dimension_numbers = #tpu.dot_dimension_numbers<[1], [0], [0], [1], [0, 0, 1, 1], [], []>} : vector<47x32xbf16>, vector<32x32xbf16>, vector<47x32xf32> -> vector<47x32xf32>
    %c0_15 = arith.constant 0 : index
    %c0_16 = arith.constant 0 : index
    %28 = vector.load %arg8[%c0_15, %c0_16] : memref<1x32xf32, #tpu.memory_space<vmem>>, vector<1x32xf32>
    %29 = vector.broadcast %28 : vector<1x32xf32> to vector<47x32xf32>
    %30 = arith.addf %27, %29 : vector<47x32xf32>
    %31 = vector.extract_strided_slice %1 {offsets = [1, 0], sizes = [47, 32], strides = [1, 1]} : vector<48x32xf32> to vector<47x32xf32>
    %32 = arith.addf %30, %31 : vector<47x32xf32>
    %c0_17 = arith.constant 0 : index
    %c0_18 = arith.constant 0 : index
    %c0_19 = arith.constant 0 : index
    %33 = vector.load %arg9[%c0_17, %c0_18, %c0_19] : memref<1x47x32xf32, #tpu.memory_space<vmem>>, vector<1x47x32xf32>
    %34 = vector.shape_cast %33 : vector<1x47x32xf32> to vector<47x32xf32>
    %35 = vector.shape_cast %32 : vector<47x32xf32> to vector<1x47x32xf32>
    tpu.vector_store %arg9[%c0_17, %c0_18, %c0_19], %35 {strides = array<i32>} : memref<1x47x32xf32, #tpu.memory_space<vmem>>, vector<1x47x32xf32>,
    %36 = vector.extract_strided_slice %25 {offsets = [39, 0], sizes = [8, 32], strides = [1, 1]} : vector<47x32xbf16> to vector<8x32xbf16>
    %c0_20 = arith.constant 0 : index
    %c0_21 = arith.constant 0 : index
    %37 = vector.load %arg5[%c0_20, %c0_21] : memref<32x64xbf16, #tpu.memory_space<vmem>>, vector<32x64xbf16>
    %cst_22 = arith.constant dense<0.000000e+00> : vector<8x64xf32>
    %38 = tpu.matmul %36, %37, %cst_22 {dimension_numbers = #tpu.dot_dimension_numbers<[1], [0], [0], [1], [0, 0, 1, 1], [], []>} : vector<8x32xbf16>, vector<32x64xbf16>, vector<8x64xf32> -> vector<8x64xf32>
    %c0_23 = arith.constant 0 : index
    %c0_24 = arith.constant 0 : index
    %39 = vector.load %arg6[%c0_23, %c0_24] : memref<1x64xf32, #tpu.memory_space<vmem>>, vector<1x64xf32>
    %40 = vector.broadcast %39 : vector<1x64xf32> to vector<8x64xf32>
    %41 = arith.addf %38, %40 : vector<8x64xf32>
    %c0_25 = arith.constant 0 : index
    %c0_26 = arith.constant 0 : index
    %c0_27 = arith.constant 0 : index
    %42 = vector.load %arg10[%c0_25, %c0_26, %c0_27] : memref<1x8x64xf32, #tpu.memory_space<vmem>>, vector<1x8x64xf32>
    %43 = vector.shape_cast %42 : vector<1x8x64xf32> to vector<8x64xf32>
    %44 = vector.shape_cast %41 : vector<8x64xf32> to vector<1x8x64xf32>
    tpu.vector_store %arg10[%c0_25, %c0_26, %c0_27], %44 {strides = array<i32>} : memref<1x8x64xf32, #tpu.memory_space<vmem>>, vector<1x8x64xf32>,
    return
  }
  func.func @transform_0(%arg0: i32) -> (i32, i32, i32) {
    %c0_i32 = arith.constant 0 : i32
    %c0_i32_0 = arith.constant 0 : i32
    %c0_i32_1 = arith.constant 0 : i32
    return %arg0, %c0_i32, %c0_i32_0 : i32, i32, i32
  }
  func.func @transform_1(%arg0: i32) -> (i32, i32) {
    %c0_i32 = arith.constant 0 : i32
    %c0_i32_0 = arith.constant 0 : i32
    %c0_i32_1 = arith.constant 0 : i32
    return %c0_i32, %c0_i32_0 : i32, i32
  }
  func.func @transform_2(%arg0: i32) -> (i32, i32) {
    %c0_i32 = arith.constant 0 : i32
    %c0_i32_0 = arith.constant 0 : i32
    %c0_i32_1 = arith.constant 0 : i32
    return %c0_i32, %c0_i32_0 : i32, i32
  }
  func.func @transform_3(%arg0: i32) -> (i32, i32) {
    %c0_i32 = arith.constant 0 : i32
    %c0_i32_0 = arith.constant 0 : i32
    %c0_i32_1 = arith.constant 0 : i32
    return %c0_i32, %c0_i32_0 : i32, i32
  }
  func.func @transform_4(%arg0: i32) -> (i32, i32) {
    %c0_i32 = arith.constant 0 : i32
    %c0_i32_0 = arith.constant 0 : i32
    %c0_i32_1 = arith.constant 0 : i32
    return %c0_i32, %c0_i32_0 : i32, i32
  }
  func.func @transform_5(%arg0: i32) -> (i32, i32) {
    %c0_i32 = arith.constant 0 : i32
    %c0_i32_0 = arith.constant 0 : i32
    %c0_i32_1 = arith.constant 0 : i32
    return %c0_i32, %c0_i32_0 : i32, i32
  }
  func.func @transform_6(%arg0: i32) -> (i32, i32) {
    %c0_i32 = arith.constant 0 : i32
    %c0_i32_0 = arith.constant 0 : i32
    %c0_i32_1 = arith.constant 0 : i32
    return %c0_i32, %c0_i32_0 : i32, i32
  }
  func.func @transform_7(%arg0: i32) -> (i32, i32) {
    %c0_i32 = arith.constant 0 : i32
    %c0_i32_0 = arith.constant 0 : i32
    %c0_i32_1 = arith.constant 0 : i32
    return %c0_i32, %c0_i32_0 : i32, i32
  }
  func.func @transform_8(%arg0: i32) -> (i32, i32, i32) {
    %c0_i32 = arith.constant 0 : i32
    %c0_i32_0 = arith.constant 0 : i32
    %c0_i32_1 = arith.constant 0 : i32
    return %arg0, %c0_i32, %c0_i32_0 : i32, i32, i32
  }
  func.func @transform_9(%arg0: i32) -> (i32, i32, i32) {
    %c0_i32 = arith.constant 0 : i32
    %c0_i32_0 = arith.constant 0 : i32
    %c0_i32_1 = arith.constant 0 : i32
    return %arg0, %c0_i32, %c0_i32_0 : i32, i32, i32
  }
}

module attributes {stable_mosaic.version = 11 : i64} {
  func.func @_layer_kernel(%arg0: i32, %arg1: memref<1x24x32xf32, #tpu.memory_space<vmem>>, %arg2: memref<32x64xbf16, #tpu.memory_space<vmem>>, %arg3: memref<32x64xbf16, #tpu.memory_space<vmem>>, %arg4: memref<1x64xf32, #tpu.memory_space<vmem>>, %arg5: memref<32x64xbf16, #tpu.memory_space<vmem>>, %arg6: memref<1x64xf32, #tpu.memory_space<vmem>>, %arg7: memref<32x32xbf16, #tpu.memory_space<vmem>>, %arg8: memref<1x32xf32, #tpu.memory_space<vmem>>, %arg9: memref<1x23x32xf32, #tpu.memory_space<vmem>>, %arg10: memref<1x4x64xf32, #tpu.memory_space<vmem>>) attributes {dimension_semantics = [#tpu.dimension_semantics<parallel>], iteration_bounds = array<i64: 4>, scalar_prefetch = 0 : i64, scratch_operands = 0 : i64, tpu.core_type = #tpu.core_type<tc>, window_params = [{transform_indices = @transform_0, window_bounds = array<i64: 1, 24, 32>}, {pipeline_mode = #tpu.pipeline_mode<synchronous>, transform_indices = @transform_1, window_bounds = array<i64: 32, 64>}, {pipeline_mode = #tpu.pipeline_mode<synchronous>, transform_indices = @transform_2, window_bounds = array<i64: 32, 64>}, {pipeline_mode = #tpu.pipeline_mode<synchronous>, transform_indices = @transform_3, window_bounds = array<i64: 1, 64>}, {pipeline_mode = #tpu.pipeline_mode<synchronous>, transform_indices = @transform_4, window_bounds = array<i64: 32, 64>}, {pipeline_mode = #tpu.pipeline_mode<synchronous>, transform_indices = @transform_5, window_bounds = array<i64: 1, 64>}, {pipeline_mode = #tpu.pipeline_mode<synchronous>, transform_indices = @transform_6, window_bounds = array<i64: 32, 32>}, {pipeline_mode = #tpu.pipeline_mode<synchronous>, transform_indices = @transform_7, window_bounds = array<i64: 1, 32>}, {transform_indices = @transform_8, window_bounds = array<i64: 1, 23, 32>}, {transform_indices = @transform_9, window_bounds = array<i64: 1, 4, 64>}]} {
    %c0 = arith.constant 0 : index
    %c0_0 = arith.constant 0 : index
    %c0_1 = arith.constant 0 : index
    %0 = vector.load %arg1[%c0, %c0_0, %c0_1] : memref<1x24x32xf32, #tpu.memory_space<vmem>>, vector<1x24x32xf32>
    %1 = vector.shape_cast %0 : vector<1x24x32xf32> to vector<24x32xf32>
    %2 = vector.extract_strided_slice %1 {offsets = [0, 0], sizes = [23, 32], strides = [1, 1]} : vector<24x32xf32> to vector<23x32xf32>
    %3 = arith.truncf %2 : vector<23x32xf32> to vector<23x32xbf16>
    %4 = vector.extract_strided_slice %1 {offsets = [1, 0], sizes = [23, 32], strides = [1, 1]} : vector<24x32xf32> to vector<23x32xf32>
    %5 = arith.truncf %4 : vector<23x32xf32> to vector<23x32xbf16>
    %c0_2 = arith.constant 0 : index
    %c0_3 = arith.constant 0 : index
    %6 = vector.load %arg2[%c0_2, %c0_3] : memref<32x64xbf16, #tpu.memory_space<vmem>>, vector<32x64xbf16>
    %cst = arith.constant dense<0.000000e+00> : vector<23x64xf32>
    %7 = tpu.matmul %3, %6, %cst {dimension_numbers = #tpu.dot_dimension_numbers<[1], [0], [0], [1], [0, 0, 1, 1], [], []>} : vector<23x32xbf16>, vector<32x64xbf16>, vector<23x64xf32> -> vector<23x64xf32>
    %c0_4 = arith.constant 0 : index
    %c0_5 = arith.constant 0 : index
    %8 = vector.load %arg3[%c0_4, %c0_5] : memref<32x64xbf16, #tpu.memory_space<vmem>>, vector<32x64xbf16>
    %cst_6 = arith.constant dense<0.000000e+00> : vector<23x64xf32>
    %9 = tpu.matmul %5, %8, %cst_6 {dimension_numbers = #tpu.dot_dimension_numbers<[1], [0], [0], [1], [0, 0, 1, 1], [], []>} : vector<23x32xbf16>, vector<32x64xbf16>, vector<23x64xf32> -> vector<23x64xf32>
    %10 = arith.addf %7, %9 : vector<23x64xf32>
    %c0_7 = arith.constant 0 : index
    %c0_8 = arith.constant 0 : index
    %11 = vector.load %arg4[%c0_7, %c0_8] : memref<1x64xf32, #tpu.memory_space<vmem>>, vector<1x64xf32>
    %12 = vector.broadcast %11 : vector<1x64xf32> to vector<23x64xf32>
    %13 = arith.addf %10, %12 : vector<23x64xf32>
    %14 = vector.extract_strided_slice %13 {offsets = [0, 0], sizes = [23, 32], strides = [1, 1]} : vector<23x64xf32> to vector<23x32xf32>
    %15 = math.tanh %14 : vector<23x32xf32>
    %16 = vector.extract_strided_slice %13 {offsets = [0, 32], sizes = [23, 32], strides = [1, 1]} : vector<23x64xf32> to vector<23x32xf32>
    %cst_9 = arith.constant 5.000000e-01 : f32
    %17 = vector.broadcast %cst_9 : f32 to vector<23x32xf32>
    %18 = arith.mulf %17, %16 : vector<23x32xf32>
    %19 = math.tanh %18 : vector<23x32xf32>
    %cst_10 = arith.constant 5.000000e-01 : f32
    %20 = vector.broadcast %cst_10 : f32 to vector<23x32xf32>
    %21 = arith.mulf %20, %19 : vector<23x32xf32>
    %cst_11 = arith.constant 5.000000e-01 : f32
    %22 = vector.broadcast %cst_11 : f32 to vector<23x32xf32>
    %23 = arith.addf %21, %22 : vector<23x32xf32>
    %24 = arith.mulf %15, %23 : vector<23x32xf32>
    %25 = arith.truncf %24 : vector<23x32xf32> to vector<23x32xbf16>
    %c0_12 = arith.constant 0 : index
    %c0_13 = arith.constant 0 : index
    %26 = vector.load %arg7[%c0_12, %c0_13] : memref<32x32xbf16, #tpu.memory_space<vmem>>, vector<32x32xbf16>
    %cst_14 = arith.constant dense<0.000000e+00> : vector<23x32xf32>
    %27 = tpu.matmul %25, %26, %cst_14 {dimension_numbers = #tpu.dot_dimension_numbers<[1], [0], [0], [1], [0, 0, 1, 1], [], []>} : vector<23x32xbf16>, vector<32x32xbf16>, vector<23x32xf32> -> vector<23x32xf32>
    %c0_15 = arith.constant 0 : index
    %c0_16 = arith.constant 0 : index
    %28 = vector.load %arg8[%c0_15, %c0_16] : memref<1x32xf32, #tpu.memory_space<vmem>>, vector<1x32xf32>
    %29 = vector.broadcast %28 : vector<1x32xf32> to vector<23x32xf32>
    %30 = arith.addf %27, %29 : vector<23x32xf32>
    %31 = vector.extract_strided_slice %1 {offsets = [1, 0], sizes = [23, 32], strides = [1, 1]} : vector<24x32xf32> to vector<23x32xf32>
    %32 = arith.addf %30, %31 : vector<23x32xf32>
    %c0_17 = arith.constant 0 : index
    %c0_18 = arith.constant 0 : index
    %c0_19 = arith.constant 0 : index
    %33 = vector.load %arg9[%c0_17, %c0_18, %c0_19] : memref<1x23x32xf32, #tpu.memory_space<vmem>>, vector<1x23x32xf32>
    %34 = vector.shape_cast %33 : vector<1x23x32xf32> to vector<23x32xf32>
    %35 = vector.shape_cast %32 : vector<23x32xf32> to vector<1x23x32xf32>
    tpu.vector_store %arg9[%c0_17, %c0_18, %c0_19], %35 {strides = array<i32>} : memref<1x23x32xf32, #tpu.memory_space<vmem>>, vector<1x23x32xf32>,
    %36 = vector.extract_strided_slice %25 {offsets = [19, 0], sizes = [4, 32], strides = [1, 1]} : vector<23x32xbf16> to vector<4x32xbf16>
    %c0_20 = arith.constant 0 : index
    %c0_21 = arith.constant 0 : index
    %37 = vector.load %arg5[%c0_20, %c0_21] : memref<32x64xbf16, #tpu.memory_space<vmem>>, vector<32x64xbf16>
    %cst_22 = arith.constant dense<0.000000e+00> : vector<4x64xf32>
    %38 = tpu.matmul %36, %37, %cst_22 {dimension_numbers = #tpu.dot_dimension_numbers<[1], [0], [0], [1], [0, 0, 1, 1], [], []>} : vector<4x32xbf16>, vector<32x64xbf16>, vector<4x64xf32> -> vector<4x64xf32>
    %c0_23 = arith.constant 0 : index
    %c0_24 = arith.constant 0 : index
    %39 = vector.load %arg6[%c0_23, %c0_24] : memref<1x64xf32, #tpu.memory_space<vmem>>, vector<1x64xf32>
    %40 = vector.broadcast %39 : vector<1x64xf32> to vector<4x64xf32>
    %41 = arith.addf %38, %40 : vector<4x64xf32>
    %c0_25 = arith.constant 0 : index
    %c0_26 = arith.constant 0 : index
    %c0_27 = arith.constant 0 : index
    %42 = vector.load %arg10[%c0_25, %c0_26, %c0_27] : memref<1x4x64xf32, #tpu.memory_space<vmem>>, vector<1x4x64xf32>
    %43 = vector.shape_cast %42 : vector<1x4x64xf32> to vector<4x64xf32>
    %44 = vector.shape_cast %41 : vector<4x64xf32> to vector<1x4x64xf32>
    tpu.vector_store %arg10[%c0_25, %c0_26, %c0_27], %44 {strides = array<i32>} : memref<1x4x64xf32, #tpu.memory_space<vmem>>, vector<1x4x64xf32>,
    return
  }
  func.func @transform_0(%arg0: i32) -> (i32, i32, i32) {
    %c0_i32 = arith.constant 0 : i32
    %c0_i32_0 = arith.constant 0 : i32
    %c0_i32_1 = arith.constant 0 : i32
    return %arg0, %c0_i32, %c0_i32_0 : i32, i32, i32
  }
  func.func @transform_1(%arg0: i32) -> (i32, i32) {
    %c0_i32 = arith.constant 0 : i32
    %c0_i32_0 = arith.constant 0 : i32
    %c0_i32_1 = arith.constant 0 : i32
    return %c0_i32, %c0_i32_0 : i32, i32
  }
  func.func @transform_2(%arg0: i32) -> (i32, i32) {
    %c0_i32 = arith.constant 0 : i32
    %c0_i32_0 = arith.constant 0 : i32
    %c0_i32_1 = arith.constant 0 : i32
    return %c0_i32, %c0_i32_0 : i32, i32
  }
  func.func @transform_3(%arg0: i32) -> (i32, i32) {
    %c0_i32 = arith.constant 0 : i32
    %c0_i32_0 = arith.constant 0 : i32
    %c0_i32_1 = arith.constant 0 : i32
    return %c0_i32, %c0_i32_0 : i32, i32
  }
  func.func @transform_4(%arg0: i32) -> (i32, i32) {
    %c0_i32 = arith.constant 0 : i32
    %c0_i32_0 = arith.constant 0 : i32
    %c0_i32_1 = arith.constant 0 : i32
    return %c0_i32, %c0_i32_0 : i32, i32
  }
  func.func @transform_5(%arg0: i32) -> (i32, i32) {
    %c0_i32 = arith.constant 0 : i32
    %c0_i32_0 = arith.constant 0 : i32
    %c0_i32_1 = arith.constant 0 : i32
    return %c0_i32, %c0_i32_0 : i32, i32
  }
  func.func @transform_6(%arg0: i32) -> (i32, i32) {
    %c0_i32 = arith.constant 0 : i32
    %c0_i32_0 = arith.constant 0 : i32
    %c0_i32_1 = arith.constant 0 : i32
    return %c0_i32, %c0_i32_0 : i32, i32
  }
  func.func @transform_7(%arg0: i32) -> (i32, i32) {
    %c0_i32 = arith.constant 0 : i32
    %c0_i32_0 = arith.constant 0 : i32
    %c0_i32_1 = arith.constant 0 : i32
    return %c0_i32, %c0_i32_0 : i32, i32
  }
  func.func @transform_8(%arg0: i32) -> (i32, i32, i32) {
    %c0_i32 = arith.constant 0 : i32
    %c0_i32_0 = arith.constant 0 : i32
    %c0_i32_1 = arith.constant 0 : i32
    return %arg0, %c0_i32, %c0_i32_0 : i32, i32, i32
  }
  func.func @transform_9(%arg0: i32) -> (i32, i32, i32) {
    %c0_i32 = arith.constant 0 : i32
    %c0_i32_0 = arith.constant 0 : i32
    %c0_i32_1 = arith.constant 0 : i32
    return %arg0, %c0_i32, %c0_i32_0 : i32, i32, i32
  }
}

module attributes {stable_mosaic.version = 11 : i64} {
  func.func @_layer_kernel(%arg0: i32, %arg1: memref<1x12x32xf32, #tpu.memory_space<vmem>>, %arg2: memref<32x64xbf16, #tpu.memory_space<vmem>>, %arg3: memref<32x64xbf16, #tpu.memory_space<vmem>>, %arg4: memref<1x64xf32, #tpu.memory_space<vmem>>, %arg5: memref<32x64xbf16, #tpu.memory_space<vmem>>, %arg6: memref<1x64xf32, #tpu.memory_space<vmem>>, %arg7: memref<32x32xbf16, #tpu.memory_space<vmem>>, %arg8: memref<1x32xf32, #tpu.memory_space<vmem>>, %arg9: memref<1x11x32xf32, #tpu.memory_space<vmem>>, %arg10: memref<1x2x64xf32, #tpu.memory_space<vmem>>) attributes {dimension_semantics = [#tpu.dimension_semantics<parallel>], iteration_bounds = array<i64: 8>, scalar_prefetch = 0 : i64, scratch_operands = 0 : i64, tpu.core_type = #tpu.core_type<tc>, window_params = [{transform_indices = @transform_0, window_bounds = array<i64: 1, 12, 32>}, {pipeline_mode = #tpu.pipeline_mode<synchronous>, transform_indices = @transform_1, window_bounds = array<i64: 32, 64>}, {pipeline_mode = #tpu.pipeline_mode<synchronous>, transform_indices = @transform_2, window_bounds = array<i64: 32, 64>}, {pipeline_mode = #tpu.pipeline_mode<synchronous>, transform_indices = @transform_3, window_bounds = array<i64: 1, 64>}, {pipeline_mode = #tpu.pipeline_mode<synchronous>, transform_indices = @transform_4, window_bounds = array<i64: 32, 64>}, {pipeline_mode = #tpu.pipeline_mode<synchronous>, transform_indices = @transform_5, window_bounds = array<i64: 1, 64>}, {pipeline_mode = #tpu.pipeline_mode<synchronous>, transform_indices = @transform_6, window_bounds = array<i64: 32, 32>}, {pipeline_mode = #tpu.pipeline_mode<synchronous>, transform_indices = @transform_7, window_bounds = array<i64: 1, 32>}, {transform_indices = @transform_8, window_bounds = array<i64: 1, 11, 32>}, {transform_indices = @transform_9, window_bounds = array<i64: 1, 2, 64>}]} {
    %c0 = arith.constant 0 : index
    %c0_0 = arith.constant 0 : index
    %c0_1 = arith.constant 0 : index
    %0 = vector.load %arg1[%c0, %c0_0, %c0_1] : memref<1x12x32xf32, #tpu.memory_space<vmem>>, vector<1x12x32xf32>
    %1 = vector.shape_cast %0 : vector<1x12x32xf32> to vector<12x32xf32>
    %2 = vector.extract_strided_slice %1 {offsets = [0, 0], sizes = [11, 32], strides = [1, 1]} : vector<12x32xf32> to vector<11x32xf32>
    %3 = arith.truncf %2 : vector<11x32xf32> to vector<11x32xbf16>
    %4 = vector.extract_strided_slice %1 {offsets = [1, 0], sizes = [11, 32], strides = [1, 1]} : vector<12x32xf32> to vector<11x32xf32>
    %5 = arith.truncf %4 : vector<11x32xf32> to vector<11x32xbf16>
    %c0_2 = arith.constant 0 : index
    %c0_3 = arith.constant 0 : index
    %6 = vector.load %arg2[%c0_2, %c0_3] : memref<32x64xbf16, #tpu.memory_space<vmem>>, vector<32x64xbf16>
    %cst = arith.constant dense<0.000000e+00> : vector<11x64xf32>
    %7 = tpu.matmul %3, %6, %cst {dimension_numbers = #tpu.dot_dimension_numbers<[1], [0], [0], [1], [0, 0, 1, 1], [], []>} : vector<11x32xbf16>, vector<32x64xbf16>, vector<11x64xf32> -> vector<11x64xf32>
    %c0_4 = arith.constant 0 : index
    %c0_5 = arith.constant 0 : index
    %8 = vector.load %arg3[%c0_4, %c0_5] : memref<32x64xbf16, #tpu.memory_space<vmem>>, vector<32x64xbf16>
    %cst_6 = arith.constant dense<0.000000e+00> : vector<11x64xf32>
    %9 = tpu.matmul %5, %8, %cst_6 {dimension_numbers = #tpu.dot_dimension_numbers<[1], [0], [0], [1], [0, 0, 1, 1], [], []>} : vector<11x32xbf16>, vector<32x64xbf16>, vector<11x64xf32> -> vector<11x64xf32>
    %10 = arith.addf %7, %9 : vector<11x64xf32>
    %c0_7 = arith.constant 0 : index
    %c0_8 = arith.constant 0 : index
    %11 = vector.load %arg4[%c0_7, %c0_8] : memref<1x64xf32, #tpu.memory_space<vmem>>, vector<1x64xf32>
    %12 = vector.broadcast %11 : vector<1x64xf32> to vector<11x64xf32>
    %13 = arith.addf %10, %12 : vector<11x64xf32>
    %14 = vector.extract_strided_slice %13 {offsets = [0, 0], sizes = [11, 32], strides = [1, 1]} : vector<11x64xf32> to vector<11x32xf32>
    %15 = math.tanh %14 : vector<11x32xf32>
    %16 = vector.extract_strided_slice %13 {offsets = [0, 32], sizes = [11, 32], strides = [1, 1]} : vector<11x64xf32> to vector<11x32xf32>
    %cst_9 = arith.constant 5.000000e-01 : f32
    %17 = vector.broadcast %cst_9 : f32 to vector<11x32xf32>
    %18 = arith.mulf %17, %16 : vector<11x32xf32>
    %19 = math.tanh %18 : vector<11x32xf32>
    %cst_10 = arith.constant 5.000000e-01 : f32
    %20 = vector.broadcast %cst_10 : f32 to vector<11x32xf32>
    %21 = arith.mulf %20, %19 : vector<11x32xf32>
    %cst_11 = arith.constant 5.000000e-01 : f32
    %22 = vector.broadcast %cst_11 : f32 to vector<11x32xf32>
    %23 = arith.addf %21, %22 : vector<11x32xf32>
    %24 = arith.mulf %15, %23 : vector<11x32xf32>
    %25 = arith.truncf %24 : vector<11x32xf32> to vector<11x32xbf16>
    %c0_12 = arith.constant 0 : index
    %c0_13 = arith.constant 0 : index
    %26 = vector.load %arg7[%c0_12, %c0_13] : memref<32x32xbf16, #tpu.memory_space<vmem>>, vector<32x32xbf16>
    %cst_14 = arith.constant dense<0.000000e+00> : vector<11x32xf32>
    %27 = tpu.matmul %25, %26, %cst_14 {dimension_numbers = #tpu.dot_dimension_numbers<[1], [0], [0], [1], [0, 0, 1, 1], [], []>} : vector<11x32xbf16>, vector<32x32xbf16>, vector<11x32xf32> -> vector<11x32xf32>
    %c0_15 = arith.constant 0 : index
    %c0_16 = arith.constant 0 : index
    %28 = vector.load %arg8[%c0_15, %c0_16] : memref<1x32xf32, #tpu.memory_space<vmem>>, vector<1x32xf32>
    %29 = vector.broadcast %28 : vector<1x32xf32> to vector<11x32xf32>
    %30 = arith.addf %27, %29 : vector<11x32xf32>
    %31 = vector.extract_strided_slice %1 {offsets = [1, 0], sizes = [11, 32], strides = [1, 1]} : vector<12x32xf32> to vector<11x32xf32>
    %32 = arith.addf %30, %31 : vector<11x32xf32>
    %c0_17 = arith.constant 0 : index
    %c0_18 = arith.constant 0 : index
    %c0_19 = arith.constant 0 : index
    %33 = vector.load %arg9[%c0_17, %c0_18, %c0_19] : memref<1x11x32xf32, #tpu.memory_space<vmem>>, vector<1x11x32xf32>
    %34 = vector.shape_cast %33 : vector<1x11x32xf32> to vector<11x32xf32>
    %35 = vector.shape_cast %32 : vector<11x32xf32> to vector<1x11x32xf32>
    tpu.vector_store %arg9[%c0_17, %c0_18, %c0_19], %35 {strides = array<i32>} : memref<1x11x32xf32, #tpu.memory_space<vmem>>, vector<1x11x32xf32>,
    %36 = vector.extract_strided_slice %25 {offsets = [9, 0], sizes = [2, 32], strides = [1, 1]} : vector<11x32xbf16> to vector<2x32xbf16>
    %c0_20 = arith.constant 0 : index
    %c0_21 = arith.constant 0 : index
    %37 = vector.load %arg5[%c0_20, %c0_21] : memref<32x64xbf16, #tpu.memory_space<vmem>>, vector<32x64xbf16>
    %cst_22 = arith.constant dense<0.000000e+00> : vector<2x64xf32>
    %38 = tpu.matmul %36, %37, %cst_22 {dimension_numbers = #tpu.dot_dimension_numbers<[1], [0], [0], [1], [0, 0, 1, 1], [], []>} : vector<2x32xbf16>, vector<32x64xbf16>, vector<2x64xf32> -> vector<2x64xf32>
    %c0_23 = arith.constant 0 : index
    %c0_24 = arith.constant 0 : index
    %39 = vector.load %arg6[%c0_23, %c0_24] : memref<1x64xf32, #tpu.memory_space<vmem>>, vector<1x64xf32>
    %40 = vector.broadcast %39 : vector<1x64xf32> to vector<2x64xf32>
    %41 = arith.addf %38, %40 : vector<2x64xf32>
    %c0_25 = arith.constant 0 : index
    %c0_26 = arith.constant 0 : index
    %c0_27 = arith.constant 0 : index
    %42 = vector.load %arg10[%c0_25, %c0_26, %c0_27] : memref<1x2x64xf32, #tpu.memory_space<vmem>>, vector<1x2x64xf32>
    %43 = vector.shape_cast %42 : vector<1x2x64xf32> to vector<2x64xf32>
    %44 = vector.shape_cast %41 : vector<2x64xf32> to vector<1x2x64xf32>
    tpu.vector_store %arg10[%c0_25, %c0_26, %c0_27], %44 {strides = array<i32>} : memref<1x2x64xf32, #tpu.memory_space<vmem>>, vector<1x2x64xf32>,
    return
  }
  func.func @transform_0(%arg0: i32) -> (i32, i32, i32) {
    %c0_i32 = arith.constant 0 : i32
    %c0_i32_0 = arith.constant 0 : i32
    %c0_i32_1 = arith.constant 0 : i32
    return %arg0, %c0_i32, %c0_i32_0 : i32, i32, i32
  }
  func.func @transform_1(%arg0: i32) -> (i32, i32) {
    %c0_i32 = arith.constant 0 : i32
    %c0_i32_0 = arith.constant 0 : i32
    %c0_i32_1 = arith.constant 0 : i32
    return %c0_i32, %c0_i32_0 : i32, i32
  }
  func.func @transform_2(%arg0: i32) -> (i32, i32) {
    %c0_i32 = arith.constant 0 : i32
    %c0_i32_0 = arith.constant 0 : i32
    %c0_i32_1 = arith.constant 0 : i32
    return %c0_i32, %c0_i32_0 : i32, i32
  }
  func.func @transform_3(%arg0: i32) -> (i32, i32) {
    %c0_i32 = arith.constant 0 : i32
    %c0_i32_0 = arith.constant 0 : i32
    %c0_i32_1 = arith.constant 0 : i32
    return %c0_i32, %c0_i32_0 : i32, i32
  }
  func.func @transform_4(%arg0: i32) -> (i32, i32) {
    %c0_i32 = arith.constant 0 : i32
    %c0_i32_0 = arith.constant 0 : i32
    %c0_i32_1 = arith.constant 0 : i32
    return %c0_i32, %c0_i32_0 : i32, i32
  }
  func.func @transform_5(%arg0: i32) -> (i32, i32) {
    %c0_i32 = arith.constant 0 : i32
    %c0_i32_0 = arith.constant 0 : i32
    %c0_i32_1 = arith.constant 0 : i32
    return %c0_i32, %c0_i32_0 : i32, i32
  }
  func.func @transform_6(%arg0: i32) -> (i32, i32) {
    %c0_i32 = arith.constant 0 : i32
    %c0_i32_0 = arith.constant 0 : i32
    %c0_i32_1 = arith.constant 0 : i32
    return %c0_i32, %c0_i32_0 : i32, i32
  }
  func.func @transform_7(%arg0: i32) -> (i32, i32) {
    %c0_i32 = arith.constant 0 : i32
    %c0_i32_0 = arith.constant 0 : i32
    %c0_i32_1 = arith.constant 0 : i32
    return %c0_i32, %c0_i32_0 : i32, i32
  }
  func.func @transform_8(%arg0: i32) -> (i32, i32, i32) {
    %c0_i32 = arith.constant 0 : i32
    %c0_i32_0 = arith.constant 0 : i32
    %c0_i32_1 = arith.constant 0 : i32
    return %arg0, %c0_i32, %c0_i32_0 : i32, i32, i32
  }
  func.func @transform_9(%arg0: i32) -> (i32, i32, i32) {
    %c0_i32 = arith.constant 0 : i32
    %c0_i32_0 = arith.constant 0 : i32
    %c0_i32_1 = arith.constant 0 : i32
    return %arg0, %c0_i32, %c0_i32_0 : i32, i32, i32
  }
}

module attributes {stable_mosaic.version = 11 : i64} {
  func.func @_layer_kernel(%arg0: i32, %arg1: memref<1x44x32xf32, #tpu.memory_space<vmem>>, %arg2: memref<32x64xbf16, #tpu.memory_space<vmem>>, %arg3: memref<32x64xbf16, #tpu.memory_space<vmem>>, %arg4: memref<1x64xf32, #tpu.memory_space<vmem>>, %arg5: memref<32x64xbf16, #tpu.memory_space<vmem>>, %arg6: memref<1x64xf32, #tpu.memory_space<vmem>>, %arg7: memref<32x32xbf16, #tpu.memory_space<vmem>>, %arg8: memref<1x32xf32, #tpu.memory_space<vmem>>, %arg9: memref<1x43x32xf32, #tpu.memory_space<vmem>>, %arg10: memref<1x8x64xf32, #tpu.memory_space<vmem>>) attributes {dimension_semantics = [#tpu.dimension_semantics<parallel>], iteration_bounds = array<i64: 2>, scalar_prefetch = 0 : i64, scratch_operands = 0 : i64, tpu.core_type = #tpu.core_type<tc>, window_params = [{transform_indices = @transform_0, window_bounds = array<i64: 1, 44, 32>}, {pipeline_mode = #tpu.pipeline_mode<synchronous>, transform_indices = @transform_1, window_bounds = array<i64: 32, 64>}, {pipeline_mode = #tpu.pipeline_mode<synchronous>, transform_indices = @transform_2, window_bounds = array<i64: 32, 64>}, {pipeline_mode = #tpu.pipeline_mode<synchronous>, transform_indices = @transform_3, window_bounds = array<i64: 1, 64>}, {pipeline_mode = #tpu.pipeline_mode<synchronous>, transform_indices = @transform_4, window_bounds = array<i64: 32, 64>}, {pipeline_mode = #tpu.pipeline_mode<synchronous>, transform_indices = @transform_5, window_bounds = array<i64: 1, 64>}, {pipeline_mode = #tpu.pipeline_mode<synchronous>, transform_indices = @transform_6, window_bounds = array<i64: 32, 32>}, {pipeline_mode = #tpu.pipeline_mode<synchronous>, transform_indices = @transform_7, window_bounds = array<i64: 1, 32>}, {transform_indices = @transform_8, window_bounds = array<i64: 1, 43, 32>}, {transform_indices = @transform_9, window_bounds = array<i64: 1, 8, 64>}]} {
    %c0 = arith.constant 0 : index
    %c0_0 = arith.constant 0 : index
    %c0_1 = arith.constant 0 : index
    %0 = vector.load %arg1[%c0, %c0_0, %c0_1] : memref<1x44x32xf32, #tpu.memory_space<vmem>>, vector<1x44x32xf32>
    %1 = vector.shape_cast %0 : vector<1x44x32xf32> to vector<44x32xf32>
    %2 = vector.extract_strided_slice %1 {offsets = [0, 0], sizes = [43, 32], strides = [1, 1]} : vector<44x32xf32> to vector<43x32xf32>
    %3 = arith.truncf %2 : vector<43x32xf32> to vector<43x32xbf16>
    %4 = vector.extract_strided_slice %1 {offsets = [1, 0], sizes = [43, 32], strides = [1, 1]} : vector<44x32xf32> to vector<43x32xf32>
    %5 = arith.truncf %4 : vector<43x32xf32> to vector<43x32xbf16>
    %c0_2 = arith.constant 0 : index
    %c0_3 = arith.constant 0 : index
    %6 = vector.load %arg2[%c0_2, %c0_3] : memref<32x64xbf16, #tpu.memory_space<vmem>>, vector<32x64xbf16>
    %cst = arith.constant dense<0.000000e+00> : vector<43x64xf32>
    %7 = tpu.matmul %3, %6, %cst {dimension_numbers = #tpu.dot_dimension_numbers<[1], [0], [0], [1], [0, 0, 1, 1], [], []>} : vector<43x32xbf16>, vector<32x64xbf16>, vector<43x64xf32> -> vector<43x64xf32>
    %c0_4 = arith.constant 0 : index
    %c0_5 = arith.constant 0 : index
    %8 = vector.load %arg3[%c0_4, %c0_5] : memref<32x64xbf16, #tpu.memory_space<vmem>>, vector<32x64xbf16>
    %cst_6 = arith.constant dense<0.000000e+00> : vector<43x64xf32>
    %9 = tpu.matmul %5, %8, %cst_6 {dimension_numbers = #tpu.dot_dimension_numbers<[1], [0], [0], [1], [0, 0, 1, 1], [], []>} : vector<43x32xbf16>, vector<32x64xbf16>, vector<43x64xf32> -> vector<43x64xf32>
    %10 = arith.addf %7, %9 : vector<43x64xf32>
    %c0_7 = arith.constant 0 : index
    %c0_8 = arith.constant 0 : index
    %11 = vector.load %arg4[%c0_7, %c0_8] : memref<1x64xf32, #tpu.memory_space<vmem>>, vector<1x64xf32>
    %12 = vector.broadcast %11 : vector<1x64xf32> to vector<43x64xf32>
    %13 = arith.addf %10, %12 : vector<43x64xf32>
    %14 = vector.extract_strided_slice %13 {offsets = [0, 0], sizes = [43, 32], strides = [1, 1]} : vector<43x64xf32> to vector<43x32xf32>
    %15 = math.tanh %14 : vector<43x32xf32>
    %16 = vector.extract_strided_slice %13 {offsets = [0, 32], sizes = [43, 32], strides = [1, 1]} : vector<43x64xf32> to vector<43x32xf32>
    %cst_9 = arith.constant 5.000000e-01 : f32
    %17 = vector.broadcast %cst_9 : f32 to vector<43x32xf32>
    %18 = arith.mulf %17, %16 : vector<43x32xf32>
    %19 = math.tanh %18 : vector<43x32xf32>
    %cst_10 = arith.constant 5.000000e-01 : f32
    %20 = vector.broadcast %cst_10 : f32 to vector<43x32xf32>
    %21 = arith.mulf %20, %19 : vector<43x32xf32>
    %cst_11 = arith.constant 5.000000e-01 : f32
    %22 = vector.broadcast %cst_11 : f32 to vector<43x32xf32>
    %23 = arith.addf %21, %22 : vector<43x32xf32>
    %24 = arith.mulf %15, %23 : vector<43x32xf32>
    %25 = arith.truncf %24 : vector<43x32xf32> to vector<43x32xbf16>
    %c0_12 = arith.constant 0 : index
    %c0_13 = arith.constant 0 : index
    %26 = vector.load %arg7[%c0_12, %c0_13] : memref<32x32xbf16, #tpu.memory_space<vmem>>, vector<32x32xbf16>
    %cst_14 = arith.constant dense<0.000000e+00> : vector<43x32xf32>
    %27 = tpu.matmul %25, %26, %cst_14 {dimension_numbers = #tpu.dot_dimension_numbers<[1], [0], [0], [1], [0, 0, 1, 1], [], []>} : vector<43x32xbf16>, vector<32x32xbf16>, vector<43x32xf32> -> vector<43x32xf32>
    %c0_15 = arith.constant 0 : index
    %c0_16 = arith.constant 0 : index
    %28 = vector.load %arg8[%c0_15, %c0_16] : memref<1x32xf32, #tpu.memory_space<vmem>>, vector<1x32xf32>
    %29 = vector.broadcast %28 : vector<1x32xf32> to vector<43x32xf32>
    %30 = arith.addf %27, %29 : vector<43x32xf32>
    %31 = vector.extract_strided_slice %1 {offsets = [1, 0], sizes = [43, 32], strides = [1, 1]} : vector<44x32xf32> to vector<43x32xf32>
    %32 = arith.addf %30, %31 : vector<43x32xf32>
    %c0_17 = arith.constant 0 : index
    %c0_18 = arith.constant 0 : index
    %c0_19 = arith.constant 0 : index
    %33 = vector.load %arg9[%c0_17, %c0_18, %c0_19] : memref<1x43x32xf32, #tpu.memory_space<vmem>>, vector<1x43x32xf32>
    %34 = vector.shape_cast %33 : vector<1x43x32xf32> to vector<43x32xf32>
    %35 = vector.shape_cast %32 : vector<43x32xf32> to vector<1x43x32xf32>
    tpu.vector_store %arg9[%c0_17, %c0_18, %c0_19], %35 {strides = array<i32>} : memref<1x43x32xf32, #tpu.memory_space<vmem>>, vector<1x43x32xf32>,
    %36 = vector.extract_strided_slice %25 {offsets = [35, 0], sizes = [8, 32], strides = [1, 1]} : vector<43x32xbf16> to vector<8x32xbf16>
    %c0_20 = arith.constant 0 : index
    %c0_21 = arith.constant 0 : index
    %37 = vector.load %arg5[%c0_20, %c0_21] : memref<32x64xbf16, #tpu.memory_space<vmem>>, vector<32x64xbf16>
    %cst_22 = arith.constant dense<0.000000e+00> : vector<8x64xf32>
    %38 = tpu.matmul %36, %37, %cst_22 {dimension_numbers = #tpu.dot_dimension_numbers<[1], [0], [0], [1], [0, 0, 1, 1], [], []>} : vector<8x32xbf16>, vector<32x64xbf16>, vector<8x64xf32> -> vector<8x64xf32>
    %c0_23 = arith.constant 0 : index
    %c0_24 = arith.constant 0 : index
    %39 = vector.load %arg6[%c0_23, %c0_24] : memref<1x64xf32, #tpu.memory_space<vmem>>, vector<1x64xf32>
    %40 = vector.broadcast %39 : vector<1x64xf32> to vector<8x64xf32>
    %41 = arith.addf %38, %40 : vector<8x64xf32>
    %c0_25 = arith.constant 0 : index
    %c0_26 = arith.constant 0 : index
    %c0_27 = arith.constant 0 : index
    %42 = vector.load %arg10[%c0_25, %c0_26, %c0_27] : memref<1x8x64xf32, #tpu.memory_space<vmem>>, vector<1x8x64xf32>
    %43 = vector.shape_cast %42 : vector<1x8x64xf32> to vector<8x64xf32>
    %44 = vector.shape_cast %41 : vector<8x64xf32> to vector<1x8x64xf32>
    tpu.vector_store %arg10[%c0_25, %c0_26, %c0_27], %44 {strides = array<i32>} : memref<1x8x64xf32, #tpu.memory_space<vmem>>, vector<1x8x64xf32>,
    return
  }
  func.func @transform_0(%arg0: i32) -> (i32, i32, i32) {
    %c0_i32 = arith.constant 0 : i32
    %c0_i32_0 = arith.constant 0 : i32
    %c0_i32_1 = arith.constant 0 : i32
    return %arg0, %c0_i32, %c0_i32_0 : i32, i32, i32
  }
  func.func @transform_1(%arg0: i32) -> (i32, i32) {
    %c0_i32 = arith.constant 0 : i32
    %c0_i32_0 = arith.constant 0 : i32
    %c0_i32_1 = arith.constant 0 : i32
    return %c0_i32, %c0_i32_0 : i32, i32
  }
  func.func @transform_2(%arg0: i32) -> (i32, i32) {
    %c0_i32 = arith.constant 0 : i32
    %c0_i32_0 = arith.constant 0 : i32
    %c0_i32_1 = arith.constant 0 : i32
    return %c0_i32, %c0_i32_0 : i32, i32
  }
  func.func @transform_3(%arg0: i32) -> (i32, i32) {
    %c0_i32 = arith.constant 0 : i32
    %c0_i32_0 = arith.constant 0 : i32
    %c0_i32_1 = arith.constant 0 : i32
    return %c0_i32, %c0_i32_0 : i32, i32
  }
  func.func @transform_4(%arg0: i32) -> (i32, i32) {
    %c0_i32 = arith.constant 0 : i32
    %c0_i32_0 = arith.constant 0 : i32
    %c0_i32_1 = arith.constant 0 : i32
    return %c0_i32, %c0_i32_0 : i32, i32
  }
  func.func @transform_5(%arg0: i32) -> (i32, i32) {
    %c0_i32 = arith.constant 0 : i32
    %c0_i32_0 = arith.constant 0 : i32
    %c0_i32_1 = arith.constant 0 : i32
    return %c0_i32, %c0_i32_0 : i32, i32
  }
  func.func @transform_6(%arg0: i32) -> (i32, i32) {
    %c0_i32 = arith.constant 0 : i32
    %c0_i32_0 = arith.constant 0 : i32
    %c0_i32_1 = arith.constant 0 : i32
    return %c0_i32, %c0_i32_0 : i32, i32
  }
  func.func @transform_7(%arg0: i32) -> (i32, i32) {
    %c0_i32 = arith.constant 0 : i32
    %c0_i32_0 = arith.constant 0 : i32
    %c0_i32_1 = arith.constant 0 : i32
    return %c0_i32, %c0_i32_0 : i32, i32
  }
  func.func @transform_8(%arg0: i32) -> (i32, i32, i32) {
    %c0_i32 = arith.constant 0 : i32
    %c0_i32_0 = arith.constant 0 : i32
    %c0_i32_1 = arith.constant 0 : i32
    return %arg0, %c0_i32, %c0_i32_0 : i32, i32, i32
  }
  func.func @transform_9(%arg0: i32) -> (i32, i32, i32) {
    %c0_i32 = arith.constant 0 : i32
    %c0_i32_0 = arith.constant 0 : i32
    %c0_i32_1 = arith.constant 0 : i32
    return %arg0, %c0_i32, %c0_i32_0 : i32, i32, i32
  }
}

module attributes {stable_mosaic.version = 11 : i64} {
  func.func @_layer_kernel(%arg0: i32, %arg1: memref<1x22x32xf32, #tpu.memory_space<vmem>>, %arg2: memref<32x64xbf16, #tpu.memory_space<vmem>>, %arg3: memref<32x64xbf16, #tpu.memory_space<vmem>>, %arg4: memref<1x64xf32, #tpu.memory_space<vmem>>, %arg5: memref<32x64xbf16, #tpu.memory_space<vmem>>, %arg6: memref<1x64xf32, #tpu.memory_space<vmem>>, %arg7: memref<32x32xbf16, #tpu.memory_space<vmem>>, %arg8: memref<1x32xf32, #tpu.memory_space<vmem>>, %arg9: memref<1x21x32xf32, #tpu.memory_space<vmem>>, %arg10: memref<1x4x64xf32, #tpu.memory_space<vmem>>) attributes {dimension_semantics = [#tpu.dimension_semantics<parallel>], iteration_bounds = array<i64: 4>, scalar_prefetch = 0 : i64, scratch_operands = 0 : i64, tpu.core_type = #tpu.core_type<tc>, window_params = [{transform_indices = @transform_0, window_bounds = array<i64: 1, 22, 32>}, {pipeline_mode = #tpu.pipeline_mode<synchronous>, transform_indices = @transform_1, window_bounds = array<i64: 32, 64>}, {pipeline_mode = #tpu.pipeline_mode<synchronous>, transform_indices = @transform_2, window_bounds = array<i64: 32, 64>}, {pipeline_mode = #tpu.pipeline_mode<synchronous>, transform_indices = @transform_3, window_bounds = array<i64: 1, 64>}, {pipeline_mode = #tpu.pipeline_mode<synchronous>, transform_indices = @transform_4, window_bounds = array<i64: 32, 64>}, {pipeline_mode = #tpu.pipeline_mode<synchronous>, transform_indices = @transform_5, window_bounds = array<i64: 1, 64>}, {pipeline_mode = #tpu.pipeline_mode<synchronous>, transform_indices = @transform_6, window_bounds = array<i64: 32, 32>}, {pipeline_mode = #tpu.pipeline_mode<synchronous>, transform_indices = @transform_7, window_bounds = array<i64: 1, 32>}, {transform_indices = @transform_8, window_bounds = array<i64: 1, 21, 32>}, {transform_indices = @transform_9, window_bounds = array<i64: 1, 4, 64>}]} {
    %c0 = arith.constant 0 : index
    %c0_0 = arith.constant 0 : index
    %c0_1 = arith.constant 0 : index
    %0 = vector.load %arg1[%c0, %c0_0, %c0_1] : memref<1x22x32xf32, #tpu.memory_space<vmem>>, vector<1x22x32xf32>
    %1 = vector.shape_cast %0 : vector<1x22x32xf32> to vector<22x32xf32>
    %2 = vector.extract_strided_slice %1 {offsets = [0, 0], sizes = [21, 32], strides = [1, 1]} : vector<22x32xf32> to vector<21x32xf32>
    %3 = arith.truncf %2 : vector<21x32xf32> to vector<21x32xbf16>
    %4 = vector.extract_strided_slice %1 {offsets = [1, 0], sizes = [21, 32], strides = [1, 1]} : vector<22x32xf32> to vector<21x32xf32>
    %5 = arith.truncf %4 : vector<21x32xf32> to vector<21x32xbf16>
    %c0_2 = arith.constant 0 : index
    %c0_3 = arith.constant 0 : index
    %6 = vector.load %arg2[%c0_2, %c0_3] : memref<32x64xbf16, #tpu.memory_space<vmem>>, vector<32x64xbf16>
    %cst = arith.constant dense<0.000000e+00> : vector<21x64xf32>
    %7 = tpu.matmul %3, %6, %cst {dimension_numbers = #tpu.dot_dimension_numbers<[1], [0], [0], [1], [0, 0, 1, 1], [], []>} : vector<21x32xbf16>, vector<32x64xbf16>, vector<21x64xf32> -> vector<21x64xf32>
    %c0_4 = arith.constant 0 : index
    %c0_5 = arith.constant 0 : index
    %8 = vector.load %arg3[%c0_4, %c0_5] : memref<32x64xbf16, #tpu.memory_space<vmem>>, vector<32x64xbf16>
    %cst_6 = arith.constant dense<0.000000e+00> : vector<21x64xf32>
    %9 = tpu.matmul %5, %8, %cst_6 {dimension_numbers = #tpu.dot_dimension_numbers<[1], [0], [0], [1], [0, 0, 1, 1], [], []>} : vector<21x32xbf16>, vector<32x64xbf16>, vector<21x64xf32> -> vector<21x64xf32>
    %10 = arith.addf %7, %9 : vector<21x64xf32>
    %c0_7 = arith.constant 0 : index
    %c0_8 = arith.constant 0 : index
    %11 = vector.load %arg4[%c0_7, %c0_8] : memref<1x64xf32, #tpu.memory_space<vmem>>, vector<1x64xf32>
    %12 = vector.broadcast %11 : vector<1x64xf32> to vector<21x64xf32>
    %13 = arith.addf %10, %12 : vector<21x64xf32>
    %14 = vector.extract_strided_slice %13 {offsets = [0, 0], sizes = [21, 32], strides = [1, 1]} : vector<21x64xf32> to vector<21x32xf32>
    %15 = math.tanh %14 : vector<21x32xf32>
    %16 = vector.extract_strided_slice %13 {offsets = [0, 32], sizes = [21, 32], strides = [1, 1]} : vector<21x64xf32> to vector<21x32xf32>
    %cst_9 = arith.constant 5.000000e-01 : f32
    %17 = vector.broadcast %cst_9 : f32 to vector<21x32xf32>
    %18 = arith.mulf %17, %16 : vector<21x32xf32>
    %19 = math.tanh %18 : vector<21x32xf32>
    %cst_10 = arith.constant 5.000000e-01 : f32
    %20 = vector.broadcast %cst_10 : f32 to vector<21x32xf32>
    %21 = arith.mulf %20, %19 : vector<21x32xf32>
    %cst_11 = arith.constant 5.000000e-01 : f32
    %22 = vector.broadcast %cst_11 : f32 to vector<21x32xf32>
    %23 = arith.addf %21, %22 : vector<21x32xf32>
    %24 = arith.mulf %15, %23 : vector<21x32xf32>
    %25 = arith.truncf %24 : vector<21x32xf32> to vector<21x32xbf16>
    %c0_12 = arith.constant 0 : index
    %c0_13 = arith.constant 0 : index
    %26 = vector.load %arg7[%c0_12, %c0_13] : memref<32x32xbf16, #tpu.memory_space<vmem>>, vector<32x32xbf16>
    %cst_14 = arith.constant dense<0.000000e+00> : vector<21x32xf32>
    %27 = tpu.matmul %25, %26, %cst_14 {dimension_numbers = #tpu.dot_dimension_numbers<[1], [0], [0], [1], [0, 0, 1, 1], [], []>} : vector<21x32xbf16>, vector<32x32xbf16>, vector<21x32xf32> -> vector<21x32xf32>
    %c0_15 = arith.constant 0 : index
    %c0_16 = arith.constant 0 : index
    %28 = vector.load %arg8[%c0_15, %c0_16] : memref<1x32xf32, #tpu.memory_space<vmem>>, vector<1x32xf32>
    %29 = vector.broadcast %28 : vector<1x32xf32> to vector<21x32xf32>
    %30 = arith.addf %27, %29 : vector<21x32xf32>
    %31 = vector.extract_strided_slice %1 {offsets = [1, 0], sizes = [21, 32], strides = [1, 1]} : vector<22x32xf32> to vector<21x32xf32>
    %32 = arith.addf %30, %31 : vector<21x32xf32>
    %c0_17 = arith.constant 0 : index
    %c0_18 = arith.constant 0 : index
    %c0_19 = arith.constant 0 : index
    %33 = vector.load %arg9[%c0_17, %c0_18, %c0_19] : memref<1x21x32xf32, #tpu.memory_space<vmem>>, vector<1x21x32xf32>
    %34 = vector.shape_cast %33 : vector<1x21x32xf32> to vector<21x32xf32>
    %35 = vector.shape_cast %32 : vector<21x32xf32> to vector<1x21x32xf32>
    tpu.vector_store %arg9[%c0_17, %c0_18, %c0_19], %35 {strides = array<i32>} : memref<1x21x32xf32, #tpu.memory_space<vmem>>, vector<1x21x32xf32>,
    %36 = vector.extract_strided_slice %25 {offsets = [17, 0], sizes = [4, 32], strides = [1, 1]} : vector<21x32xbf16> to vector<4x32xbf16>
    %c0_20 = arith.constant 0 : index
    %c0_21 = arith.constant 0 : index
    %37 = vector.load %arg5[%c0_20, %c0_21] : memref<32x64xbf16, #tpu.memory_space<vmem>>, vector<32x64xbf16>
    %cst_22 = arith.constant dense<0.000000e+00> : vector<4x64xf32>
    %38 = tpu.matmul %36, %37, %cst_22 {dimension_numbers = #tpu.dot_dimension_numbers<[1], [0], [0], [1], [0, 0, 1, 1], [], []>} : vector<4x32xbf16>, vector<32x64xbf16>, vector<4x64xf32> -> vector<4x64xf32>
    %c0_23 = arith.constant 0 : index
    %c0_24 = arith.constant 0 : index
    %39 = vector.load %arg6[%c0_23, %c0_24] : memref<1x64xf32, #tpu.memory_space<vmem>>, vector<1x64xf32>
    %40 = vector.broadcast %39 : vector<1x64xf32> to vector<4x64xf32>
    %41 = arith.addf %38, %40 : vector<4x64xf32>
    %c0_25 = arith.constant 0 : index
    %c0_26 = arith.constant 0 : index
    %c0_27 = arith.constant 0 : index
    %42 = vector.load %arg10[%c0_25, %c0_26, %c0_27] : memref<1x4x64xf32, #tpu.memory_space<vmem>>, vector<1x4x64xf32>
    %43 = vector.shape_cast %42 : vector<1x4x64xf32> to vector<4x64xf32>
    %44 = vector.shape_cast %41 : vector<4x64xf32> to vector<1x4x64xf32>
    tpu.vector_store %arg10[%c0_25, %c0_26, %c0_27], %44 {strides = array<i32>} : memref<1x4x64xf32, #tpu.memory_space<vmem>>, vector<1x4x64xf32>,
    return
  }
  func.func @transform_0(%arg0: i32) -> (i32, i32, i32) {
    %c0_i32 = arith.constant 0 : i32
    %c0_i32_0 = arith.constant 0 : i32
    %c0_i32_1 = arith.constant 0 : i32
    return %arg0, %c0_i32, %c0_i32_0 : i32, i32, i32
  }
  func.func @transform_1(%arg0: i32) -> (i32, i32) {
    %c0_i32 = arith.constant 0 : i32
    %c0_i32_0 = arith.constant 0 : i32
    %c0_i32_1 = arith.constant 0 : i32
    return %c0_i32, %c0_i32_0 : i32, i32
  }
  func.func @transform_2(%arg0: i32) -> (i32, i32) {
    %c0_i32 = arith.constant 0 : i32
    %c0_i32_0 = arith.constant 0 : i32
    %c0_i32_1 = arith.constant 0 : i32
    return %c0_i32, %c0_i32_0 : i32, i32
  }
  func.func @transform_3(%arg0: i32) -> (i32, i32) {
    %c0_i32 = arith.constant 0 : i32
    %c0_i32_0 = arith.constant 0 : i32
    %c0_i32_1 = arith.constant 0 : i32
    return %c0_i32, %c0_i32_0 : i32, i32
  }
  func.func @transform_4(%arg0: i32) -> (i32, i32) {
    %c0_i32 = arith.constant 0 : i32
    %c0_i32_0 = arith.constant 0 : i32
    %c0_i32_1 = arith.constant 0 : i32
    return %c0_i32, %c0_i32_0 : i32, i32
  }
  func.func @transform_5(%arg0: i32) -> (i32, i32) {
    %c0_i32 = arith.constant 0 : i32
    %c0_i32_0 = arith.constant 0 : i32
    %c0_i32_1 = arith.constant 0 : i32
    return %c0_i32, %c0_i32_0 : i32, i32
  }
  func.func @transform_6(%arg0: i32) -> (i32, i32) {
    %c0_i32 = arith.constant 0 : i32
    %c0_i32_0 = arith.constant 0 : i32
    %c0_i32_1 = arith.constant 0 : i32
    return %c0_i32, %c0_i32_0 : i32, i32
  }
  func.func @transform_7(%arg0: i32) -> (i32, i32) {
    %c0_i32 = arith.constant 0 : i32
    %c0_i32_0 = arith.constant 0 : i32
    %c0_i32_1 = arith.constant 0 : i32
    return %c0_i32, %c0_i32_0 : i32, i32
  }
  func.func @transform_8(%arg0: i32) -> (i32, i32, i32) {
    %c0_i32 = arith.constant 0 : i32
    %c0_i32_0 = arith.constant 0 : i32
    %c0_i32_1 = arith.constant 0 : i32
    return %arg0, %c0_i32, %c0_i32_0 : i32, i32, i32
  }
  func.func @transform_9(%arg0: i32) -> (i32, i32, i32) {
    %c0_i32 = arith.constant 0 : i32
    %c0_i32_0 = arith.constant 0 : i32
    %c0_i32_1 = arith.constant 0 : i32
    return %arg0, %c0_i32, %c0_i32_0 : i32, i32, i32
  }
}

module attributes {stable_mosaic.version = 11 : i64} {
  func.func @_layer_kernel(%arg0: i32, %arg1: memref<1x11x32xf32, #tpu.memory_space<vmem>>, %arg2: memref<32x64xbf16, #tpu.memory_space<vmem>>, %arg3: memref<32x64xbf16, #tpu.memory_space<vmem>>, %arg4: memref<1x64xf32, #tpu.memory_space<vmem>>, %arg5: memref<32x64xbf16, #tpu.memory_space<vmem>>, %arg6: memref<1x64xf32, #tpu.memory_space<vmem>>, %arg7: memref<32x32xbf16, #tpu.memory_space<vmem>>, %arg8: memref<1x32xf32, #tpu.memory_space<vmem>>, %arg9: memref<1x10x32xf32, #tpu.memory_space<vmem>>, %arg10: memref<1x2x64xf32, #tpu.memory_space<vmem>>) attributes {dimension_semantics = [#tpu.dimension_semantics<parallel>], iteration_bounds = array<i64: 8>, scalar_prefetch = 0 : i64, scratch_operands = 0 : i64, tpu.core_type = #tpu.core_type<tc>, window_params = [{transform_indices = @transform_0, window_bounds = array<i64: 1, 11, 32>}, {pipeline_mode = #tpu.pipeline_mode<synchronous>, transform_indices = @transform_1, window_bounds = array<i64: 32, 64>}, {pipeline_mode = #tpu.pipeline_mode<synchronous>, transform_indices = @transform_2, window_bounds = array<i64: 32, 64>}, {pipeline_mode = #tpu.pipeline_mode<synchronous>, transform_indices = @transform_3, window_bounds = array<i64: 1, 64>}, {pipeline_mode = #tpu.pipeline_mode<synchronous>, transform_indices = @transform_4, window_bounds = array<i64: 32, 64>}, {pipeline_mode = #tpu.pipeline_mode<synchronous>, transform_indices = @transform_5, window_bounds = array<i64: 1, 64>}, {pipeline_mode = #tpu.pipeline_mode<synchronous>, transform_indices = @transform_6, window_bounds = array<i64: 32, 32>}, {pipeline_mode = #tpu.pipeline_mode<synchronous>, transform_indices = @transform_7, window_bounds = array<i64: 1, 32>}, {transform_indices = @transform_8, window_bounds = array<i64: 1, 10, 32>}, {transform_indices = @transform_9, window_bounds = array<i64: 1, 2, 64>}]} {
    %c0 = arith.constant 0 : index
    %c0_0 = arith.constant 0 : index
    %c0_1 = arith.constant 0 : index
    %0 = vector.load %arg1[%c0, %c0_0, %c0_1] : memref<1x11x32xf32, #tpu.memory_space<vmem>>, vector<1x11x32xf32>
    %1 = vector.shape_cast %0 : vector<1x11x32xf32> to vector<11x32xf32>
    %2 = vector.extract_strided_slice %1 {offsets = [0, 0], sizes = [10, 32], strides = [1, 1]} : vector<11x32xf32> to vector<10x32xf32>
    %3 = arith.truncf %2 : vector<10x32xf32> to vector<10x32xbf16>
    %4 = vector.extract_strided_slice %1 {offsets = [1, 0], sizes = [10, 32], strides = [1, 1]} : vector<11x32xf32> to vector<10x32xf32>
    %5 = arith.truncf %4 : vector<10x32xf32> to vector<10x32xbf16>
    %c0_2 = arith.constant 0 : index
    %c0_3 = arith.constant 0 : index
    %6 = vector.load %arg2[%c0_2, %c0_3] : memref<32x64xbf16, #tpu.memory_space<vmem>>, vector<32x64xbf16>
    %cst = arith.constant dense<0.000000e+00> : vector<10x64xf32>
    %7 = tpu.matmul %3, %6, %cst {dimension_numbers = #tpu.dot_dimension_numbers<[1], [0], [0], [1], [0, 0, 1, 1], [], []>} : vector<10x32xbf16>, vector<32x64xbf16>, vector<10x64xf32> -> vector<10x64xf32>
    %c0_4 = arith.constant 0 : index
    %c0_5 = arith.constant 0 : index
    %8 = vector.load %arg3[%c0_4, %c0_5] : memref<32x64xbf16, #tpu.memory_space<vmem>>, vector<32x64xbf16>
    %cst_6 = arith.constant dense<0.000000e+00> : vector<10x64xf32>
    %9 = tpu.matmul %5, %8, %cst_6 {dimension_numbers = #tpu.dot_dimension_numbers<[1], [0], [0], [1], [0, 0, 1, 1], [], []>} : vector<10x32xbf16>, vector<32x64xbf16>, vector<10x64xf32> -> vector<10x64xf32>
    %10 = arith.addf %7, %9 : vector<10x64xf32>
    %c0_7 = arith.constant 0 : index
    %c0_8 = arith.constant 0 : index
    %11 = vector.load %arg4[%c0_7, %c0_8] : memref<1x64xf32, #tpu.memory_space<vmem>>, vector<1x64xf32>
    %12 = vector.broadcast %11 : vector<1x64xf32> to vector<10x64xf32>
    %13 = arith.addf %10, %12 : vector<10x64xf32>
    %14 = vector.extract_strided_slice %13 {offsets = [0, 0], sizes = [10, 32], strides = [1, 1]} : vector<10x64xf32> to vector<10x32xf32>
    %15 = math.tanh %14 : vector<10x32xf32>
    %16 = vector.extract_strided_slice %13 {offsets = [0, 32], sizes = [10, 32], strides = [1, 1]} : vector<10x64xf32> to vector<10x32xf32>
    %cst_9 = arith.constant 5.000000e-01 : f32
    %17 = vector.broadcast %cst_9 : f32 to vector<10x32xf32>
    %18 = arith.mulf %17, %16 : vector<10x32xf32>
    %19 = math.tanh %18 : vector<10x32xf32>
    %cst_10 = arith.constant 5.000000e-01 : f32
    %20 = vector.broadcast %cst_10 : f32 to vector<10x32xf32>
    %21 = arith.mulf %20, %19 : vector<10x32xf32>
    %cst_11 = arith.constant 5.000000e-01 : f32
    %22 = vector.broadcast %cst_11 : f32 to vector<10x32xf32>
    %23 = arith.addf %21, %22 : vector<10x32xf32>
    %24 = arith.mulf %15, %23 : vector<10x32xf32>
    %25 = arith.truncf %24 : vector<10x32xf32> to vector<10x32xbf16>
    %c0_12 = arith.constant 0 : index
    %c0_13 = arith.constant 0 : index
    %26 = vector.load %arg7[%c0_12, %c0_13] : memref<32x32xbf16, #tpu.memory_space<vmem>>, vector<32x32xbf16>
    %cst_14 = arith.constant dense<0.000000e+00> : vector<10x32xf32>
    %27 = tpu.matmul %25, %26, %cst_14 {dimension_numbers = #tpu.dot_dimension_numbers<[1], [0], [0], [1], [0, 0, 1, 1], [], []>} : vector<10x32xbf16>, vector<32x32xbf16>, vector<10x32xf32> -> vector<10x32xf32>
    %c0_15 = arith.constant 0 : index
    %c0_16 = arith.constant 0 : index
    %28 = vector.load %arg8[%c0_15, %c0_16] : memref<1x32xf32, #tpu.memory_space<vmem>>, vector<1x32xf32>
    %29 = vector.broadcast %28 : vector<1x32xf32> to vector<10x32xf32>
    %30 = arith.addf %27, %29 : vector<10x32xf32>
    %31 = vector.extract_strided_slice %1 {offsets = [1, 0], sizes = [10, 32], strides = [1, 1]} : vector<11x32xf32> to vector<10x32xf32>
    %32 = arith.addf %30, %31 : vector<10x32xf32>
    %c0_17 = arith.constant 0 : index
    %c0_18 = arith.constant 0 : index
    %c0_19 = arith.constant 0 : index
    %33 = vector.load %arg9[%c0_17, %c0_18, %c0_19] : memref<1x10x32xf32, #tpu.memory_space<vmem>>, vector<1x10x32xf32>
    %34 = vector.shape_cast %33 : vector<1x10x32xf32> to vector<10x32xf32>
    %35 = vector.shape_cast %32 : vector<10x32xf32> to vector<1x10x32xf32>
    tpu.vector_store %arg9[%c0_17, %c0_18, %c0_19], %35 {strides = array<i32>} : memref<1x10x32xf32, #tpu.memory_space<vmem>>, vector<1x10x32xf32>,
    %36 = vector.extract_strided_slice %25 {offsets = [8, 0], sizes = [2, 32], strides = [1, 1]} : vector<10x32xbf16> to vector<2x32xbf16>
    %c0_20 = arith.constant 0 : index
    %c0_21 = arith.constant 0 : index
    %37 = vector.load %arg5[%c0_20, %c0_21] : memref<32x64xbf16, #tpu.memory_space<vmem>>, vector<32x64xbf16>
    %cst_22 = arith.constant dense<0.000000e+00> : vector<2x64xf32>
    %38 = tpu.matmul %36, %37, %cst_22 {dimension_numbers = #tpu.dot_dimension_numbers<[1], [0], [0], [1], [0, 0, 1, 1], [], []>} : vector<2x32xbf16>, vector<32x64xbf16>, vector<2x64xf32> -> vector<2x64xf32>
    %c0_23 = arith.constant 0 : index
    %c0_24 = arith.constant 0 : index
    %39 = vector.load %arg6[%c0_23, %c0_24] : memref<1x64xf32, #tpu.memory_space<vmem>>, vector<1x64xf32>
    %40 = vector.broadcast %39 : vector<1x64xf32> to vector<2x64xf32>
    %41 = arith.addf %38, %40 : vector<2x64xf32>
    %c0_25 = arith.constant 0 : index
    %c0_26 = arith.constant 0 : index
    %c0_27 = arith.constant 0 : index
    %42 = vector.load %arg10[%c0_25, %c0_26, %c0_27] : memref<1x2x64xf32, #tpu.memory_space<vmem>>, vector<1x2x64xf32>
    %43 = vector.shape_cast %42 : vector<1x2x64xf32> to vector<2x64xf32>
    %44 = vector.shape_cast %41 : vector<2x64xf32> to vector<1x2x64xf32>
    tpu.vector_store %arg10[%c0_25, %c0_26, %c0_27], %44 {strides = array<i32>} : memref<1x2x64xf32, #tpu.memory_space<vmem>>, vector<1x2x64xf32>,
    return
  }
  func.func @transform_0(%arg0: i32) -> (i32, i32, i32) {
    %c0_i32 = arith.constant 0 : i32
    %c0_i32_0 = arith.constant 0 : i32
    %c0_i32_1 = arith.constant 0 : i32
    return %arg0, %c0_i32, %c0_i32_0 : i32, i32, i32
  }
  func.func @transform_1(%arg0: i32) -> (i32, i32) {
    %c0_i32 = arith.constant 0 : i32
    %c0_i32_0 = arith.constant 0 : i32
    %c0_i32_1 = arith.constant 0 : i32
    return %c0_i32, %c0_i32_0 : i32, i32
  }
  func.func @transform_2(%arg0: i32) -> (i32, i32) {
    %c0_i32 = arith.constant 0 : i32
    %c0_i32_0 = arith.constant 0 : i32
    %c0_i32_1 = arith.constant 0 : i32
    return %c0_i32, %c0_i32_0 : i32, i32
  }
  func.func @transform_3(%arg0: i32) -> (i32, i32) {
    %c0_i32 = arith.constant 0 : i32
    %c0_i32_0 = arith.constant 0 : i32
    %c0_i32_1 = arith.constant 0 : i32
    return %c0_i32, %c0_i32_0 : i32, i32
  }
  func.func @transform_4(%arg0: i32) -> (i32, i32) {
    %c0_i32 = arith.constant 0 : i32
    %c0_i32_0 = arith.constant 0 : i32
    %c0_i32_1 = arith.constant 0 : i32
    return %c0_i32, %c0_i32_0 : i32, i32
  }
  func.func @transform_5(%arg0: i32) -> (i32, i32) {
    %c0_i32 = arith.constant 0 : i32
    %c0_i32_0 = arith.constant 0 : i32
    %c0_i32_1 = arith.constant 0 : i32
    return %c0_i32, %c0_i32_0 : i32, i32
  }
  func.func @transform_6(%arg0: i32) -> (i32, i32) {
    %c0_i32 = arith.constant 0 : i32
    %c0_i32_0 = arith.constant 0 : i32
    %c0_i32_1 = arith.constant 0 : i32
    return %c0_i32, %c0_i32_0 : i32, i32
  }
  func.func @transform_7(%arg0: i32) -> (i32, i32) {
    %c0_i32 = arith.constant 0 : i32
    %c0_i32_0 = arith.constant 0 : i32
    %c0_i32_1 = arith.constant 0 : i32
    return %c0_i32, %c0_i32_0 : i32, i32
  }
  func.func @transform_8(%arg0: i32) -> (i32, i32, i32) {
    %c0_i32 = arith.constant 0 : i32
    %c0_i32_0 = arith.constant 0 : i32
    %c0_i32_1 = arith.constant 0 : i32
    return %arg0, %c0_i32, %c0_i32_0 : i32, i32, i32
  }
  func.func @transform_9(%arg0: i32) -> (i32, i32, i32) {
    %c0_i32 = arith.constant 0 : i32
    %c0_i32_0 = arith.constant 0 : i32
    %c0_i32_1 = arith.constant 0 : i32
    return %arg0, %c0_i32, %c0_i32_0 : i32, i32, i32
  }
}

module attributes {stable_mosaic.version = 11 : i64} {
  func.func @_head_kernel(%arg0: i32, %arg1: memref<16x64xf32, #tpu.memory_space<vmem>>, %arg2: memref<64x64xbf16, #tpu.memory_space<vmem>>, %arg3: memref<1x64xf32, #tpu.memory_space<vmem>>, %arg4: memref<64x64xbf16, #tpu.memory_space<vmem>>, %arg5: memref<1x64xf32, #tpu.memory_space<vmem>>, %arg6: memref<16x64xf32, #tpu.memory_space<vmem>>) attributes {dimension_semantics = [#tpu.dimension_semantics<parallel>], iteration_bounds = array<i64: 1>, scalar_prefetch = 0 : i64, scratch_operands = 0 : i64, tpu.core_type = #tpu.core_type<tc>, window_params = [{transform_indices = @transform_0, window_bounds = array<i64: 16, 64>}, {pipeline_mode = #tpu.pipeline_mode<synchronous>, transform_indices = @transform_1, window_bounds = array<i64: 64, 64>}, {pipeline_mode = #tpu.pipeline_mode<synchronous>, transform_indices = @transform_2, window_bounds = array<i64: 1, 64>}, {pipeline_mode = #tpu.pipeline_mode<synchronous>, transform_indices = @transform_3, window_bounds = array<i64: 64, 64>}, {pipeline_mode = #tpu.pipeline_mode<synchronous>, transform_indices = @transform_4, window_bounds = array<i64: 1, 64>}, {transform_indices = @transform_5, window_bounds = array<i64: 16, 64>}]} {
    %c0 = arith.constant 0 : index
    %c0_0 = arith.constant 0 : index
    %0 = vector.load %arg1[%c0, %c0_0] : memref<16x64xf32, #tpu.memory_space<vmem>>, vector<16x64xf32>
    %cst = arith.constant 0.000000e+00 : f32
    %1 = vector.broadcast %cst : f32 to vector<16x64xf32>
    %2 = arith.maximumf %0, %1 : vector<16x64xf32>
    %3 = arith.truncf %2 : vector<16x64xf32> to vector<16x64xbf16>
    %c0_1 = arith.constant 0 : index
    %c0_2 = arith.constant 0 : index
    %4 = vector.load %arg2[%c0_1, %c0_2] : memref<64x64xbf16, #tpu.memory_space<vmem>>, vector<64x64xbf16>
    %cst_3 = arith.constant dense<0.000000e+00> : vector<16x64xf32>
    %5 = tpu.matmul %3, %4, %cst_3 {dimension_numbers = #tpu.dot_dimension_numbers<[1], [0], [0], [1], [0, 0, 1, 1], [], []>} : vector<16x64xbf16>, vector<64x64xbf16>, vector<16x64xf32> -> vector<16x64xf32>
    %c0_4 = arith.constant 0 : index
    %c0_5 = arith.constant 0 : index
    %6 = vector.load %arg3[%c0_4, %c0_5] : memref<1x64xf32, #tpu.memory_space<vmem>>, vector<1x64xf32>
    %7 = vector.broadcast %6 : vector<1x64xf32> to vector<16x64xf32>
    %8 = arith.addf %5, %7 : vector<16x64xf32>
    %cst_6 = arith.constant 0.000000e+00 : f32
    %9 = vector.broadcast %cst_6 : f32 to vector<16x64xf32>
    %10 = arith.maximumf %8, %9 : vector<16x64xf32>
    %11 = arith.truncf %10 : vector<16x64xf32> to vector<16x64xbf16>
    %c0_7 = arith.constant 0 : index
    %c0_8 = arith.constant 0 : index
    %12 = vector.load %arg4[%c0_7, %c0_8] : memref<64x64xbf16, #tpu.memory_space<vmem>>, vector<64x64xbf16>
    %cst_9 = arith.constant dense<0.000000e+00> : vector<16x64xf32>
    %13 = tpu.matmul %11, %12, %cst_9 {dimension_numbers = #tpu.dot_dimension_numbers<[1], [0], [0], [1], [0, 0, 1, 1], [], []>} : vector<16x64xbf16>, vector<64x64xbf16>, vector<16x64xf32> -> vector<16x64xf32>
    %c0_10 = arith.constant 0 : index
    %c0_11 = arith.constant 0 : index
    %14 = vector.load %arg5[%c0_10, %c0_11] : memref<1x64xf32, #tpu.memory_space<vmem>>, vector<1x64xf32>
    %15 = vector.broadcast %14 : vector<1x64xf32> to vector<16x64xf32>
    %16 = arith.addf %13, %15 : vector<16x64xf32>
    %c0_12 = arith.constant 0 : index
    %c0_13 = arith.constant 0 : index
    %17 = vector.load %arg6[%c0_12, %c0_13] : memref<16x64xf32, #tpu.memory_space<vmem>>, vector<16x64xf32>
    tpu.vector_store %arg6[%c0_12, %c0_13], %16 {strides = array<i32>} : memref<16x64xf32, #tpu.memory_space<vmem>>, vector<16x64xf32>,
    return
  }
  func.func @transform_0(%arg0: i32) -> (i32, i32) {
    %c0_i32 = arith.constant 0 : i32
    %c0_i32_0 = arith.constant 0 : i32
    return %arg0, %c0_i32 : i32, i32
  }
  func.func @transform_1(%arg0: i32) -> (i32, i32) {
    %c0_i32 = arith.constant 0 : i32
    %c0_i32_0 = arith.constant 0 : i32
    %c0_i32_1 = arith.constant 0 : i32
    return %c0_i32, %c0_i32_0 : i32, i32
  }
  func.func @transform_2(%arg0: i32) -> (i32, i32) {
    %c0_i32 = arith.constant 0 : i32
    %c0_i32_0 = arith.constant 0 : i32
    %c0_i32_1 = arith.constant 0 : i32
    return %c0_i32, %c0_i32_0 : i32, i32
  }
  func.func @transform_3(%arg0: i32) -> (i32, i32) {
    %c0_i32 = arith.constant 0 : i32
    %c0_i32_0 = arith.constant 0 : i32
    %c0_i32_1 = arith.constant 0 : i32
    return %c0_i32, %c0_i32_0 : i32, i32
  }
  func.func @transform_4(%arg0: i32) -> (i32, i32) {
    %c0_i32 = arith.constant 0 : i32
    %c0_i32_0 = arith.constant 0 : i32
    %c0_i32_1 = arith.constant 0 : i32
    return %c0_i32, %c0_i32_0 : i32, i32
  }
  func.func @transform_5(%arg0: i32) -> (i32, i32) {
    %c0_i32 = arith.constant 0 : i32
    %c0_i32_0 = arith.constant 0 : i32
    return %arg0, %c0_i32 : i32, i32
  }
}

</mosaic_0001>

<llo_original>
// kernel: _lambda_.8
$region0: #{_lambda_.8}
  #allocation0 [shape = 'u32[]', space=smem, size = 0x4, offset = 0x4, fixed_abs, tag = 'smem constant byte address 0x4 - core index']
  #allocation1 [shape = 'u32[144,128]{1,0:T(1,128)}', space=vmem, size = 0x12000, scoped, tag = 'internal scratch']
  %s0 = inlined_call_operand.vmem [shape: bf16[96,64], index: 0, kind: input, shape index: {}]
  %s1 = inlined_call_operand.vmem [shape: bf16[64,32], index: 1, kind: input, shape index: {}]
  %s2 = inlined_call_operand.vmem [shape: f32[1,32], index: 2, kind: input, shape index: {}]
  %s3 = inlined_call_operand.vmem [shape: f32[96,32], index: 3, kind: output, shape index: {}]
  %s4 = sld [smem:[#allocation0]]
  $region22: #{_lambda_.8} parent=0
    _
  %s6 = ssub.s32 1, %s4
  %s7 = scalar_select 0, %s6, %s4
  // Predicated region
  $region2: #{_lambda_.8} parent=0 // pred_check
    _
  $region3: #{_lambda_.8} parent=0 // pred_check_branch
    %9 = sbr.rel (0) target = $region5
  $region4: #{_lambda_.8} parent=0 // pred_region
    _
  $region5: #{_lambda_.8} parent=0 // pred_fallthru
    _
  // Predicated region
  $region6: #{_lambda_.8} parent=0 // pred_check
    _
  $region7: #{_lambda_.8} parent=0 // pred_check_branch
    %11 = sbr.rel (0) target = $region9
  $region8: #{_lambda_.8} parent=0 // pred_region
    _
  $region9: #{_lambda_.8} parent=0 // pred_fallthru
    _
  // Predicated region
  $region10: #{_lambda_.8} parent=0 // pred_check
    _
  $region11: #{_lambda_.8} parent=0 // pred_check_branch
    %13 = sbr.rel (0) target = $region13
  $region12: #{_lambda_.8} parent=0 // pred_region
    _
  $region13: #{_lambda_.8} parent=0 // pred_fallthru
    _
  %v15 = vld [vmem:[%s0] sm:$0xf]
  %v16 = vld [vmem:[%s0 + $0x4] sm:$0xf]
  %v17 = vld [vmem:[%s0 + $0x8] sm:$0xf]
  %v18 = vld [vmem:[%s0 + $0xc] sm:$0xf]
  %v19 = vld [vmem:[%s0 + $0x10] sm:$0xf]
  %v20 = vld [vmem:[%s0 + $0x14] sm:$0xf]
  %v21 = vld [vmem:[%s0 + $0x18] sm:$0xf]
  %v22 = vld [vmem:[%s0 + $0x1c] sm:$0xf]
  %v23 = vld [vmem:[%s0 + $0x20] sm:$0xf]
  %v24 = vld [vmem:[%s0 + $0x24] sm:$0xf]
  %v25 = vld [vmem:[%s0 + $0x28] sm:$0xf]
  %v26 = vld [vmem:[%s0 + $0x2c] sm:$0xf]
  %v27 = vld [vmem:[%s1] sm:$0xf]
  %v28 = vld [vmem:[%s1 + $0x4] sm:$0xf]
  %v29 = vld [vmem:[%s1 + $0x8] sm:$0xf]
  %v30 = vld [vmem:[%s1 + $0xc] sm:$0xf]
  %v31 = vld [vmem:[%s1 + $0x10] sm:$0xf]
  %v32 = vld [vmem:[%s1 + $0x14] sm:$0xf]
  %v33 = vld [vmem:[%s1 + $0x18] sm:$0xf]
  %v34 = vld [vmem:[%s1 + $0x1c] sm:$0xf]
  %v35 = vld [vmem:[%s2] sm:$0x1]
  %v37 = vlaneseq
  %v38 = vshrl.u32 %v37, 7
  %v39 = vsub.s32 0, %v38
  %v40 = vrot.slane %v35, %v39
  %v54 = vunpack.c.l.b16 %v15
  %v55 = vunpack.c.l.b16 %v16
  %v56 = vunpack.c.l.b16 %v17
  %v57 = vunpack.c.l.b16 %v18
  %v58 = vunpack.c.l.b16 %v19
  %v59 = vunpack.c.l.b16 %v20
  %v60 = vunpack.c.l.b16 %v21
  %v61 = vunpack.c.l.b16 %v22
  %v62 = vunpack.c.l.b16 %v23
  %v63 = vunpack.c.l.b16 %v24
  %v64 = vunpack.c.l.b16 %v25
  %v65 = vunpack.c.l.b16 %v26
  %v66 = vpack.c.b16 %v55, %v54
  %v67 = vpack.c.b16 %v57, %v56
  %v68 = vpack.c.b16 %v59, %v58
  %v69 = vpack.c.b16 %v61, %v60
  %v70 = vpack.c.b16 %v63, %v62
  %v71 = vpack.c.b16 %v65, %v64
  %v80 = vunpack.c.l.b16 %v27
  %v81 = vunpack.c.l.b16 %v28
  %v82 = vunpack.c.l.b16 %v29
  %v83 = vunpack.c.l.b16 %v30
  %v84 = vunpack.c.l.b16 %v31
  %v85 = vunpack.c.l.b16 %v32
  %v86 = vunpack.c.l.b16 %v33
  %v87 = vunpack.c.l.b16 %v34
  %v88 = vpack.c.b16 %v81, %v80
  %v89 = vpack.c.b16 %v83, %v82
  %v90 = vpack.c.b16 %v85, %v84
  %v91 = vpack.c.b16 %v87, %v86
  %vm96 = vcmask 523264
  %v98 = vsel %vm96, %v66, 0
  %v101 = vsel %vm96, %v67, 0
  %v104 = vsel %vm96, %v68, 0
  %v107 = vsel %vm96, %v69, 0
  %v110 = vsel %vm96, %v70, 0
  %v113 = vsel %vm96, %v71, 0
  %115 = vmatprep.subr.bf16.mxu0 0
  %116 = vmatpush1.bf16.msra.mxu0 0
  %117 = vmatprep.subr.bf16.mxu0 0
  %118 = vmatpush1.bf16.msra.mxu0 0
  %119 = vmatprep.subr.bf16.mxu0 0
  %120 = vmatpush1.bf16.msra.mxu0 0
  %121 = vmatprep.subr.bf16.mxu0 0
  %122 = vmatpush1.bf16.msra.mxu0 0
  %123 = vmatprep.subr.bf16.mxu0 0
  %124 = vmatpush1.bf16.msra.mxu0 %v91
  %125 = vmatprep.subr.bf16.mxu0 0
  %126 = vmatpush1.bf16.msra.mxu0 %v90
  %127 = vmatprep.subr.bf16.mxu0 0
  %128 = vmatpush1.bf16.msra.mxu0 %v89
  %129 = vmatprep.subr.bf16.mxu0 0
  %130 = vmatpush1.bf16.msra.mxu0 %v88
  %131 = vmatprep.subr.bf16.mxu0 0
  %132 = vmatpush2.bf16.msra.mxu0 0
  %133 = vmatprep.subr.bf16.mxu0 0
  %134 = vmatpush2.bf16.msra.mxu0 0
  %135 = vmatprep.subr.bf16.mxu0 0
  %136 = vmatpush2.bf16.msra.mxu0 0
  %137 = vmatprep.subr.bf16.mxu0 0
  %138 = vmatpush2.bf16.msra.mxu0 0
  %139 = vmatprep.subr.bf16.mxu0 0
  %140 = vmatpush2.bf16.msra.mxu0 0
  %141 = vmatprep.subr.bf16.mxu0 0
  %142 = vmatpush2.bf16.msra.mxu0 0
  %143 = vmatprep.subr.bf16.mxu0 0
  %144 = vmatpush2.bf16.msra.mxu0 0
  %145 = vmatprep.subr.bf16.mxu0 0
  %146 = vmatpush2.bf16.msra.mxu0 0
  %147 = vmatprep.mubr.bf16.mxu0 0
  %148 = vmatmul.mubr.bf16.gmra.mxu0 %v98
  %v149 = vpop.f32.mrf.mxu0
  %v150 = vadd.f32 %v40, %v149
  %v151 = vpop.f32.mrf.mxu0
  %v152 = vpop.f32.mrf.mxu0
  %v153 = vadd.f32 %v40, %v152
  %v154 = vpop.f32.mrf.mxu0
  %155 = vmatprep.mubr.bf16.mxu0 0
  %156 = vmatmul.mubr.bf16.gmra.mxu0 %v101
  %v157 = vpop.f32.mrf.mxu0
  %v158 = vadd.f32 %v40, %v157
  %v159 = vpop.f32.mrf.mxu0
  %v160 = vpop.f32.mrf.mxu0
  %v161 = vadd.f32 %v40, %v160
  %v162 = vpop.f32.mrf.mxu0
  %163 = vmatprep.mubr.bf16.mxu0 0
  %164 = vmatmul.mubr.bf16.gmra.mxu0 %v104
  %v165 = vpop.f32.mrf.mxu0
  %v166 = vadd.f32 %v40, %v165
  %v167 = vpop.f32.mrf.mxu0
  %v168 = vpop.f32.mrf.mxu0
  %v169 = vadd.f32 %v40, %v168
  %v170 = vpop.f32.mrf.mxu0
  %171 = vmatprep.mubr.bf16.mxu0 0
  %172 = vmatmul.mubr.bf16.gmra.mxu0 %v107
  %v173 = vpop.f32.mrf.mxu0
  %v174 = vadd.f32 %v40, %v173
  %v175 = vpop.f32.mrf.mxu0
  %v176 = vpop.f32.mrf.mxu0
  %v177 = vadd.f32 %v40, %v176
  %v178 = vpop.f32.mrf.mxu0
  %179 = vmatprep.mubr.bf16.mxu0 0
  %180 = vmatmul.mubr.bf16.gmra.mxu0 %v110
  %v181 = vpop.f32.mrf.mxu0
  %v182 = vadd.f32 %v40, %v181
  %v183 = vpop.f32.mrf.mxu0
  %v184 = vpop.f32.mrf.mxu0
  %v185 = vadd.f32 %v40, %v184
  %v186 = vpop.f32.mrf.mxu0
  %187 = vmatprep.mubr.bf16.mxu0 0
  %188 = vmatmul.mubr.bf16.gmra.mxu0 %v113
  %v189 = vpop.f32.mrf.mxu0
  %v190 = vadd.f32 %v40, %v189
  %v191 = vpop.f32.mrf.mxu0
  %v192 = vpop.f32.mrf.mxu0
  %v193 = vadd.f32 %v40, %v192
  %v194 = vpop.f32.mrf.mxu0
  %195 = vdwg.mxu0
  %vm196 = vcmask 261120
  %197 = vst.msk [vmem:[%s3] sm:$0xff] %vm196, %v150
  %198 = vst.msk [vmem:[%s3 + $0x8] sm:$0xff] %vm196, %v153
  %199 = vst.msk [vmem:[%s3 + $0x10] sm:$0xff] %vm196, %v158
  %200 = vst.msk [vmem:[%s3 + $0x18] sm:$0xff] %vm196, %v161
  %201 = vst.msk [vmem:[%s3 + $0x20] sm:$0xff] %vm196, %v166
  %202 = vst.msk [vmem:[%s3 + $0x28] sm:$0xff] %vm196, %v169
  %203 = vst.msk [vmem:[%s3 + $0x30] sm:$0xff] %vm196, %v174
  %204 = vst.msk [vmem:[%s3 + $0x38] sm:$0xff] %vm196, %v177
  %205 = vst.msk [vmem:[%s3 + $0x40] sm:$0xff] %vm196, %v182
  %206 = vst.msk [vmem:[%s3 + $0x48] sm:$0xff] %vm196, %v185
  %207 = vst.msk [vmem:[%s3 + $0x50] sm:$0xff] %vm196, %v190
  %208 = vst.msk [vmem:[%s3 + $0x58] sm:$0xff] %vm196, %v193
  // Predicated region
  $region14: #{_lambda_.8} parent=0 // pred_check
    _
  $region15: #{_lambda_.8} parent=0 // pred_check_branch
    %210 = sbr.rel (0) target = $region17
  $region16: #{_lambda_.8} parent=0 // pred_region
    _
  $region17: #{_lambda_.8} parent=0 // pred_fallthru
    _
  // Predicated region
  $region18: #{_lambda_.8} parent=0 // pred_check
    _
  $region19: #{_lambda_.8} parent=0 // pred_check_branch
    %212 = sbr.rel (0) target = $region21
  $region20: #{_lambda_.8} parent=0 // pred_region
    _
  $region21: #{_lambda_.8} parent=0 // pred_fallthru
    _

// kernel: _lambda_.9
$region0: #{_lambda_.9}
  #allocation0 [shape = 'u32[]', space=smem, size = 0x4, offset = 0x4, fixed_abs, tag = 'smem constant byte address 0x4 - core index']
  #allocation1 [shape = 'u32[144,128]{1,0:T(1,128)}', space=vmem, size = 0x12000, scoped, tag = 'internal scratch']
  %s0 = inlined_call_operand.vmem [shape: f32[2,48,32], index: 0, kind: input, shape index: {}]
  %s1 = inlined_call_operand.vmem [shape: bf16[32,64], index: 1, kind: input, shape index: {}]
  %s2 = inlined_call_operand.vmem [shape: bf16[32,64], index: 2, kind: input, shape index: {}]
  %s3 = inlined_call_operand.vmem [shape: f32[1,64], index: 3, kind: input, shape index: {}]
  %s4 = inlined_call_operand.vmem [shape: bf16[32,64], index: 4, kind: input, shape index: {}]
  %s5 = inlined_call_operand.vmem [shape: f32[1,64], index: 5, kind: input, shape index: {}]
  %s6 = inlined_call_operand.vmem [shape: bf16[32,32], index: 6, kind: input, shape index: {}]
  %s7 = inlined_call_operand.vmem [shape: f32[1,32], index: 7, kind: input, shape index: {}]
  %s8 = inlined_call_operand.vmem [shape: f32[2,47,32], index: 8, kind: output, shape index: {0}]
  %s9 = inlined_call_operand.vmem [shape: f32[2,8,64], index: 9, kind: output, shape index: {1}]
  %10 = xla_tuple %s8, %s9
  %s11 = sld [smem:[#allocation0]]
  $region73: #{_lambda_.9} parent=0
    _
  %s13 = ssub.s32 1, %s11
  %s14 = scalar_select 0, %s13, %s11
  loop: start=0, step=1, limit=4
  $region2: #{_lambda_.9} parent=0 // loop_pre_header
    _
  $region3: #{_lambda_.9} parent=0 // loop_header
    %s16 = sphi 0, %s20
    %p17 = scmp.ge.s32.totalorder %s16, 4
    %s26 = sphi 0, %s28
    %s29 = sphi 0, %s26
    %s30 = sphi 0, %s29
    %s46 = sphi 0, %s30
    %s50 = sphi 0, %s50
    %s52 = sphi 0, %s50
    %s53 = sphi 0, %s52
    %s67 = sphi 0, %s53
    %s71 = sphi 0, %s71
    %s73 = sphi 0, %s71
    %s74 = sphi 0, %s73
    %s88 = sphi 0, %s74
    %s92 = sphi 0, %s92
    %s94 = sphi 0, %s92
    %s95 = sphi 0, %s94
    %s109 = sphi 0, %s95
    %s113 = sphi 0, %s113
    %s115 = sphi 0, %s113
    %s116 = sphi 0, %s115
    %s130 = sphi 0, %s116
    %s134 = sphi 0, %s134
    %s136 = sphi 0, %s134
    %s137 = sphi 0, %s136
    %s151 = sphi 0, %s137
    %s155 = sphi 0, %s155
    %s157 = sphi 0, %s155
    %s158 = sphi 0, %s157
    %s172 = sphi 0, %s158
    %s176 = sphi 0, %s176
    %s178 = sphi 0, %s176
    %s179 = sphi 0, %s178
    %s193 = sphi 0, %s179
    %s199 = sphi 0, %s201
    %s202 = sphi 0, %s199
    %s203 = sphi 0, %s202
    %s219 = sphi 0, %s203
    %s225 = sphi 0, %s227
    %s228 = sphi 0, %s225
    %s229 = sphi 0, %s228
    %s245 = sphi 0, %s229
  $region4: #{_lambda_.9} parent=0 // loop_header_branch
    %19 = sbr.rel (%p17) target = $region8
  $region5: #{_lambda_.9} parent=0 // loop_body
    %s21 = ssub.s32 %s16, 1
    %s22 = ssub.s32 %s16, 2
    %s23 = sadd.s32 %s16, 1
    %s24 = ssub.s32 %s16, %s23
    %p25 = scmp.eq.s32.totalorder %s24, 0
    %s27 = sadd.s32 %s26, 1
    %s28 = scalar_select %p25, %s26, %s27
    %p31 = pneg %p25
    %p32 = scmp.eq.s32.totalorder %s16, 1
    %p33 = por %p31, %p32
    %p34 = scmp.ne.s32.totalorder %s26, %s29
    %p35 = scmp.eq.s32.totalorder %s16, 0
    %p36 = por %p34, %p35
    %p37 = scmp.ne.s32.totalorder %s26, %s29
    %p38 = scmp.eq.s32.totalorder %s21, 1
    %p39 = por %p37, %p38
    %p40 = scmp.ne.s32.totalorder %s29, %s30
    %p41 = scmp.eq.s32.totalorder %s21, 0
    %p42 = por %p40, %p41
    %p43 = scmp.ne.s32.totalorder %s29, %s30
    %p44 = scmp.eq.s32.totalorder %s22, 1
    %p45 = por %p43, %p44
    %p47 = scmp.ne.s32.totalorder %s30, %s46
    %p48 = scmp.eq.s32.totalorder %s22, 0
    %p49 = por %p47, %p48
    %s51 = sadd.s32 %s50, 1
    %p54 = scmp.eq.s32.totalorder %s16, 1
    %p55 = scmp.ne.s32.totalorder %s50, %s52
    %p56 = scmp.eq.s32.totalorder %s16, 0
    %p57 = por %p55, %p56
    %p58 = scmp.ne.s32.totalorder %s50, %s52
    %p59 = scmp.eq.s32.totalorder %s21, 1
    %p60 = por %p58, %p59
    %p61 = scmp.ne.s32.totalorder %s52, %s53
    %p62 = scmp.eq.s32.totalorder %s21, 0
    %p63 = por %p61, %p62
    %p64 = scmp.ne.s32.totalorder %s52, %s53
    %p65 = scmp.eq.s32.totalorder %s22, 1
    %p66 = por %p64, %p65
    %p68 = scmp.ne.s32.totalorder %s53, %s67
    %p69 = scmp.eq.s32.totalorder %s22, 0
    %p70 = por %p68, %p69
    %s72 = sadd.s32 %s71, 1
    %p75 = scmp.eq.s32.totalorder %s16, 1
    %p76 = scmp.ne.s32.totalorder %s71, %s73
    %p77 = scmp.eq.s32.totalorder %s16, 0
    %p78 = por %p76, %p77
    %p79 = scmp.ne.s32.totalorder %s71, %s73
    %p80 = scmp.eq.s32.totalorder %s21, 1
    %p81 = por %p79, %p80
    %p82 = scmp.ne.s32.totalorder %s73, %s74
    %p83 = scmp.eq.s32.totalorder %s21, 0
    %p84 = por %p82, %p83
    %p85 = scmp.ne.s32.totalorder %s73, %s74
    %p86 = scmp.eq.s32.totalorder %s22, 1
    %p87 = por %p85, %p86
    %p89 = scmp.ne.s32.totalorder %s74, %s88
    %p90 = scmp.eq.s32.totalorder %s22, 0
    %p91 = por %p89, %p90
    %s93 = sadd.s32 %s92, 1
    %p96 = scmp.eq.s32.totalorder %s16, 1
    %p97 = scmp.ne.s32.totalorder %s92, %s94
    %p98 = scmp.eq.s32.totalorder %s16, 0
    %p99 = por %p97, %p98
    %p100 = scmp.ne.s32.totalorder %s92, %s94
    %p101 = scmp.eq.s32.totalorder %s21, 1
    %p102 = por %p100, %p101
    %p103 = scmp.ne.s32.totalorder %s94, %s95
    %p104 = scmp.eq.s32.totalorder %s21, 0
    %p105 = por %p103, %p104
    %p106 = scmp.ne.s32.totalorder %s94, %s95
    %p107 = scmp.eq.s32.totalorder %s22, 1
    %p108 = por %p106, %p107
    %p110 = scmp.ne.s32.totalorder %s95, %s109
    %p111 = scmp.eq.s32.totalorder %s22, 0
    %p112 = por %p110, %p111
    %s114 = sadd.s32 %s113, 1
    %p117 = scmp.eq.s32.totalorder %s16, 1
    %p118 = scmp.ne.s32.totalorder %s113, %s115
    %p119 = scmp.eq.s32.totalorder %s16, 0
    %p120 = por %p118, %p119
    %p121 = scmp.ne.s32.totalorder %s113, %s115
    %p122 = scmp.eq.s32.totalorder %s21, 1
    %p123 = por %p121, %p122
    %p124 = scmp.ne.s32.totalorder %s115, %s116
    %p125 = scmp.eq.s32.totalorder %s21, 0
    %p126 = por %p124, %p125
    %p127 = scmp.ne.s32.totalorder %s115, %s116
    %p128 = scmp.eq.s32.totalorder %s22, 1
    %p129 = por %p127, %p128
    %p131 = scmp.ne.s32.totalorder %s116, %s130
    %p132 = scmp.eq.s32.totalorder %s22, 0
    %p133 = por %p131, %p132
    %s135 = sadd.s32 %s134, 1
    %p138 = scmp.eq.s32.totalorder %s16, 1
    %p139 = scmp.ne.s32.totalorder %s134, %s136
    %p140 = scmp.eq.s32.totalorder %s16, 0
    %p141 = por %p139, %p140
    %p142 = scmp.ne.s32.totalorder %s134, %s136
    %p143 = scmp.eq.s32.totalorder %s21, 1
    %p144 = por %p142, %p143
    %p145 = scmp.ne.s32.totalorder %s136, %s137
    %p146 = scmp.eq.s32.totalorder %s21, 0
    %p147 = por %p145, %p146
    %p148 = scmp.ne.s32.totalorder %s136, %s137
    %p149 = scmp.eq.s32.totalorder %s22, 1
    %p150 = por %p148, %p149
    %p152 = scmp.ne.s32.totalorder %s137, %s151
    %p153 = scmp.eq.s32.totalorder %s22, 0
    %p154 = por %p152, %p153
    %s156 = sadd.s32 %s155, 1
    %p159 = scmp.eq.s32.totalorder %s16, 1
    %p160 = scmp.ne.s32.totalorder %s155, %s157
    %p161 = scmp.eq.s32.totalorder %s16, 0
    %p162 = por %p160, %p161
    %p163 = scmp.ne.s32.totalorder %s155, %s157
    %p164 = scmp.eq.s32.totalorder %s21, 1
    %p165 = por %p163, %p164
    %p166 = scmp.ne.s32.totalorder %s157, %s158
    %p167 = scmp.eq.s32.totalorder %s21, 0
    %p168 = por %p166, %p167
    %p169 = scmp.ne.s32.totalorder %s157, %s158
    %p170 = scmp.eq.s32.totalorder %s22, 1
    %p171 = por %p169, %p170
    %p173 = scmp.ne.s32.totalorder %s158, %s172
    %p174 = scmp.eq.s32.totalorder %s22, 0
    %p175 = por %p173, %p174
    %s177 = sadd.s32 %s176, 1
    %p180 = scmp.eq.s32.totalorder %s16, 1
    %p181 = scmp.ne.s32.totalorder %s176, %s178
    %p182 = scmp.eq.s32.totalorder %s16, 0
    %p183 = por %p181, %p182
    %p184 = scmp.ne.s32.totalorder %s176, %s178
    %p185 = scmp.eq.s32.totalorder %s21, 1
    %p186 = por %p184, %p185
    %p187 = scmp.ne.s32.totalorder %s178, %s179
    %p188 = scmp.eq.s32.totalorder %s21, 0
    %p189 = por %p187, %p188
    %p190 = scmp.ne.s32.totalorder %s178, %s179
    %p191 = scmp.eq.s32.totalorder %s22, 1
    %p192 = por %p190, %p191
    %p194 = scmp.ne.s32.totalorder %s179, %s193
    %p195 = scmp.eq.s32.totalorder %s22, 0
    %p196 = por %p194, %p195
    %s197 = ssub.s32 %s16, %s23
    %p198 = scmp.eq.s32.totalorder %s197, 0
    %s200 = sadd.s32 %s199, 1
    %s201 = scalar_select %p198, %s199, %s200
    %p204 = pneg %p198
    %p205 = scmp.eq.s32.totalorder %s16, 1
    %p206 = por %p204, %p205
    %p207 = scmp.ne.s32.totalorder %s199, %s202
    %p208 = scmp.eq.s32.totalorder %s16, 0
    %p209 = por %p207, %p208
    %p210 = scmp.ne.s32.totalorder %s199, %s202
    %p211 = scmp.eq.s32.totalorder %s21, 1
    %p212 = por %p210, %p211
    %p213 = scmp.ne.s32.totalorder %s202, %s203
    %p214 = scmp.eq.s32.totalorder %s21, 0
    %p215 = por %p213, %p214
    %p216 = scmp.ne.s32.totalorder %s202, %s203
    %p217 = scmp.eq.s32.totalorder %s22, 1
    %p218 = por %p216, %p217
    %p220 = scmp.ne.s32.totalorder %s203, %s219
    %p221 = scmp.eq.s32.totalorder %s22, 0
    %p222 = por %p220, %p221
    %s223 = ssub.s32 %s16, %s23
    %p224 = scmp.eq.s32.totalorder %s223, 0
    %s226 = sadd.s32 %s225, 1
    %s227 = scalar_select %p224, %s225, %s226
    %p230 = pneg %p224
    %p231 = scmp.eq.s32.totalorder %s16, 1
    %p232 = por %p230, %p231
    %p233 = scmp.ne.s32.totalorder %s225, %s228
    %p234 = scmp.eq.s32.totalorder %s16, 0
    %p235 = por %p233, %p234
    %p236 = scmp.ne.s32.totalorder %s225, %s228
    %p237 = scmp.eq.s32.totalorder %s21, 1
    %p238 = por %p236, %p237
    %p239 = scmp.ne.s32.totalorder %s228, %s229
    %p240 = scmp.eq.s32.totalorder %s21, 0
    %p241 = por %p239, %p240
    %p242 = scmp.ne.s32.totalorder %s228, %s229
    %p243 = scmp.eq.s32.totalorder %s22, 1
    %p244 = por %p242, %p243
    %p246 = scmp.ne.s32.totalorder %s229, %s245
    %p247 = scmp.eq.s32.totalorder %s22, 0
    %p248 = por %p246, %p247
    %p249 = scmp.le.s32.totalorder 1, %s16
    %p250 = scmp.lt.s32.totalorder %s16, 3
    %p251 = pnand %p249, %p250
    %p252 = pneg %p251
    // Predicated region
    $region9: #{_lambda_.9} parent=5 // pred_check
      _
    $region10: #{_lambda_.9} parent=5 // pred_check_branch
      %254 = sbr.rel (%p251) target = $region12
    $region11: #{_lambda_.9} parent=5 // pred_region
      %s255 = ssub.s32 %s16, 1
      // Predicated region
      $region13: #{_lambda_.9} parent=11 // pred_check
        %p256 = pneg %p63
      $region14: #{_lambda_.9} parent=11 // pred_check_branch
        %258 = sbr.rel (%p256) target = $region16
      $region15: #{_lambda_.9} parent=11 // pred_region
        _
      $region16: #{_lambda_.9} parent=11 // pred_fallthru
        _
      // Predicated region
      $region17: #{_lambda_.9} parent=11 // pred_check
        %p259 = pneg %p84
      $region18: #{_lambda_.9} parent=11 // pred_check_branch
        %261 = sbr.rel (%p259) target = $region20
      $region19: #{_lambda_.9} parent=11 // pred_region
        _
      $region20: #{_lambda_.9} parent=11 // pred_fallthru
        _
      // Predicated region
      $region21: #{_lambda_.9} parent=11 // pred_check
        %p262 = pneg %p105
      $region22: #{_lambda_.9} parent=11 // pred_check_branch
        %264 = sbr.rel (%p262) target = $region24
      $region23: #{_lambda_.9} parent=11 // pred_region
        _
      $region24: #{_lambda_.9} parent=11 // pred_fallthru
        _
      // Predicated region
      $region25: #{_lambda_.9} parent=11 // pred_check
        %p265 = pneg %p126
      $region26: #{_lambda_.9} parent=11 // pred_check_branch
        %267 = sbr.rel (%p265) target = $region28
      $region27: #{_lambda_.9} parent=11 // pred_region
        _
      $region28: #{_lambda_.9} parent=11 // pred_fallthru
        _
      // Predicated region
      $region29: #{_lambda_.9} parent=11 // pred_check
        %p268 = pneg %p147
      $region30: #{_lambda_.9} parent=11 // pred_check_branch
        %270 = sbr.rel (%p268) target = $region32
      $region31: #{_lambda_.9} parent=11 // pred_region
        _
      $region32: #{_lambda_.9} parent=11 // pred_fallthru
        _
      // Predicated region
      $region33: #{_lambda_.9} parent=11 // pred_check
        %p271 = pneg %p168
      $region34: #{_lambda_.9} parent=11 // pred_check_branch
        %273 = sbr.rel (%p271) target = $region36
      $region35: #{_lambda_.9} parent=11 // pred_region
        _
      $region36: #{_lambda_.9} parent=11 // pred_fallthru
        _
      // Predicated region
      $region37: #{_lambda_.9} parent=11 // pred_check
        %p274 = pneg %p189
      $region38: #{_lambda_.9} parent=11 // pred_check_branch
        %276 = sbr.rel (%p274) target = $region40
      $region39: #{_lambda_.9} parent=11 // pred_region
        _
      $region40: #{_lambda_.9} parent=11 // pred_fallthru
        _
    $region12: #{_lambda_.9} parent=5 // pred_fallthru
      _
    %p277 = scmp.lt.s32.totalorder %s16, 2
    // Predicated region
    $region41: #{_lambda_.9} parent=5 // pred_check
      %p278 = pneg %p277
    $region42: #{_lambda_.9} parent=5 // pred_check_branch
      %280 = sbr.rel (%p278) target = $region44
    $region43: #{_lambda_.9} parent=5 // pred_region
      // Predicated region
      $region45: #{_lambda_.9} parent=43 // pred_check
        %p281 = pneg %p36
      $region46: #{_lambda_.9} parent=43 // pred_check_branch
        %283 = sbr.rel (%p281) target = $region48
      $region47: #{_lambda_.9} parent=43 // pred_region
        %p284 = scmp.lt.s32.totalorder %s16, 1
        %s285 = scalar_select %p284, %s16, 1
        %s286 = smul.addr %s285, 6
        %s287 = smul.addr %s286, 8
        %s288 = scalar_lea.vmem %s0, %s287
      $region48: #{_lambda_.9} parent=43 // pred_fallthru
        _
    $region44: #{_lambda_.9} parent=5 // pred_fallthru
      _
    %p289 = scmp.le.s32.totalorder 1, %s16
    %p290 = scmp.lt.s32.totalorder %s16, 3
    %p291 = pnand %p289, %p290
    %p292 = pneg %p291
    // Predicated region
    $region49: #{_lambda_.9} parent=5 // pred_check
      _
    $region50: #{_lambda_.9} parent=5 // pred_check_branch
      %294 = sbr.rel (%p291) target = $region52
    $region51: #{_lambda_.9} parent=5 // pred_region
      %s295 = ssub.s32 %s16, 1
      %p296 = scmp.lt.s32.totalorder %s21, 1
      %s297 = scalar_select %p296, %s21, 1
      %s298 = smul.addr %s297, 6
      %s299 = smul.addr %s298, 8
      %s300 = scalar_lea.vmem %s0, %s299
      %p301 = pneg %p42
      %p302 = pneg %p39
      %p303 = pneg %p63
      %p304 = pneg %p60
      %p305 = pneg %p84
      %p306 = pneg %p81
      %p307 = pneg %p105
      %p308 = pneg %p102
      %p309 = pneg %p126
      %p310 = pneg %p123
      %p311 = pneg %p147
      %p312 = pneg %p144
      %p313 = pneg %p168
      %p314 = pneg %p165
      %p315 = pneg %p189
      %p316 = pneg %p186
      %p317 = pneg %p215
      %p318 = pneg %p212
      %p319 = scmp.lt.s32.totalorder %s21, 1
      %s320 = scalar_select %p319, %s21, 1
      %s321 = smul.addr %s320, 6
      %s322 = smul.addr %s321, 8
      %s323 = scalar_lea.vmem %s8, %s322
      %p324 = pneg %p241
      %p325 = pneg %p238
      %p326 = scmp.lt.s32.totalorder %s21, 1
      %s327 = scalar_select %p326, %s21, 1
      %s328 = smul.addr %s327, 8
      %s329 = scalar_lea.vmem %s9, %s328
      %p330 = scmp.lt.s32.totalorder %s21, 1
      %s331 = scalar_select %p330, %s21, 1
      %s332 = smul.addr %s331, 6
      %s333 = smul.addr %s332, 8
      %s334 = scalar_lea.vmem %s0, %s333
      %p335 = scmp.lt.s32.totalorder %s21, 1
      %s336 = scalar_select %p335, %s21, 1
      %s337 = smul.addr %s336, 6
      %s338 = smul.addr %s337, 8
      %s339 = scalar_lea.vmem %s8, %s338
      %p340 = scmp.lt.s32.totalorder %s21, 1
      %s341 = scalar_select %p340, %s21, 1
      %s342 = smul.addr %s341, 8
      %s343 = scalar_lea.vmem %s9, %s342
      %v345 = vld [vmem:[%s334] sm:$0xff]
      %v346 = vld [vmem:[%s334 + $0x8] sm:$0xff]
      %v347 = vld [vmem:[%s334 + $0x10] sm:$0xff]
      %v348 = vld [vmem:[%s334 + $0x18] sm:$0xff]
      %v349 = vld [vmem:[%s334 + $0x20] sm:$0xff]
      %v350 = vld [vmem:[%s334 + $0x28] sm:$0xff]
      %v351 = vpack.c.bf16 %v346, %v345
      %v352 = vpack.c.bf16 %v348, %v347
      %v353 = vpack.c.bf16 %v350, %v349
      %v354 = vld [vmem:[%s1] sm:$0xf]
      %v355 = vld [vmem:[%s1 + $0x4] sm:$0xf]
      %v356 = vld [vmem:[%s1 + $0x8] sm:$0xf]
      %v357 = vld [vmem:[%s1 + $0xc] sm:$0xf]
      %v358 = vld [vmem:[%s2] sm:$0xf]
      %v359 = vld [vmem:[%s2 + $0x4] sm:$0xf]
      %v360 = vld [vmem:[%s2 + $0x8] sm:$0xf]
      %v361 = vld [vmem:[%s2 + $0xc] sm:$0xf]
      %vm362 = vsmask.f32 7424
      %v364 = vshrl.u32 %v351, 16
      %v366 = vshll.u32 %v351, 16
      %v368 = vrot.slane %v366, 1
      %v369 = vor.u32 %v364, %v368
      %v371 = vshll.u32 %v352, 16
      %v373 = vrot.slane %v371, 1
      %v374 = vsel %vm362, %v369, %v373
      %v375 = vshrl.u32 %v352, 16
      %v377 = vor.u32 %v375, %v373
      %v379 = vshll.u32 %v353, 16
      %v381 = vrot.slane %v379, 1
      %v382 = vsel %vm362, %v377, %v381
      %v383 = vshrl.u32 %v353, 16
      %v385 = vor.u32 %v383, %v381
      %v390 = vunpack.c.l.b16 %v358
      %v391 = vunpack.c.l.b16 %v359
      %v392 = vunpack.c.l.b16 %v360
      %v393 = vunpack.c.l.b16 %v361
      %v394 = vpack.c.b16 %v391, %v390
      %v395 = vpack.c.b16 %v393, %v392
      %vm398 = vcmask 261120
      %v400 = vsel %vm398, %v374, 0
      %v403 = vsel %vm398, %v382, 0
      %v406 = vsel %vm398, %v385, 0
      %408 = vmatprep.subr.bf16.mxu0 0
      %409 = vmatpush1.bf16.msra.mxu0 0
      %410 = vmatprep.subr.bf16.mxu0 0
      %411 = vmatpush1.bf16.msra.mxu0 0
      %412 = vmatprep.subr.bf16.mxu0 0
      %413 = vmatpush1.bf16.msra.mxu0 0
      %414 = vmatprep.subr.bf16.mxu0 0
      %415 = vmatpush1.bf16.msra.mxu0 0
      %416 = vmatprep.subr.bf16.mxu0 0
      %417 = vmatpush1.bf16.msra.mxu0 0
      %418 = vmatprep.subr.bf16.mxu0 0
      %419 = vmatpush1.bf16.msra.mxu0 0
      %420 = vmatprep.subr.bf16.mxu0 0
      %421 = vmatpush1.bf16.msra.mxu0 %v395
      %422 = vmatprep.subr.bf16.mxu0 0
      %423 = vmatpush1.bf16.msra.mxu0 %v394
      %424 = vmatprep.subr.bf16.mxu0 0
      %425 = vmatpush2.bf16.msra.mxu0 0
      %426 = vmatprep.subr.bf16.mxu0 0
      %427 = vmatpush2.bf16.msra.mxu0 0
      %428 = vmatprep.subr.bf16.mxu0 0
      %429 = vmatpush2.bf16.msra.mxu0 0
      %430 = vmatprep.subr.bf16.mxu0 0
      %431 = vmatpush2.bf16.msra.mxu0 0
      %432 = vmatprep.subr.bf16.mxu0 0
      %433 = vmatpush2.bf16.msra.mxu0 0
      %434 = vmatprep.subr.bf16.mxu0 0
      %435 = vmatpush2.bf16.msra.mxu0 0
      %436 = vmatprep.subr.bf16.mxu0 0
      %437 = vmatpush2.bf16.msra.mxu0 0
      %438 = vmatprep.subr.bf16.mxu0 0
      %439 = vmatpush2.bf16.msra.mxu0 0
      %440 = vmatprep.mubr.bf16.mxu0 0
      %441 = vmatmul.mubr.bf16.gmra.mxu0 %v400
      %v442 = vpop.f32.mrf.mxu0
      %v443 = vadd.f32 0.0, %v442
      %v444 = vpop.f32.mrf.mxu0
      %v445 = vpop.f32.mrf.mxu0
      %v446 = vadd.f32 0.0, %v445
      %v447 = vpop.f32.mrf.mxu0
      %448 = vmatprep.mubr.bf16.mxu0 0
      %449 = vmatmul.mubr.bf16.gmra.mxu0 %v403
      %v450 = vpop.f32.mrf.mxu0
      %v451 = vadd.f32 0.0, %v450
      %v452 = vpop.f32.mrf.mxu0
      %v453 = vpop.f32.mrf.mxu0
      %v454 = vadd.f32 0.0, %v453
      %v455 = vpop.f32.mrf.mxu0
      %456 = vmatprep.mubr.bf16.mxu0 0
      %457 = vmatmul.mubr.bf16.gmra.mxu0 %v406
      %v458 = vpop.f32.mrf.mxu0
      %v459 = vadd.f32 0.0, %v458
      %v460 = vpop.f32.mrf.mxu0
      %v461 = vpop.f32.mrf.mxu0
      %v462 = vadd.f32 0.0, %v461
      %v463 = vpop.f32.mrf.mxu0
      %464 = vdwg.mxu0
      %v469 = vunpack.c.l.b16 %v354
      %v470 = vunpack.c.l.b16 %v355
      %v471 = vunpack.c.l.b16 %v356
      %v472 = vunpack.c.l.b16 %v357
      %v473 = vpack.c.b16 %v470, %v469
      %v474 = vpack.c.b16 %v472, %v471
      %v477 = vsel %vm398, %v351, 0
      %v479 = vsel %vm398, %v352, 0
      %v481 = vsel %vm398, %v353, 0
      %483 = vmatprep.subr.bf16.mxu0 0
      %484 = vmatpush1.bf16.msra.mxu0 0
      %485 = vmatprep.subr.bf16.mxu0 0
      %486 = vmatpush1.bf16.msra.mxu0 0
      %487 = vmatprep.subr.bf16.mxu0 0
      %488 = vmatpush1.bf16.msra.mxu0 0
      %489 = vmatprep.subr.bf16.mxu0 0
      %490 = vmatpush1.bf16.msra.mxu0 0
      %491 = vmatprep.subr.bf16.mxu0 0
      %492 = vmatpush1.bf16.msra.mxu0 0
      %493 = vmatprep.subr.bf16.mxu0 0
      %494 = vmatpush1.bf16.msra.mxu0 0
      %495 = vmatprep.subr.bf16.mxu0 0
      %496 = vmatpush1.bf16.msra.mxu0 %v474
      %497 = vmatprep.subr.bf16.mxu0 0
      %498 = vmatpush1.bf16.msra.mxu0 %v473
      %499 = vmatprep.subr.bf16.mxu0 0
      %500 = vmatpush2.bf16.msra.mxu0 0
      %501 = vmatprep.subr.bf16.mxu0 0
      %502 = vmatpush2.bf16.msra.mxu0 0
      %503 = vmatprep.subr.bf16.mxu0 0
      %504 = vmatpush2.bf16.msra.mxu0 0
      %505 = vmatprep.subr.bf16.mxu0 0
      %506 = vmatpush2.bf16.msra.mxu0 0
      %507 = vmatprep.subr.bf16.mxu0 0
      %508 = vmatpush2.bf16.msra.mxu0 0
      %509 = vmatprep.subr.bf16.mxu0 0
      %510 = vmatpush2.bf16.msra.mxu0 0
      %511 = vmatprep.subr.bf16.mxu0 0
      %512 = vmatpush2.bf16.msra.mxu0 0
      %513 = vmatprep.subr.bf16.mxu0 0
      %514 = vmatpush2.bf16.msra.mxu0 0
      %515 = vmatprep.mubr.bf16.mxu0 0
      %516 = vmatmul.mubr.bf16.gmra.mxu0 %v477
      %v517 = vpop.f32.mrf.mxu0
      %v518 = vadd.f32 %v443, %v517
      %v519 = vpop.f32.mrf.mxu0
      %v520 = vpop.f32.mrf.mxu0
      %v521 = vadd.f32 %v446, %v520
      %v522 = vpop.f32.mrf.mxu0
      %523 = vmatprep.mubr.bf16.mxu0 0
      %524 = vmatmul.mubr.bf16.gmra.mxu0 %v479
      %v525 = vpop.f32.mrf.mxu0
      %v526 = vadd.f32 %v451, %v525
      %v527 = vpop.f32.mrf.mxu0
      %v528 = vpop.f32.mrf.mxu0
      %v529 = vadd.f32 %v454, %v528
      %v530 = vpop.f32.mrf.mxu0
      %531 = vmatprep.mubr.bf16.mxu0 0
      %532 = vmatmul.mubr.bf16.gmra.mxu0 %v481
      %v533 = vpop.f32.mrf.mxu0
      %v534 = vadd.f32 %v459, %v533
      %v535 = vpop.f32.mrf.mxu0
      %v536 = vpop.f32.mrf.mxu0
      %v537 = vadd.f32 %v462, %v536
      %v538 = vpop.f32.mrf.mxu0
      %539 = vdwg.mxu0
      %v540 = vld [vmem:[%s3] sm:$0x1]
      %v542 = vlaneseq
      %v543 = vshrl.u32 %v542, 7
      %v544 = vsub.s32 0, %v543
      %v545 = vrot.slane %v540, %v544
      %v547 = vadd.f32 %v518, %v545
      %v548 = vadd.f32 %v521, %v545
      %v549 = vadd.f32 %v526, %v545
      %v550 = vadd.f32 %v529, %v545
      %v551 = vadd.f32 %v534, %v545
      %v552 = vadd.f32 %v537, %v545
      %v553 = vtanh.pop %v547
      %v554 = vtanh.pop %v548
      %v555 = vtanh.pop %v549
      %v556 = vtanh.pop %v550
      %v557 = vtanh.pop %v551
      %v558 = vtanh.pop %v552
      %v559 = vmul.f32 %v547, 0.5
      %v560 = vmul.f32 %v548, 0.5
      %v561 = vmul.f32 %v549, 0.5
      %v562 = vmul.f32 %v550, 0.5
      %v563 = vmul.f32 %v551, 0.5
      %v564 = vmul.f32 %v552, 0.5
      %v565 = vtanh.pop %v559
      %v566 = vtanh.pop %v560
      %v567 = vtanh.pop %v561
      %v568 = vtanh.pop %v562
      %v569 = vtanh.pop %v563
      %v570 = vtanh.pop %v564
      %v571 = vmul.f32 %v565, 0.5
      %v572 = vmul.f32 %v566, 0.5
      %v573 = vmul.f32 %v567, 0.5
      %v574 = vmul.f32 %v568, 0.5
      %v575 = vmul.f32 %v569, 0.5
      %v576 = vmul.f32 %v570, 0.5
      %v577 = vadd.f32 %v571, 0.5
      %v578 = vadd.f32 %v572, 0.5
      %v579 = vadd.f32 %v573, 0.5
      %v580 = vadd.f32 %v574, 0.5
      %v581 = vadd.f32 %v575, 0.5
      %v582 = vadd.f32 %v576, 0.5
      %589 = vrot.lane.b32.xlu0 %v577, 96
      %v590 = vpop.permute.xlu0 %589
      %591 = vrot.lane.b32.xlu0 %v578, 96
      %v592 = vpop.permute.xlu0 %591
      %593 = vrot.lane.b32.xlu0 %v579, 96
      %v594 = vpop.permute.xlu0 %593
      %595 = vrot.lane.b32.xlu0 %v580, 96
      %v596 = vpop.permute.xlu0 %595
      %597 = vrot.lane.b32.xlu0 %v581, 96
      %v598 = vpop.permute.xlu0 %597
      %599 = vrot.lane.b32.xlu0 %v582, 96
      %v600 = vpop.permute.xlu0 %599
      %v607 = vmul.f32 %v553, %v590
      %v608 = vmul.f32 %v554, %v592
      %v609 = vmul.f32 %v555, %v594
      %v610 = vmul.f32 %v556, %v596
      %v611 = vmul.f32 %v557, %v598
      %v612 = vmul.f32 %v558, %v600
      %v613 = vpack.c.bf16 %v608, %v607
      %v614 = vpack.c.bf16 %v610, %v609
      %v615 = vpack.c.bf16 %v612, %v611
      %v616 = vld [vmem:[%s6] sm:$0xf]
      %v617 = vld [vmem:[%s6 + $0x4] sm:$0xf]
      %v618 = vld [vmem:[%s6 + $0x8] sm:$0xf]
      %v619 = vld [vmem:[%s6 + $0xc] sm:$0xf]
      %v620 = vld [vmem:[%s7] sm:$0x1]
      %v622 = vlaneseq
      %v623 = vshrl.u32 %v622, 7
      %v624 = vsub.s32 0, %v623
      %v625 = vrot.slane %v620, %v624
      %v631 = vunpack.c.l.b16 %v616
      %v632 = vunpack.c.l.b16 %v617
      %v633 = vunpack.c.l.b16 %v618
      %v634 = vunpack.c.l.b16 %v619
      %v635 = vpack.c.b16 %v632, %v631
      %v636 = vpack.c.b16 %v634, %v633
      %v640 = vsel %vm398, %v613, 0
      %v643 = vsel %vm398, %v614, 0
      %v646 = vsel %vm398, %v615, 0
      %648 = vmatprep.subr.bf16.mxu0 0
      %649 = vmatpush1.bf16.msra.mxu0 0
      %650 = vmatprep.subr.bf16.mxu0 0
      %651 = vmatpush1.bf16.msra.mxu0 0
      %652 = vmatprep.subr.bf16.mxu0 0
      %653 = vmatpush1.bf16.msra.mxu0 0
      %654 = vmatprep.subr.bf16.mxu0 0
      %655 = vmatpush1.bf16.msra.mxu0 0
      %656 = vmatprep.subr.bf16.mxu0 0
      %657 = vmatpush1.bf16.msra.mxu0 0
      %658 = vmatprep.subr.bf16.mxu0 0
      %659 = vmatpush1.bf16.msra.mxu0 0
      %660 = vmatprep.subr.bf16.mxu0 0
      %661 = vmatpush1.bf16.msra.mxu0 %v636
      %662 = vmatprep.subr.bf16.mxu0 0
      %663 = vmatpush1.bf16.msra.mxu0 %v635
      %664 = vmatprep.subr.bf16.mxu0 0
      %665 = vmatpush2.bf16.msra.mxu0 0
      %666 = vmatprep.subr.bf16.mxu0 0
      %667 = vmatpush2.bf16.msra.mxu0 0
      %668 = vmatprep.subr.bf16.mxu0 0
      %669 = vmatpush2.bf16.msra.mxu0 0
      %670 = vmatprep.subr.bf16.mxu0 0
      %671 = vmatpush2.bf16.msra.mxu0 0
      %672 = vmatprep.subr.bf16.mxu0 0
      %673 = vmatpush2.bf16.msra.mxu0 0
      %674 = vmatprep.subr.bf16.mxu0 0
      %675 = vmatpush2.bf16.msra.mxu0 0
      %676 = vmatprep.subr.bf16.mxu0 0
      %677 = vmatpush2.bf16.msra.mxu0 0
      %678 = vmatprep.subr.bf16.mxu0 0
      %679 = vmatpush2.bf16.msra.mxu0 0
      %680 = vmatprep.mubr.bf16.mxu0 0
      %681 = vmatmul.mubr.bf16.gmra.mxu0 %v640
      %v682 = vpop.f32.mrf.mxu0
      %v683 = vadd.f32 %v625, %v682
      %v684 = vpop.f32.mrf.mxu0
      %v685 = vpop.f32.mrf.mxu0
      %v686 = vadd.f32 %v625, %v685
      %v687 = vpop.f32.mrf.mxu0
      %688 = vmatprep.mubr.bf16.mxu0 0
      %689 = vmatmul.mubr.bf16.gmra.mxu0 %v643
      %v690 = vpop.f32.mrf.mxu0
      %v691 = vadd.f32 %v625, %v690
      %v692 = vpop.f32.mrf.mxu0
      %v693 = vpop.f32.mrf.mxu0
      %v694 = vadd.f32 %v625, %v693
      %v695 = vpop.f32.mrf.mxu0
      %696 = vmatprep.mubr.bf16.mxu0 0
      %697 = vmatmul.mubr.bf16.gmra.mxu0 %v646
      %v698 = vpop.f32.mrf.mxu0
      %v699 = vadd.f32 %v625, %v698
      %v700 = vpop.f32.mrf.mxu0
      %v701 = vpop.f32.mrf.mxu0
      %v702 = vadd.f32 %v625, %v701
      %v703 = vpop.f32.mrf.mxu0
      %704 = vdwg.mxu0
      %vm711 = vcmask 1046528
      %v712 = vrot.slane %v345, 1
      %v713 = vrot.slane %v346, 1
      %v714 = vsel %vm711, %v712, %v713
      %v715 = vrot.slane %v347, 1
      %v716 = vsel %vm711, %v713, %v715
      %v717 = vrot.slane %v348, 1
      %v718 = vsel %vm711, %v715, %v717
      %v719 = vrot.slane %v349, 1
      %v720 = vsel %vm711, %v717, %v719
      %v721 = vrot.slane %v350, 1
      %v722 = vsel %vm711, %v719, %v721
      %v729 = vadd.f32 %v683, %v714
      %v730 = vadd.f32 %v686, %v716
      %v731 = vadd.f32 %v691, %v718
      %v732 = vadd.f32 %v694, %v720
      %v733 = vadd.f32 %v699, %v722
      %v734 = vadd.f32 %v702, %v721
      %735 = vst.msk [vmem:[%s339] sm:$0xff] %vm398, %v729
      %736 = vst.msk [vmem:[%s339 + $0x8] sm:$0xff] %vm398, %v730
      %737 = vst.msk [vmem:[%s339 + $0x10] sm:$0xff] %vm398, %v731
      %738 = vst.msk [vmem:[%s339 + $0x18] sm:$0xff] %vm398, %v732
      %739 = vst.msk [vmem:[%s339 + $0x20] sm:$0xff] %vm398, %v733
      %vm740 = vcmask 260096
      %741 = vst.msk [vmem:[%s339 + $0x28] sm:$0x7f] %vm740, %v734
      %v742 = vld [vmem:[%s4] sm:$0xf]
      %v743 = vld [vmem:[%s4 + $0x4] sm:$0xf]
      %v744 = vld [vmem:[%s4 + $0x8] sm:$0xf]
      %v745 = vld [vmem:[%s4 + $0xc] sm:$0xf]
      %v746 = vld [vmem:[%s5] sm:$0x1]
      %v748 = vlaneseq
      %v749 = vshrl.u32 %v748, 7
      %v750 = vsub.s32 0, %v749
      %v751 = vrot.slane %v746, %v750
      %v753 = vshrl.u32 %v615, 16
      %v755 = vrot.slane %v753, 3
      %v756 = vshll.u32 %v615, 16
      %v758 = vrot.slane %v756, 4
      %v759 = vor.u32 %v755, %v758
      %v764 = vunpack.c.l.b16 %v742
      %v765 = vunpack.c.l.b16 %v743
      %v766 = vunpack.c.l.b16 %v744
      %v767 = vunpack.c.l.b16 %v745
      %v768 = vpack.c.b16 %v765, %v764
      %v769 = vpack.c.b16 %v767, %v766
      %v773 = vsel %vm398, %v759, 0
      %775 = vmatprep.subr.bf16.mxu0 0
      %776 = vmatpush1.bf16.msra.mxu0 0
      %777 = vmatprep.subr.bf16.mxu0 0
      %778 = vmatpush1.bf16.msra.mxu0 0
      %779 = vmatprep.subr.bf16.mxu0 0
      %780 = vmatpush1.bf16.msra.mxu0 0
      %781 = vmatprep.subr.bf16.mxu0 0
      %782 = vmatpush1.bf16.msra.mxu0 0
      %783 = vmatprep.subr.bf16.mxu0 0
      %784 = vmatpush1.bf16.msra.mxu0 0
      %785 = vmatprep.subr.bf16.mxu0 0
      %786 = vmatpush1.bf16.msra.mxu0 0
      %787 = vmatprep.subr.bf16.mxu0 0
      %788 = vmatpush1.bf16.msra.mxu0 %v769
      %789 = vmatprep.subr.bf16.mxu0 0
      %790 = vmatpush1.bf16.msra.mxu0 %v768
      %791 = vmatprep.subr.bf16.mxu0 0
      %792 = vmatpush2.bf16.msra.mxu0 0
      %793 = vmatprep.subr.bf16.mxu0 0
      %794 = vmatpush2.bf16.msra.mxu0 0
      %795 = vmatprep.subr.bf16.mxu0 0
      %796 = vmatpush2.bf16.msra.mxu0 0
      %797 = vmatprep.subr.bf16.mxu0 0
      %798 = vmatpush2.bf16.msra.mxu0 0
      %799 = vmatprep.subr.bf16.mxu0 0
      %800 = vmatpush2.bf16.msra.mxu0 0
      %801 = vmatprep.subr.bf16.mxu0 0
      %802 = vmatpush2.bf16.msra.mxu0 0
      %803 = vmatprep.subr.bf16.mxu0 0
      %804 = vmatpush2.bf16.msra.mxu0 0
      %805 = vmatprep.subr.bf16.mxu0 0
      %806 = vmatpush2.bf16.msra.mxu0 0
      %807 = vmatprep.mubr.bf16.mxu0 0
      %808 = vmatmul.mubr.bf16.gmra.mxu0 %v773
      %v809 = vpop.f32.mrf.mxu0
      %v810 = vadd.f32 %v751, %v809
      %v811 = vpop.f32.mrf.mxu0
      %v812 = vpop.f32.mrf.mxu0
      %v813 = vpop.f32.mrf.mxu0
      %814 = vdwg.mxu0
      %vm815 = vcmask 523264
      %816 = vst.msk [vmem:[%s343] sm:$0xff] %vm815, %v810
      %p817 = scmp.lt.s32.totalorder %s21, 1
      %s818 = scalar_select %p817, %s21, 1
      %s819 = smul.addr %s818, 6
      %s820 = smul.addr %s819, 8
      %s821 = scalar_lea.vmem %s8, %s820
      %p822 = scmp.lt.s32.totalorder %s21, 1
      %s823 = scalar_select %p822, %s21, 1
      %s824 = smul.addr %s823, 8
      %s825 = scalar_lea.vmem %s9, %s824
      // Predicated region
      $region53: #{_lambda_.9} parent=51 // pred_check
        %p826 = pneg %p212
      $region54: #{_lambda_.9} parent=51 // pred_check_branch
        %828 = sbr.rel (%p826) target = $region56
      $region55: #{_lambda_.9} parent=51 // pred_region
        _
      $region56: #{_lambda_.9} parent=51 // pred_fallthru
        _
      // Predicated region
      $region57: #{_lambda_.9} parent=51 // pred_check
        %p829 = pneg %p238
      $region58: #{_lambda_.9} parent=51 // pred_check_branch
        %831 = sbr.rel (%p829) target = $region60
      $region59: #{_lambda_.9} parent=51 // pred_region
        _
      $region60: #{_lambda_.9} parent=51 // pred_fallthru
        _
    $region52: #{_lambda_.9} parent=5 // pred_fallthru
      _
    %p832 = scmp.le.s32.totalorder 2, %s16
    // Predicated region
    $region61: #{_lambda_.9} parent=5 // pred_check
      %p833 = pneg %p832
    $region62: #{_lambda_.9} parent=5 // pred_check_branch
      %835 = sbr.rel (%p833) target = $region64
    $region63: #{_lambda_.9} parent=5 // pred_region
      %s836 = ssub.s32 %s16, 2
      // Predicated region
      $region65: #{_lambda_.9} parent=63 // pred_check
        %p837 = pneg %p218
      $region66: #{_lambda_.9} parent=63 // pred_check_branch
        %839 = sbr.rel (%p837) target = $region68
      $region67: #{_lambda_.9} parent=63 // pred_region
        %p840 = scmp.lt.s32.totalorder %s22, 1
        %s841 = scalar_select %p840, %s22, 1
        %s842 = smul.addr %s841, 6
        %s843 = smul.addr %s842, 8
        %s844 = scalar_lea.vmem %s8, %s843
      $region68: #{_lambda_.9} parent=63 // pred_fallthru
        _
      // Predicated region
      $region69: #{_lambda_.9} parent=63 // pred_check
        %p845 = pneg %p244
      $region70: #{_lambda_.9} parent=63 // pred_check_branch
        %847 = sbr.rel (%p845) target = $region72
      $region71: #{_lambda_.9} parent=63 // pred_region
        %p848 = scmp.lt.s32.totalorder %s22, 1
        %s849 = scalar_select %p848, %s22, 1
        %s850 = smul.addr %s849, 8
        %s851 = scalar_lea.vmem %s9, %s850
      $region72: #{_lambda_.9} parent=63 // pred_fallthru
        _
    $region64: #{_lambda_.9} parent=5 // pred_fallthru
      _
  $region6: #{_lambda_.9} parent=0 // loop_footer
    %s20 = sadd.s32 1, %s16
  $region7: #{_lambda_.9} parent=0 // loop_footer_branch
    %15 = sbr.rel target = $region3
  $region8: #{_lambda_.9} parent=0 // loop_exit
    _

// kernel: _lambda_.10
$region0: #{_lambda_.10}
  #allocation0 [shape = 'u32[]', space=smem, size = 0x4, offset = 0x4, fixed_abs, tag = 'smem constant byte address 0x4 - core index']
  #allocation1 [shape = 'u32[144,128]{1,0:T(1,128)}', space=vmem, size = 0x12000, scoped, tag = 'internal scratch']
  %s0 = inlined_call_operand.vmem [shape: f32[4,24,32], index: 0, kind: input, shape index: {}]
  %s1 = inlined_call_operand.vmem [shape: bf16[32,64], index: 1, kind: input, shape index: {}]
  %s2 = inlined_call_operand.vmem [shape: bf16[32,64], index: 2, kind: input, shape index: {}]
  %s3 = inlined_call_operand.vmem [shape: f32[1,64], index: 3, kind: input, shape index: {}]
  %s4 = inlined_call_operand.vmem [shape: bf16[32,64], index: 4, kind: input, shape index: {}]
  %s5 = inlined_call_operand.vmem [shape: f32[1,64], index: 5, kind: input, shape index: {}]
  %s6 = inlined_call_operand.vmem [shape: bf16[32,32], index: 6, kind: input, shape index: {}]
  %s7 = inlined_call_operand.vmem [shape: f32[1,32], index: 7, kind: input, shape index: {}]
  %s8 = inlined_call_operand.vmem [shape: f32[4,23,32], index: 8, kind: output, shape index: {0}]
  %s9 = inlined_call_operand.vmem [shape: f32[4,4,64], index: 9, kind: output, shape index: {1}]
  %10 = xla_tuple %s8, %s9
  %s11 = sld [smem:[#allocation0]]
  $region73: #{_lambda_.10} parent=0
    _
  %s13 = ssub.s32 1, %s11
  %s14 = scalar_select 0, %s13, %s11
  loop: start=0, step=1, limit=6
  $region2: #{_lambda_.10} parent=0 // loop_pre_header
    _
  $region3: #{_lambda_.10} parent=0 // loop_header
    %s16 = sphi 0, %s20
    %p17 = scmp.ge.s32.totalorder %s16, 6
    %s26 = sphi 0, %s28
    %s29 = sphi 0, %s26
    %s30 = sphi 0, %s29
    %s46 = sphi 0, %s30
    %s50 = sphi 0, %s50
    %s52 = sphi 0, %s50
    %s53 = sphi 0, %s52
    %s67 = sphi 0, %s53
    %s71 = sphi 0, %s71
    %s73 = sphi 0, %s71
    %s74 = sphi 0, %s73
    %s88 = sphi 0, %s74
    %s92 = sphi 0, %s92
    %s94 = sphi 0, %s92
    %s95 = sphi 0, %s94
    %s109 = sphi 0, %s95
    %s113 = sphi 0, %s113
    %s115 = sphi 0, %s113
    %s116 = sphi 0, %s115
    %s130 = sphi 0, %s116
    %s134 = sphi 0, %s134
    %s136 = sphi 0, %s134
    %s137 = sphi 0, %s136
    %s151 = sphi 0, %s137
    %s155 = sphi 0, %s155
    %s157 = sphi 0, %s155
    %s158 = sphi 0, %s157
    %s172 = sphi 0, %s158
    %s176 = sphi 0, %s176
    %s178 = sphi 0, %s176
    %s179 = sphi 0, %s178
    %s193 = sphi 0, %s179
    %s199 = sphi 0, %s201
    %s202 = sphi 0, %s199
    %s203 = sphi 0, %s202
    %s219 = sphi 0, %s203
    %s225 = sphi 0, %s227
    %s228 = sphi 0, %s225
    %s229 = sphi 0, %s228
    %s245 = sphi 0, %s229
  $region4: #{_lambda_.10} parent=0 // loop_header_branch
    %19 = sbr.rel (%p17) target = $region8
  $region5: #{_lambda_.10} parent=0 // loop_body
    %s21 = ssub.s32 %s16, 1
    %s22 = ssub.s32 %s16, 2
    %s23 = sadd.s32 %s16, 1
    %s24 = ssub.s32 %s16, %s23
    %p25 = scmp.eq.s32.totalorder %s24, 0
    %s27 = sadd.s32 %s26, 1
    %s28 = scalar_select %p25, %s26, %s27
    %p31 = pneg %p25
    %p32 = scmp.eq.s32.totalorder %s16, 3
    %p33 = por %p31, %p32
    %p34 = scmp.ne.s32.totalorder %s26, %s29
    %p35 = scmp.eq.s32.totalorder %s16, 0
    %p36 = por %p34, %p35
    %p37 = scmp.ne.s32.totalorder %s26, %s29
    %p38 = scmp.eq.s32.totalorder %s21, 3
    %p39 = por %p37, %p38
    %p40 = scmp.ne.s32.totalorder %s29, %s30
    %p41 = scmp.eq.s32.totalorder %s21, 0
    %p42 = por %p40, %p41
    %p43 = scmp.ne.s32.totalorder %s29, %s30
    %p44 = scmp.eq.s32.totalorder %s22, 3
    %p45 = por %p43, %p44
    %p47 = scmp.ne.s32.totalorder %s30, %s46
    %p48 = scmp.eq.s32.totalorder %s22, 0
    %p49 = por %p47, %p48
    %s51 = sadd.s32 %s50, 1
    %p54 = scmp.eq.s32.totalorder %s16, 3
    %p55 = scmp.ne.s32.totalorder %s50, %s52
    %p56 = scmp.eq.s32.totalorder %s16, 0
    %p57 = por %p55, %p56
    %p58 = scmp.ne.s32.totalorder %s50, %s52
    %p59 = scmp.eq.s32.totalorder %s21, 3
    %p60 = por %p58, %p59
    %p61 = scmp.ne.s32.totalorder %s52, %s53
    %p62 = scmp.eq.s32.totalorder %s21, 0
    %p63 = por %p61, %p62
    %p64 = scmp.ne.s32.totalorder %s52, %s53
    %p65 = scmp.eq.s32.totalorder %s22, 3
    %p66 = por %p64, %p65
    %p68 = scmp.ne.s32.totalorder %s53, %s67
    %p69 = scmp.eq.s32.totalorder %s22, 0
    %p70 = por %p68, %p69
    %s72 = sadd.s32 %s71, 1
    %p75 = scmp.eq.s32.totalorder %s16, 3
    %p76 = scmp.ne.s32.totalorder %s71, %s73
    %p77 = scmp.eq.s32.totalorder %s16, 0
    %p78 = por %p76, %p77
    %p79 = scmp.ne.s32.totalorder %s71, %s73
    %p80 = scmp.eq.s32.totalorder %s21, 3
    %p81 = por %p79, %p80
    %p82 = scmp.ne.s32.totalorder %s73, %s74
    %p83 = scmp.eq.s32.totalorder %s21, 0
    %p84 = por %p82, %p83
    %p85 = scmp.ne.s32.totalorder %s73, %s74
    %p86 = scmp.eq.s32.totalorder %s22, 3
    %p87 = por %p85, %p86
    %p89 = scmp.ne.s32.totalorder %s74, %s88
    %p90 = scmp.eq.s32.totalorder %s22, 0
    %p91 = por %p89, %p90
    %s93 = sadd.s32 %s92, 1
    %p96 = scmp.eq.s32.totalorder %s16, 3
    %p97 = scmp.ne.s32.totalorder %s92, %s94
    %p98 = scmp.eq.s32.totalorder %s16, 0
    %p99 = por %p97, %p98
    %p100 = scmp.ne.s32.totalorder %s92, %s94
    %p101 = scmp.eq.s32.totalorder %s21, 3
    %p102 = por %p100, %p101
    %p103 = scmp.ne.s32.totalorder %s94, %s95
    %p104 = scmp.eq.s32.totalorder %s21, 0
    %p105 = por %p103, %p104
    %p106 = scmp.ne.s32.totalorder %s94, %s95
    %p107 = scmp.eq.s32.totalorder %s22, 3
    %p108 = por %p106, %p107
    %p110 = scmp.ne.s32.totalorder %s95, %s109
    %p111 = scmp.eq.s32.totalorder %s22, 0
    %p112 = por %p110, %p111
    %s114 = sadd.s32 %s113, 1
    %p117 = scmp.eq.s32.totalorder %s16, 3
    %p118 = scmp.ne.s32.totalorder %s113, %s115
    %p119 = scmp.eq.s32.totalorder %s16, 0
    %p120 = por %p118, %p119
    %p121 = scmp.ne.s32.totalorder %s113, %s115
    %p122 = scmp.eq.s32.totalorder %s21, 3
    %p123 = por %p121, %p122
    %p124 = scmp.ne.s32.totalorder %s115, %s116
    %p125 = scmp.eq.s32.totalorder %s21, 0
    %p126 = por %p124, %p125
    %p127 = scmp.ne.s32.totalorder %s115, %s116
    %p128 = scmp.eq.s32.totalorder %s22, 3
    %p129 = por %p127, %p128
    %p131 = scmp.ne.s32.totalorder %s116, %s130
    %p132 = scmp.eq.s32.totalorder %s22, 0
    %p133 = por %p131, %p132
    %s135 = sadd.s32 %s134, 1
    %p138 = scmp.eq.s32.totalorder %s16, 3
    %p139 = scmp.ne.s32.totalorder %s134, %s136
    %p140 = scmp.eq.s32.totalorder %s16, 0
    %p141 = por %p139, %p140
    %p142 = scmp.ne.s32.totalorder %s134, %s136
    %p143 = scmp.eq.s32.totalorder %s21, 3
    %p144 = por %p142, %p143
    %p145 = scmp.ne.s32.totalorder %s136, %s137
    %p146 = scmp.eq.s32.totalorder %s21, 0
    %p147 = por %p145, %p146
    %p148 = scmp.ne.s32.totalorder %s136, %s137
    %p149 = scmp.eq.s32.totalorder %s22, 3
    %p150 = por %p148, %p149
    %p152 = scmp.ne.s32.totalorder %s137, %s151
    %p153 = scmp.eq.s32.totalorder %s22, 0
    %p154 = por %p152, %p153
    %s156 = sadd.s32 %s155, 1
    %p159 = scmp.eq.s32.totalorder %s16, 3
    %p160 = scmp.ne.s32.totalorder %s155, %s157
    %p161 = scmp.eq.s32.totalorder %s16, 0
    %p162 = por %p160, %p161
    %p163 = scmp.ne.s32.totalorder %s155, %s157
    %p164 = scmp.eq.s32.totalorder %s21, 3
    %p165 = por %p163, %p164
    %p166 = scmp.ne.s32.totalorder %s157, %s158
    %p167 = scmp.eq.s32.totalorder %s21, 0
    %p168 = por %p166, %p167
    %p169 = scmp.ne.s32.totalorder %s157, %s158
    %p170 = scmp.eq.s32.totalorder %s22, 3
    %p171 = por %p169, %p170
    %p173 = scmp.ne.s32.totalorder %s158, %s172
    %p174 = scmp.eq.s32.totalorder %s22, 0
    %p175 = por %p173, %p174
    %s177 = sadd.s32 %s176, 1
    %p180 = scmp.eq.s32.totalorder %s16, 3
    %p181 = scmp.ne.s32.totalorder %s176, %s178
    %p182 = scmp.eq.s32.totalorder %s16, 0
    %p183 = por %p181, %p182
    %p184 = scmp.ne.s32.totalorder %s176, %s178
    %p185 = scmp.eq.s32.totalorder %s21, 3
    %p186 = por %p184, %p185
    %p187 = scmp.ne.s32.totalorder %s178, %s179
    %p188 = scmp.eq.s32.totalorder %s21, 0
    %p189 = por %p187, %p188
    %p190 = scmp.ne.s32.totalorder %s178, %s179
    %p191 = scmp.eq.s32.totalorder %s22, 3
    %p192 = por %p190, %p191
    %p194 = scmp.ne.s32.totalorder %s179, %s193
    %p195 = scmp.eq.s32.totalorder %s22, 0
    %p196 = por %p194, %p195
    %s197 = ssub.s32 %s16, %s23
    %p198 = scmp.eq.s32.totalorder %s197, 0
    %s200 = sadd.s32 %s199, 1
    %s201 = scalar_select %p198, %s199, %s200
    %p204 = pneg %p198
    %p205 = scmp.eq.s32.totalorder %s16, 3
    %p206 = por %p204, %p205
    %p207 = scmp.ne.s32.totalorder %s199, %s202
    %p208 = scmp.eq.s32.totalorder %s16, 0
    %p209 = por %p207, %p208
    %p210 = scmp.ne.s32.totalorder %s199, %s202
    %p211 = scmp.eq.s32.totalorder %s21, 3
    %p212 = por %p210, %p211
    %p213 = scmp.ne.s32.totalorder %s202, %s203
    %p214 = scmp.eq.s32.totalorder %s21, 0
    %p215 = por %p213, %p214
    %p216 = scmp.ne.s32.totalorder %s202, %s203
    %p217 = scmp.eq.s32.totalorder %s22, 3
    %p218 = por %p216, %p217
    %p220 = scmp.ne.s32.totalorder %s203, %s219
    %p221 = scmp.eq.s32.totalorder %s22, 0
    %p222 = por %p220, %p221
    %s223 = ssub.s32 %s16, %s23
    %p224 = scmp.eq.s32.totalorder %s223, 0
    %s226 = sadd.s32 %s225, 1
    %s227 = scalar_select %p224, %s225, %s226
    %p230 = pneg %p224
    %p231 = scmp.eq.s32.totalorder %s16, 3
    %p232 = por %p230, %p231
    %p233 = scmp.ne.s32.totalorder %s225, %s228
    %p234 = scmp.eq.s32.totalorder %s16, 0
    %p235 = por %p233, %p234
    %p236 = scmp.ne.s32.totalorder %s225, %s228
    %p237 = scmp.eq.s32.totalorder %s21, 3
    %p238 = por %p236, %p237
    %p239 = scmp.ne.s32.totalorder %s228, %s229
    %p240 = scmp.eq.s32.totalorder %s21, 0
    %p241 = por %p239, %p240
    %p242 = scmp.ne.s32.totalorder %s228, %s229
    %p243 = scmp.eq.s32.totalorder %s22, 3
    %p244 = por %p242, %p243
    %p246 = scmp.ne.s32.totalorder %s229, %s245
    %p247 = scmp.eq.s32.totalorder %s22, 0
    %p248 = por %p246, %p247
    %p249 = scmp.le.s32.totalorder 1, %s16
    %p250 = scmp.lt.s32.totalorder %s16, 5
    %p251 = pnand %p249, %p250
    %p252 = pneg %p251
    // Predicated region
    $region9: #{_lambda_.10} parent=5 // pred_check
      _
    $region10: #{_lambda_.10} parent=5 // pred_check_branch
      %254 = sbr.rel (%p251) target = $region12
    $region11: #{_lambda_.10} parent=5 // pred_region
      %s255 = ssub.s32 %s16, 1
      // Predicated region
      $region13: #{_lambda_.10} parent=11 // pred_check
        %p256 = pneg %p63
      $region14: #{_lambda_.10} parent=11 // pred_check_branch
        %258 = sbr.rel (%p256) target = $region16
      $region15: #{_lambda_.10} parent=11 // pred_region
        _
      $region16: #{_lambda_.10} parent=11 // pred_fallthru
        _
      // Predicated region
      $region17: #{_lambda_.10} parent=11 // pred_check
        %p259 = pneg %p84
      $region18: #{_lambda_.10} parent=11 // pred_check_branch
        %261 = sbr.rel (%p259) target = $region20
      $region19: #{_lambda_.10} parent=11 // pred_region
        _
      $region20: #{_lambda_.10} parent=11 // pred_fallthru
        _
      // Predicated region
      $region21: #{_lambda_.10} parent=11 // pred_check
        %p262 = pneg %p105
      $region22: #{_lambda_.10} parent=11 // pred_check_branch
        %264 = sbr.rel (%p262) target = $region24
      $region23: #{_lambda_.10} parent=11 // pred_region
        _
      $region24: #{_lambda_.10} parent=11 // pred_fallthru
        _
      // Predicated region
      $region25: #{_lambda_.10} parent=11 // pred_check
        %p265 = pneg %p126
      $region26: #{_lambda_.10} parent=11 // pred_check_branch
        %267 = sbr.rel (%p265) target = $region28
      $region27: #{_lambda_.10} parent=11 // pred_region
        _
      $region28: #{_lambda_.10} parent=11 // pred_fallthru
        _
      // Predicated region
      $region29: #{_lambda_.10} parent=11 // pred_check
        %p268 = pneg %p147
      $region30: #{_lambda_.10} parent=11 // pred_check_branch
        %270 = sbr.rel (%p268) target = $region32
      $region31: #{_lambda_.10} parent=11 // pred_region
        _
      $region32: #{_lambda_.10} parent=11 // pred_fallthru
        _
      // Predicated region
      $region33: #{_lambda_.10} parent=11 // pred_check
        %p271 = pneg %p168
      $region34: #{_lambda_.10} parent=11 // pred_check_branch
        %273 = sbr.rel (%p271) target = $region36
      $region35: #{_lambda_.10} parent=11 // pred_region
        _
      $region36: #{_lambda_.10} parent=11 // pred_fallthru
        _
      // Predicated region
      $region37: #{_lambda_.10} parent=11 // pred_check
        %p274 = pneg %p189
      $region38: #{_lambda_.10} parent=11 // pred_check_branch
        %276 = sbr.rel (%p274) target = $region40
      $region39: #{_lambda_.10} parent=11 // pred_region
        _
      $region40: #{_lambda_.10} parent=11 // pred_fallthru
        _
    $region12: #{_lambda_.10} parent=5 // pred_fallthru
      _
    %p277 = scmp.lt.s32.totalorder %s16, 4
    // Predicated region
    $region41: #{_lambda_.10} parent=5 // pred_check
      %p278 = pneg %p277
    $region42: #{_lambda_.10} parent=5 // pred_check_branch
      %280 = sbr.rel (%p278) target = $region44
    $region43: #{_lambda_.10} parent=5 // pred_region
      // Predicated region
      $region45: #{_lambda_.10} parent=43 // pred_check
        %p281 = pneg %p36
      $region46: #{_lambda_.10} parent=43 // pred_check_branch
        %283 = sbr.rel (%p281) target = $region48
      $region47: #{_lambda_.10} parent=43 // pred_region
        %p284 = scmp.lt.s32.totalorder %s16, 3
        %s285 = scalar_select %p284, %s16, 3
        %s286 = smul.addr %s285, 3
        %s287 = smul.addr %s286, 8
        %s288 = scalar_lea.vmem %s0, %s287
      $region48: #{_lambda_.10} parent=43 // pred_fallthru
        _
    $region44: #{_lambda_.10} parent=5 // pred_fallthru
      _
    %p289 = scmp.le.s32.totalorder 1, %s16
    %p290 = scmp.lt.s32.totalorder %s16, 5
    %p291 = pnand %p289, %p290
    %p292 = pneg %p291
    // Predicated region
    $region49: #{_lambda_.10} parent=5 // pred_check
      _
    $region50: #{_lambda_.10} parent=5 // pred_check_branch
      %294 = sbr.rel (%p291) target = $region52
    $region51: #{_lambda_.10} parent=5 // pred_region
      %s295 = ssub.s32 %s16, 1
      %p296 = scmp.lt.s32.totalorder %s21, 3
      %s297 = scalar_select %p296, %s21, 3
      %s298 = smul.addr %s297, 3
      %s299 = smul.addr %s298, 8
      %s300 = scalar_lea.vmem %s0, %s299
      %p301 = pneg %p42
      %p302 = pneg %p39
      %p303 = pneg %p63
      %p304 = pneg %p60
      %p305 = pneg %p84
      %p306 = pneg %p81
      %p307 = pneg %p105
      %p308 = pneg %p102
      %p309 = pneg %p126
      %p310 = pneg %p123
      %p311 = pneg %p147
      %p312 = pneg %p144
      %p313 = pneg %p168
      %p314 = pneg %p165
      %p315 = pneg %p189
      %p316 = pneg %p186
      %p317 = pneg %p215
      %p318 = pneg %p212
      %p319 = scmp.lt.s32.totalorder %s21, 3
      %s320 = scalar_select %p319, %s21, 3
      %s321 = smul.addr %s320, 3
      %s322 = smul.addr %s321, 8
      %s323 = scalar_lea.vmem %s8, %s322
      %p324 = pneg %p241
      %p325 = pneg %p238
      %p326 = scmp.lt.s32.totalorder %s21, 3
      %s327 = scalar_select %p326, %s21, 3
      %s328 = smul.addr %s327, 4
      %s329 = scalar_lea.vmem %s9, %s328
      %p330 = scmp.lt.s32.totalorder %s21, 3
      %s331 = scalar_select %p330, %s21, 3
      %s332 = smul.addr %s331, 3
      %s333 = smul.addr %s332, 8
      %s334 = scalar_lea.vmem %s0, %s333
      %p335 = scmp.lt.s32.totalorder %s21, 3
      %s336 = scalar_select %p335, %s21, 3
      %s337 = smul.addr %s336, 3
      %s338 = smul.addr %s337, 8
      %s339 = scalar_lea.vmem %s8, %s338
      %p340 = scmp.lt.s32.totalorder %s21, 3
      %s341 = scalar_select %p340, %s21, 3
      %s342 = smul.addr %s341, 4
      %s343 = scalar_lea.vmem %s9, %s342
      %v345 = vld [vmem:[%s334] sm:$0xff]
      %v346 = vld [vmem:[%s334 + $0x8] sm:$0xff]
      %v347 = vld [vmem:[%s334 + $0x10] sm:$0xff]
      %v348 = vpack.c.bf16 %v346, %v345
      %v349 = vpack.c.bf16 %v347, %v347
      %v350 = vld [vmem:[%s1] sm:$0xf]
      %v351 = vld [vmem:[%s1 + $0x4] sm:$0xf]
      %v352 = vld [vmem:[%s1 + $0x8] sm:$0xf]
      %v353 = vld [vmem:[%s1 + $0xc] sm:$0xf]
      %v354 = vld [vmem:[%s2] sm:$0xf]
      %v355 = vld [vmem:[%s2 + $0x4] sm:$0xf]
      %v356 = vld [vmem:[%s2 + $0x8] sm:$0xf]
      %v357 = vld [vmem:[%s2 + $0xc] sm:$0xf]
      %vm358 = vsmask.f32 7424
      %v360 = vshrl.u32 %v348, 16
      %v362 = vshll.u32 %v348, 16
      %v364 = vrot.slane %v362, 1
      %v365 = vor.u32 %v360, %v364
      %v367 = vshll.u32 %v349, 16
      %v369 = vrot.slane %v367, 1
      %v370 = vsel %vm358, %v365, %v369
      %v371 = vshrl.u32 %v349, 16
      %v373 = vor.u32 %v371, %v369
      %v378 = vunpack.c.l.b16 %v354
      %v379 = vunpack.c.l.b16 %v355
      %v380 = vunpack.c.l.b16 %v356
      %v381 = vunpack.c.l.b16 %v357
      %v382 = vpack.c.b16 %v379, %v378
      %v383 = vpack.c.b16 %v381, %v380
      %vm386 = vcmask 261120
      %v388 = vsel %vm386, %v370, 0
      %v391 = vsel %vm386, %v373, 0
      %393 = vmatprep.subr.bf16.mxu0 0
      %394 = vmatpush1.bf16.msra.mxu0 0
      %395 = vmatprep.subr.bf16.mxu0 0
      %396 = vmatpush1.bf16.msra.mxu0 0
      %397 = vmatprep.subr.bf16.mxu0 0
      %398 = vmatpush1.bf16.msra.mxu0 0
      %399 = vmatprep.subr.bf16.mxu0 0
      %400 = vmatpush1.bf16.msra.mxu0 0
      %401 = vmatprep.subr.bf16.mxu0 0
      %402 = vmatpush1.bf16.msra.mxu0 0
      %403 = vmatprep.subr.bf16.mxu0 0
      %404 = vmatpush1.bf16.msra.mxu0 0
      %405 = vmatprep.subr.bf16.mxu0 0
      %406 = vmatpush1.bf16.msra.mxu0 %v383
      %407 = vmatprep.subr.bf16.mxu0 0
      %408 = vmatpush1.bf16.msra.mxu0 %v382
      %409 = vmatprep.subr.bf16.mxu0 0
      %410 = vmatpush2.bf16.msra.mxu0 0
      %411 = vmatprep.subr.bf16.mxu0 0
      %412 = vmatpush2.bf16.msra.mxu0 0
      %413 = vmatprep.subr.bf16.mxu0 0
      %414 = vmatpush2.bf16.msra.mxu0 0
      %415 = vmatprep.subr.bf16.mxu0 0
      %416 = vmatpush2.bf16.msra.mxu0 0
      %417 = vmatprep.subr.bf16.mxu0 0
      %418 = vmatpush2.bf16.msra.mxu0 0
      %419 = vmatprep.subr.bf16.mxu0 0
      %420 = vmatpush2.bf16.msra.mxu0 0
      %421 = vmatprep.subr.bf16.mxu0 0
      %422 = vmatpush2.bf16.msra.mxu0 0
      %423 = vmatprep.subr.bf16.mxu0 0
      %424 = vmatpush2.bf16.msra.mxu0 0
      %425 = vmatprep.mubr.bf16.mxu0 0
      %426 = vmatmul.mubr.bf16.gmra.mxu0 %v388
      %v427 = vpop.f32.mrf.mxu0
      %v428 = vadd.f32 0.0, %v427
      %v429 = vpop.f32.mrf.mxu0
      %v430 = vpop.f32.mrf.mxu0
      %v431 = vadd.f32 0.0, %v430
      %v432 = vpop.f32.mrf.mxu0
      %433 = vmatprep.mubr.bf16.mxu0 0
      %434 = vmatmul.mubr.bf16.gmra.mxu0 %v391
      %v435 = vpop.f32.mrf.mxu0
      %v436 = vadd.f32 0.0, %v435
      %v437 = vpop.f32.mrf.mxu0
      %v438 = vpop.f32.mrf.mxu0
      %v439 = vpop.f32.mrf.mxu0
      %440 = vdwg.mxu0
      %v445 = vunpack.c.l.b16 %v350
      %v446 = vunpack.c.l.b16 %v351
      %v447 = vunpack.c.l.b16 %v352
      %v448 = vunpack.c.l.b16 %v353
      %v449 = vpack.c.b16 %v446, %v445
      %v450 = vpack.c.b16 %v448, %v447
      %v453 = vsel %vm386, %v348, 0
      %v455 = vsel %vm386, %v349, 0
      %457 = vmatprep.subr.bf16.mxu0 0
      %458 = vmatpush1.bf16.msra.mxu0 0
      %459 = vmatprep.subr.bf16.mxu0 0
      %460 = vmatpush1.bf16.msra.mxu0 0
      %461 = vmatprep.subr.bf16.mxu0 0
      %462 = vmatpush1.bf16.msra.mxu0 0
      %463 = vmatprep.subr.bf16.mxu0 0
      %464 = vmatpush1.bf16.msra.mxu0 0
      %465 = vmatprep.subr.bf16.mxu0 0
      %466 = vmatpush1.bf16.msra.mxu0 0
      %467 = vmatprep.subr.bf16.mxu0 0
      %468 = vmatpush1.bf16.msra.mxu0 0
      %469 = vmatprep.subr.bf16.mxu0 0
      %470 = vmatpush1.bf16.msra.mxu0 %v450
      %471 = vmatprep.subr.bf16.mxu0 0
      %472 = vmatpush1.bf16.msra.mxu0 %v449
      %473 = vmatprep.subr.bf16.mxu0 0
      %474 = vmatpush2.bf16.msra.mxu0 0
      %475 = vmatprep.subr.bf16.mxu0 0
      %476 = vmatpush2.bf16.msra.mxu0 0
      %477 = vmatprep.subr.bf16.mxu0 0
      %478 = vmatpush2.bf16.msra.mxu0 0
      %479 = vmatprep.subr.bf16.mxu0 0
      %480 = vmatpush2.bf16.msra.mxu0 0
      %481 = vmatprep.subr.bf16.mxu0 0
      %482 = vmatpush2.bf16.msra.mxu0 0
      %483 = vmatprep.subr.bf16.mxu0 0
      %484 = vmatpush2.bf16.msra.mxu0 0
      %485 = vmatprep.subr.bf16.mxu0 0
      %486 = vmatpush2.bf16.msra.mxu0 0
      %487 = vmatprep.subr.bf16.mxu0 0
      %488 = vmatpush2.bf16.msra.mxu0 0
      %489 = vmatprep.mubr.bf16.mxu0 0
      %490 = vmatmul.mubr.bf16.gmra.mxu0 %v453
      %v491 = vpop.f32.mrf.mxu0
      %v492 = vadd.f32 %v428, %v491
      %v493 = vpop.f32.mrf.mxu0
      %v494 = vpop.f32.mrf.mxu0
      %v495 = vadd.f32 %v431, %v494
      %v496 = vpop.f32.mrf.mxu0
      %497 = vmatprep.mubr.bf16.mxu0 0
      %498 = vmatmul.mubr.bf16.gmra.mxu0 %v455
      %v499 = vpop.f32.mrf.mxu0
      %v500 = vadd.f32 %v436, %v499
      %v501 = vpop.f32.mrf.mxu0
      %v502 = vpop.f32.mrf.mxu0
      %v503 = vpop.f32.mrf.mxu0
      %504 = vdwg.mxu0
      %v505 = vld [vmem:[%s3] sm:$0x1]
      %v507 = vlaneseq
      %v508 = vshrl.u32 %v507, 7
      %v509 = vsub.s32 0, %v508
      %v510 = vrot.slane %v505, %v509
      %v512 = vadd.f32 %v492, %v510
      %v513 = vadd.f32 %v495, %v510
      %v514 = vadd.f32 %v500, %v510
      %v515 = vtanh.pop %v512
      %v516 = vtanh.pop %v513
      %v517 = vtanh.pop %v514
      %v518 = vmul.f32 %v512, 0.5
      %v519 = vmul.f32 %v513, 0.5
      %v520 = vmul.f32 %v514, 0.5
      %v521 = vtanh.pop %v518
      %v522 = vtanh.pop %v519
      %v523 = vtanh.pop %v520
      %v524 = vmul.f32 %v521, 0.5
      %v525 = vmul.f32 %v522, 0.5
      %v526 = vmul.f32 %v523, 0.5
      %v527 = vadd.f32 %v524, 0.5
      %v528 = vadd.f32 %v525, 0.5
      %v529 = vadd.f32 %v526, 0.5
      %533 = vrot.lane.b32.xlu0 %v527, 96
      %v534 = vpop.permute.xlu0 %533
      %535 = vrot.lane.b32.xlu0 %v528, 96
      %v536 = vpop.permute.xlu0 %535
      %537 = vrot.lane.b32.xlu0 %v529, 96
      %v538 = vpop.permute.xlu0 %537
      %v542 = vmul.f32 %v515, %v534
      %v543 = vmul.f32 %v516, %v536
      %v544 = vmul.f32 %v517, %v538
      %v545 = vpack.c.bf16 %v543, %v542
      %v546 = vpack.c.bf16 %v544, %v544
      %v547 = vld [vmem:[%s6] sm:$0xf]
      %v548 = vld [vmem:[%s6 + $0x4] sm:$0xf]
      %v549 = vld [vmem:[%s6 + $0x8] sm:$0xf]
      %v550 = vld [vmem:[%s6 + $0xc] sm:$0xf]
      %v551 = vld [vmem:[%s7] sm:$0x1]
      %v553 = vlaneseq
      %v554 = vshrl.u32 %v553, 7
      %v555 = vsub.s32 0, %v554
      %v556 = vrot.slane %v551, %v555
      %v562 = vunpack.c.l.b16 %v547
      %v563 = vunpack.c.l.b16 %v548
      %v564 = vunpack.c.l.b16 %v549
      %v565 = vunpack.c.l.b16 %v550
      %v566 = vpack.c.b16 %v563, %v562
      %v567 = vpack.c.b16 %v565, %v564
      %v571 = vsel %vm386, %v545, 0
      %v574 = vsel %vm386, %v546, 0
      %576 = vmatprep.subr.bf16.mxu0 0
      %577 = vmatpush1.bf16.msra.mxu0 0
      %578 = vmatprep.subr.bf16.mxu0 0
      %579 = vmatpush1.bf16.msra.mxu0 0
      %580 = vmatprep.subr.bf16.mxu0 0
      %581 = vmatpush1.bf16.msra.mxu0 0
      %582 = vmatprep.subr.bf16.mxu0 0
      %583 = vmatpush1.bf16.msra.mxu0 0
      %584 = vmatprep.subr.bf16.mxu0 0
      %585 = vmatpush1.bf16.msra.mxu0 0
      %586 = vmatprep.subr.bf16.mxu0 0
      %587 = vmatpush1.bf16.msra.mxu0 0
      %588 = vmatprep.subr.bf16.mxu0 0
      %589 = vmatpush1.bf16.msra.mxu0 %v567
      %590 = vmatprep.subr.bf16.mxu0 0
      %591 = vmatpush1.bf16.msra.mxu0 %v566
      %592 = vmatprep.subr.bf16.mxu0 0
      %593 = vmatpush2.bf16.msra.mxu0 0
      %594 = vmatprep.subr.bf16.mxu0 0
      %595 = vmatpush2.bf16.msra.mxu0 0
      %596 = vmatprep.subr.bf16.mxu0 0
      %597 = vmatpush2.bf16.msra.mxu0 0
      %598 = vmatprep.subr.bf16.mxu0 0
      %599 = vmatpush2.bf16.msra.mxu0 0
      %600 = vmatprep.subr.bf16.mxu0 0
      %601 = vmatpush2.bf16.msra.mxu0 0
      %602 = vmatprep.subr.bf16.mxu0 0
      %603 = vmatpush2.bf16.msra.mxu0 0
      %604 = vmatprep.subr.bf16.mxu0 0
      %605 = vmatpush2.bf16.msra.mxu0 0
      %606 = vmatprep.subr.bf16.mxu0 0
      %607 = vmatpush2.bf16.msra.mxu0 0
      %608 = vmatprep.mubr.bf16.mxu0 0
      %609 = vmatmul.mubr.bf16.gmra.mxu0 %v571
      %v610 = vpop.f32.mrf.mxu0
      %v611 = vadd.f32 %v556, %v610
      %v612 = vpop.f32.mrf.mxu0
      %v613 = vpop.f32.mrf.mxu0
      %v614 = vadd.f32 %v556, %v613
      %v615 = vpop.f32.mrf.mxu0
      %616 = vmatprep.mubr.bf16.mxu0 0
      %617 = vmatmul.mubr.bf16.gmra.mxu0 %v574
      %v618 = vpop.f32.mrf.mxu0
      %v619 = vadd.f32 %v556, %v618
      %v620 = vpop.f32.mrf.mxu0
      %v621 = vpop.f32.mrf.mxu0
      %v622 = vpop.f32.mrf.mxu0
      %623 = vdwg.mxu0
      %vm627 = vcmask 1046528
      %v628 = vrot.slane %v345, 1
      %v629 = vrot.slane %v346, 1
      %v630 = vsel %vm627, %v628, %v629
      %v631 = vrot.slane %v347, 1
      %v632 = vsel %vm627, %v629, %v631
      %v636 = vadd.f32 %v611, %v630
      %v637 = vadd.f32 %v614, %v632
      %v638 = vadd.f32 %v619, %v631
      %639 = vst.msk [vmem:[%s339] sm:$0xff] %vm386, %v636
      %640 = vst.msk [vmem:[%s339 + $0x8] sm:$0xff] %vm386, %v637
      %vm641 = vcmask 260096
      %642 = vst.msk [vmem:[%s339 + $0x10] sm:$0x7f] %vm641, %v638
      %v643 = vld [vmem:[%s4] sm:$0xf]
      %v644 = vld [vmem:[%s4 + $0x4] sm:$0xf]
      %v645 = vld [vmem:[%s4 + $0x8] sm:$0xf]
      %v646 = vld [vmem:[%s4 + $0xc] sm:$0xf]
      %v647 = vld [vmem:[%s5] sm:$0x1]
      %v649 = vlaneseq
      %v650 = vshrl.u32 %v649, 7
      %v651 = vsub.s32 0, %v650
      %v652 = vrot.slane %v647, %v651
      %v654 = vshrl.u32 %v546, 16
      %v656 = vrot.slane %v654, 1
      %v657 = vshll.u32 %v546, 16
      %v659 = vrot.slane %v657, 2
      %v660 = vor.u32 %v656, %v659
      %v665 = vunpack.c.l.b16 %v643
      %v666 = vunpack.c.l.b16 %v644
      %v667 = vunpack.c.l.b16 %v645
      %v668 = vunpack.c.l.b16 %v646
      %v669 = vpack.c.b16 %v666, %v665
      %v670 = vpack.c.b16 %v668, %v667
      %v674 = vsel %vm386, %v660, 0
      %676 = vmatprep.subr.bf16.mxu0 0
      %677 = vmatpush1.bf16.msra.mxu0 0
      %678 = vmatprep.subr.bf16.mxu0 0
      %679 = vmatpush1.bf16.msra.mxu0 0
      %680 = vmatprep.subr.bf16.mxu0 0
      %681 = vmatpush1.bf16.msra.mxu0 0
      %682 = vmatprep.subr.bf16.mxu0 0
      %683 = vmatpush1.bf16.msra.mxu0 0
      %684 = vmatprep.subr.bf16.mxu0 0
      %685 = vmatpush1.bf16.msra.mxu0 0
      %686 = vmatprep.subr.bf16.mxu0 0
      %687 = vmatpush1.bf16.msra.mxu0 0
      %688 = vmatprep.subr.bf16.mxu0 0
      %689 = vmatpush1.bf16.msra.mxu0 %v670
      %690 = vmatprep.subr.bf16.mxu0 0
      %691 = vmatpush1.bf16.msra.mxu0 %v669
      %692 = vmatprep.subr.bf16.mxu0 0
      %693 = vmatpush2.bf16.msra.mxu0 0
      %694 = vmatprep.subr.bf16.mxu0 0
      %695 = vmatpush2.bf16.msra.mxu0 0
      %696 = vmatprep.subr.bf16.mxu0 0
      %697 = vmatpush2.bf16.msra.mxu0 0
      %698 = vmatprep.subr.bf16.mxu0 0
      %699 = vmatpush2.bf16.msra.mxu0 0
      %700 = vmatprep.subr.bf16.mxu0 0
      %701 = vmatpush2.bf16.msra.mxu0 0
      %702 = vmatprep.subr.bf16.mxu0 0
      %703 = vmatpush2.bf16.msra.mxu0 0
      %704 = vmatprep.subr.bf16.mxu0 0
      %705 = vmatpush2.bf16.msra.mxu0 0
      %706 = vmatprep.subr.bf16.mxu0 0
      %707 = vmatpush2.bf16.msra.mxu0 0
      %708 = vmatprep.mubr.bf16.mxu0 0
      %709 = vmatmul.mubr.bf16.gmra.mxu0 %v674
      %v710 = vpop.f32.mrf.mxu0
      %v711 = vadd.f32 %v652, %v710
      %v712 = vpop.f32.mrf.mxu0
      %v713 = vpop.f32.mrf.mxu0
      %v714 = vpop.f32.mrf.mxu0
      %715 = vdwg.mxu0
      %vm716 = vcmask 519168
      %717 = vst.msk [vmem:[%s343] sm:$0xf] %vm716, %v711
      %p718 = scmp.lt.s32.totalorder %s21, 3
      %s719 = scalar_select %p718, %s21, 3
      %s720 = smul.addr %s719, 3
      %s721 = smul.addr %s720, 8
      %s722 = scalar_lea.vmem %s8, %s721
      %p723 = scmp.lt.s32.totalorder %s21, 3
      %s724 = scalar_select %p723, %s21, 3
      %s725 = smul.addr %s724, 4
      %s726 = scalar_lea.vmem %s9, %s725
      // Predicated region
      $region53: #{_lambda_.10} parent=51 // pred_check
        %p727 = pneg %p212
      $region54: #{_lambda_.10} parent=51 // pred_check_branch
        %729 = sbr.rel (%p727) target = $region56
      $region55: #{_lambda_.10} parent=51 // pred_region
        _
      $region56: #{_lambda_.10} parent=51 // pred_fallthru
        _
      // Predicated region
      $region57: #{_lambda_.10} parent=51 // pred_check
        %p730 = pneg %p238
      $region58: #{_lambda_.10} parent=51 // pred_check_branch
        %732 = sbr.rel (%p730) target = $region60
      $region59: #{_lambda_.10} parent=51 // pred_region
        _
      $region60: #{_lambda_.10} parent=51 // pred_fallthru
        _
    $region52: #{_lambda_.10} parent=5 // pred_fallthru
      _
    %p733 = scmp.le.s32.totalorder 2, %s16
    // Predicated region
    $region61: #{_lambda_.10} parent=5 // pred_check
      %p734 = pneg %p733
    $region62: #{_lambda_.10} parent=5 // pred_check_branch
      %736 = sbr.rel (%p734) target = $region64
    $region63: #{_lambda_.10} parent=5 // pred_region
      %s737 = ssub.s32 %s16, 2
      // Predicated region
      $region65: #{_lambda_.10} parent=63 // pred_check
        %p738 = pneg %p218
      $region66: #{_lambda_.10} parent=63 // pred_check_branch
        %740 = sbr.rel (%p738) target = $region68
      $region67: #{_lambda_.10} parent=63 // pred_region
        %p741 = scmp.lt.s32.totalorder %s22, 3
        %s742 = scalar_select %p741, %s22, 3
        %s743 = smul.addr %s742, 3
        %s744 = smul.addr %s743, 8
        %s745 = scalar_lea.vmem %s8, %s744
      $region68: #{_lambda_.10} parent=63 // pred_fallthru
        _
      // Predicated region
      $region69: #{_lambda_.10} parent=63 // pred_check
        %p746 = pneg %p244
      $region70: #{_lambda_.10} parent=63 // pred_check_branch
        %748 = sbr.rel (%p746) target = $region72
      $region71: #{_lambda_.10} parent=63 // pred_region
        %p749 = scmp.lt.s32.totalorder %s22, 3
        %s750 = scalar_select %p749, %s22, 3
        %s751 = smul.addr %s750, 4
        %s752 = scalar_lea.vmem %s9, %s751
      $region72: #{_lambda_.10} parent=63 // pred_fallthru
        _
    $region64: #{_lambda_.10} parent=5 // pred_fallthru
      _
  $region6: #{_lambda_.10} parent=0 // loop_footer
    %s20 = sadd.s32 1, %s16
  $region7: #{_lambda_.10} parent=0 // loop_footer_branch
    %15 = sbr.rel target = $region3
  $region8: #{_lambda_.10} parent=0 // loop_exit
    _

// kernel: _lambda_.11
$region0: #{_lambda_.11}
  #allocation0 [shape = 'u32[]', space=smem, size = 0x4, offset = 0x4, fixed_abs, tag = 'smem constant byte address 0x4 - core index']
  #allocation1 [shape = 'u32[144,128]{1,0:T(1,128)}', space=vmem, size = 0x12000, scoped, tag = 'internal scratch']
  %s0 = inlined_call_operand.vmem [shape: f32[8,12,32], index: 0, kind: input, shape index: {}]
  %s1 = inlined_call_operand.vmem [shape: bf16[32,64], index: 1, kind: input, shape index: {}]
  %s2 = inlined_call_operand.vmem [shape: bf16[32,64], index: 2, kind: input, shape index: {}]
  %s3 = inlined_call_operand.vmem [shape: f32[1,64], index: 3, kind: input, shape index: {}]
  %s4 = inlined_call_operand.vmem [shape: bf16[32,64], index: 4, kind: input, shape index: {}]
  %s5 = inlined_call_operand.vmem [shape: f32[1,64], index: 5, kind: input, shape index: {}]
  %s6 = inlined_call_operand.vmem [shape: bf16[32,32], index: 6, kind: input, shape index: {}]
  %s7 = inlined_call_operand.vmem [shape: f32[1,32], index: 7, kind: input, shape index: {}]
  %s8 = inlined_call_operand.vmem [shape: f32[8,11,32], index: 8, kind: output, shape index: {0}]
  %s9 = inlined_call_operand.vmem [shape: f32[8,2,64], index: 9, kind: output, shape index: {1}]
  %10 = xla_tuple %s8, %s9
  %s11 = sld [smem:[#allocation0]]
  $region73: #{_lambda_.11} parent=0
    _
  %s13 = ssub.s32 1, %s11
  %s14 = scalar_select 0, %s13, %s11
  loop: start=0, step=1, limit=10
  $region2: #{_lambda_.11} parent=0 // loop_pre_header
    _
  $region3: #{_lambda_.11} parent=0 // loop_header
    %s16 = sphi 0, %s20
    %p17 = scmp.ge.s32.totalorder %s16, 10
    %s26 = sphi 0, %s28
    %s29 = sphi 0, %s26
    %s30 = sphi 0, %s29
    %s46 = sphi 0, %s30
    %s50 = sphi 0, %s50
    %s52 = sphi 0, %s50
    %s53 = sphi 0, %s52
    %s67 = sphi 0, %s53
    %s71 = sphi 0, %s71
    %s73 = sphi 0, %s71
    %s74 = sphi 0, %s73
    %s88 = sphi 0, %s74
    %s92 = sphi 0, %s92
    %s94 = sphi 0, %s92
    %s95 = sphi 0, %s94
    %s109 = sphi 0, %s95
    %s113 = sphi 0, %s113
    %s115 = sphi 0, %s113
    %s116 = sphi 0, %s115
    %s130 = sphi 0, %s116
    %s134 = sphi 0, %s134
    %s136 = sphi 0, %s134
    %s137 = sphi 0, %s136
    %s151 = sphi 0, %s137
    %s155 = sphi 0, %s155
    %s157 = sphi 0, %s155
    %s158 = sphi 0, %s157
    %s172 = sphi 0, %s158
    %s176 = sphi 0, %s176
    %s178 = sphi 0, %s176
    %s179 = sphi 0, %s178
    %s193 = sphi 0, %s179
    %s199 = sphi 0, %s201
    %s202 = sphi 0, %s199
    %s203 = sphi 0, %s202
    %s219 = sphi 0, %s203
    %s225 = sphi 0, %s227
    %s228 = sphi 0, %s225
    %s229 = sphi 0, %s228
    %s245 = sphi 0, %s229
  $region4: #{_lambda_.11} parent=0 // loop_header_branch
    %19 = sbr.rel (%p17) target = $region8
  $region5: #{_lambda_.11} parent=0 // loop_body
    %s21 = ssub.s32 %s16, 1
    %s22 = ssub.s32 %s16, 2
    %s23 = sadd.s32 %s16, 1
    %s24 = ssub.s32 %s16, %s23
    %p25 = scmp.eq.s32.totalorder %s24, 0
    %s27 = sadd.s32 %s26, 1
    %s28 = scalar_select %p25, %s26, %s27
    %p31 = pneg %p25
    %p32 = scmp.eq.s32.totalorder %s16, 7
    %p33 = por %p31, %p32
    %p34 = scmp.ne.s32.totalorder %s26, %s29
    %p35 = scmp.eq.s32.totalorder %s16, 0
    %p36 = por %p34, %p35
    %p37 = scmp.ne.s32.totalorder %s26, %s29
    %p38 = scmp.eq.s32.totalorder %s21, 7
    %p39 = por %p37, %p38
    %p40 = scmp.ne.s32.totalorder %s29, %s30
    %p41 = scmp.eq.s32.totalorder %s21, 0
    %p42 = por %p40, %p41
    %p43 = scmp.ne.s32.totalorder %s29, %s30
    %p44 = scmp.eq.s32.totalorder %s22, 7
    %p45 = por %p43, %p44
    %p47 = scmp.ne.s32.totalorder %s30, %s46
    %p48 = scmp.eq.s32.totalorder %s22, 0
    %p49 = por %p47, %p48
    %s51 = sadd.s32 %s50, 1
    %p54 = scmp.eq.s32.totalorder %s16, 7
    %p55 = scmp.ne.s32.totalorder %s50, %s52
    %p56 = scmp.eq.s32.totalorder %s16, 0
    %p57 = por %p55, %p56
    %p58 = scmp.ne.s32.totalorder %s50, %s52
    %p59 = scmp.eq.s32.totalorder %s21, 7
    %p60 = por %p58, %p59
    %p61 = scmp.ne.s32.totalorder %s52, %s53
    %p62 = scmp.eq.s32.totalorder %s21, 0
    %p63 = por %p61, %p62
    %p64 = scmp.ne.s32.totalorder %s52, %s53
    %p65 = scmp.eq.s32.totalorder %s22, 7
    %p66 = por %p64, %p65
    %p68 = scmp.ne.s32.totalorder %s53, %s67
    %p69 = scmp.eq.s32.totalorder %s22, 0
    %p70 = por %p68, %p69
    %s72 = sadd.s32 %s71, 1
    %p75 = scmp.eq.s32.totalorder %s16, 7
    %p76 = scmp.ne.s32.totalorder %s71, %s73
    %p77 = scmp.eq.s32.totalorder %s16, 0
    %p78 = por %p76, %p77
    %p79 = scmp.ne.s32.totalorder %s71, %s73
    %p80 = scmp.eq.s32.totalorder %s21, 7
    %p81 = por %p79, %p80
    %p82 = scmp.ne.s32.totalorder %s73, %s74
    %p83 = scmp.eq.s32.totalorder %s21, 0
    %p84 = por %p82, %p83
    %p85 = scmp.ne.s32.totalorder %s73, %s74
    %p86 = scmp.eq.s32.totalorder %s22, 7
    %p87 = por %p85, %p86
    %p89 = scmp.ne.s32.totalorder %s74, %s88
    %p90 = scmp.eq.s32.totalorder %s22, 0
    %p91 = por %p89, %p90
    %s93 = sadd.s32 %s92, 1
    %p96 = scmp.eq.s32.totalorder %s16, 7
    %p97 = scmp.ne.s32.totalorder %s92, %s94
    %p98 = scmp.eq.s32.totalorder %s16, 0
    %p99 = por %p97, %p98
    %p100 = scmp.ne.s32.totalorder %s92, %s94
    %p101 = scmp.eq.s32.totalorder %s21, 7
    %p102 = por %p100, %p101
    %p103 = scmp.ne.s32.totalorder %s94, %s95
    %p104 = scmp.eq.s32.totalorder %s21, 0
    %p105 = por %p103, %p104
    %p106 = scmp.ne.s32.totalorder %s94, %s95
    %p107 = scmp.eq.s32.totalorder %s22, 7
    %p108 = por %p106, %p107
    %p110 = scmp.ne.s32.totalorder %s95, %s109
    %p111 = scmp.eq.s32.totalorder %s22, 0
    %p112 = por %p110, %p111
    %s114 = sadd.s32 %s113, 1
    %p117 = scmp.eq.s32.totalorder %s16, 7
    %p118 = scmp.ne.s32.totalorder %s113, %s115
    %p119 = scmp.eq.s32.totalorder %s16, 0
    %p120 = por %p118, %p119
    %p121 = scmp.ne.s32.totalorder %s113, %s115
    %p122 = scmp.eq.s32.totalorder %s21, 7
    %p123 = por %p121, %p122
    %p124 = scmp.ne.s32.totalorder %s115, %s116
    %p125 = scmp.eq.s32.totalorder %s21, 0
    %p126 = por %p124, %p125
    %p127 = scmp.ne.s32.totalorder %s115, %s116
    %p128 = scmp.eq.s32.totalorder %s22, 7
    %p129 = por %p127, %p128
    %p131 = scmp.ne.s32.totalorder %s116, %s130
    %p132 = scmp.eq.s32.totalorder %s22, 0
    %p133 = por %p131, %p132
    %s135 = sadd.s32 %s134, 1
    %p138 = scmp.eq.s32.totalorder %s16, 7
    %p139 = scmp.ne.s32.totalorder %s134, %s136
    %p140 = scmp.eq.s32.totalorder %s16, 0
    %p141 = por %p139, %p140
    %p142 = scmp.ne.s32.totalorder %s134, %s136
    %p143 = scmp.eq.s32.totalorder %s21, 7
    %p144 = por %p142, %p143
    %p145 = scmp.ne.s32.totalorder %s136, %s137
    %p146 = scmp.eq.s32.totalorder %s21, 0
    %p147 = por %p145, %p146
    %p148 = scmp.ne.s32.totalorder %s136, %s137
    %p149 = scmp.eq.s32.totalorder %s22, 7
    %p150 = por %p148, %p149
    %p152 = scmp.ne.s32.totalorder %s137, %s151
    %p153 = scmp.eq.s32.totalorder %s22, 0
    %p154 = por %p152, %p153
    %s156 = sadd.s32 %s155, 1
    %p159 = scmp.eq.s32.totalorder %s16, 7
    %p160 = scmp.ne.s32.totalorder %s155, %s157
    %p161 = scmp.eq.s32.totalorder %s16, 0
    %p162 = por %p160, %p161
    %p163 = scmp.ne.s32.totalorder %s155, %s157
    %p164 = scmp.eq.s32.totalorder %s21, 7
    %p165 = por %p163, %p164
    %p166 = scmp.ne.s32.totalorder %s157, %s158
    %p167 = scmp.eq.s32.totalorder %s21, 0
    %p168 = por %p166, %p167
    %p169 = scmp.ne.s32.totalorder %s157, %s158
    %p170 = scmp.eq.s32.totalorder %s22, 7
    %p171 = por %p169, %p170
    %p173 = scmp.ne.s32.totalorder %s158, %s172
    %p174 = scmp.eq.s32.totalorder %s22, 0
    %p175 = por %p173, %p174
    %s177 = sadd.s32 %s176, 1
    %p180 = scmp.eq.s32.totalorder %s16, 7
    %p181 = scmp.ne.s32.totalorder %s176, %s178
    %p182 = scmp.eq.s32.totalorder %s16, 0
    %p183 = por %p181, %p182
    %p184 = scmp.ne.s32.totalorder %s176, %s178
    %p185 = scmp.eq.s32.totalorder %s21, 7
    %p186 = por %p184, %p185
    %p187 = scmp.ne.s32.totalorder %s178, %s179
    %p188 = scmp.eq.s32.totalorder %s21, 0
    %p189 = por %p187, %p188
    %p190 = scmp.ne.s32.totalorder %s178, %s179
    %p191 = scmp.eq.s32.totalorder %s22, 7
    %p192 = por %p190, %p191
    %p194 = scmp.ne.s32.totalorder %s179, %s193
    %p195 = scmp.eq.s32.totalorder %s22, 0
    %p196 = por %p194, %p195
    %s197 = ssub.s32 %s16, %s23
    %p198 = scmp.eq.s32.totalorder %s197, 0
    %s200 = sadd.s32 %s199, 1
    %s201 = scalar_select %p198, %s199, %s200
    %p204 = pneg %p198
    %p205 = scmp.eq.s32.totalorder %s16, 7
    %p206 = por %p204, %p205
    %p207 = scmp.ne.s32.totalorder %s199, %s202
    %p208 = scmp.eq.s32.totalorder %s16, 0
    %p209 = por %p207, %p208
    %p210 = scmp.ne.s32.totalorder %s199, %s202
    %p211 = scmp.eq.s32.totalorder %s21, 7
    %p212 = por %p210, %p211
    %p213 = scmp.ne.s32.totalorder %s202, %s203
    %p214 = scmp.eq.s32.totalorder %s21, 0
    %p215 = por %p213, %p214
    %p216 = scmp.ne.s32.totalorder %s202, %s203
    %p217 = scmp.eq.s32.totalorder %s22, 7
    %p218 = por %p216, %p217
    %p220 = scmp.ne.s32.totalorder %s203, %s219
    %p221 = scmp.eq.s32.totalorder %s22, 0
    %p222 = por %p220, %p221
    %s223 = ssub.s32 %s16, %s23
    %p224 = scmp.eq.s32.totalorder %s223, 0
    %s226 = sadd.s32 %s225, 1
    %s227 = scalar_select %p224, %s225, %s226
    %p230 = pneg %p224
    %p231 = scmp.eq.s32.totalorder %s16, 7
    %p232 = por %p230, %p231
    %p233 = scmp.ne.s32.totalorder %s225, %s228
    %p234 = scmp.eq.s32.totalorder %s16, 0
    %p235 = por %p233, %p234
    %p236 = scmp.ne.s32.totalorder %s225, %s228
    %p237 = scmp.eq.s32.totalorder %s21, 7
    %p238 = por %p236, %p237
    %p239 = scmp.ne.s32.totalorder %s228, %s229
    %p240 = scmp.eq.s32.totalorder %s21, 0
    %p241 = por %p239, %p240
    %p242 = scmp.ne.s32.totalorder %s228, %s229
    %p243 = scmp.eq.s32.totalorder %s22, 7
    %p244 = por %p242, %p243
    %p246 = scmp.ne.s32.totalorder %s229, %s245
    %p247 = scmp.eq.s32.totalorder %s22, 0
    %p248 = por %p246, %p247
    %p249 = scmp.le.s32.totalorder 1, %s16
    %p250 = scmp.lt.s32.totalorder %s16, 9
    %p251 = pnand %p249, %p250
    %p252 = pneg %p251
    // Predicated region
    $region9: #{_lambda_.11} parent=5 // pred_check
      _
    $region10: #{_lambda_.11} parent=5 // pred_check_branch
      %254 = sbr.rel (%p251) target = $region12
    $region11: #{_lambda_.11} parent=5 // pred_region
      %s255 = ssub.s32 %s16, 1
      // Predicated region
      $region13: #{_lambda_.11} parent=11 // pred_check
        %p256 = pneg %p63
      $region14: #{_lambda_.11} parent=11 // pred_check_branch
        %258 = sbr.rel (%p256) target = $region16
      $region15: #{_lambda_.11} parent=11 // pred_region
        _
      $region16: #{_lambda_.11} parent=11 // pred_fallthru
        _
      // Predicated region
      $region17: #{_lambda_.11} parent=11 // pred_check
        %p259 = pneg %p84
      $region18: #{_lambda_.11} parent=11 // pred_check_branch
        %261 = sbr.rel (%p259) target = $region20
      $region19: #{_lambda_.11} parent=11 // pred_region
        _
      $region20: #{_lambda_.11} parent=11 // pred_fallthru
        _
      // Predicated region
      $region21: #{_lambda_.11} parent=11 // pred_check
        %p262 = pneg %p105
      $region22: #{_lambda_.11} parent=11 // pred_check_branch
        %264 = sbr.rel (%p262) target = $region24
      $region23: #{_lambda_.11} parent=11 // pred_region
        _
      $region24: #{_lambda_.11} parent=11 // pred_fallthru
        _
      // Predicated region
      $region25: #{_lambda_.11} parent=11 // pred_check
        %p265 = pneg %p126
      $region26: #{_lambda_.11} parent=11 // pred_check_branch
        %267 = sbr.rel (%p265) target = $region28
      $region27: #{_lambda_.11} parent=11 // pred_region
        _
      $region28: #{_lambda_.11} parent=11 // pred_fallthru
        _
      // Predicated region
      $region29: #{_lambda_.11} parent=11 // pred_check
        %p268 = pneg %p147
      $region30: #{_lambda_.11} parent=11 // pred_check_branch
        %270 = sbr.rel (%p268) target = $region32
      $region31: #{_lambda_.11} parent=11 // pred_region
        _
      $region32: #{_lambda_.11} parent=11 // pred_fallthru
        _
      // Predicated region
      $region33: #{_lambda_.11} parent=11 // pred_check
        %p271 = pneg %p168
      $region34: #{_lambda_.11} parent=11 // pred_check_branch
        %273 = sbr.rel (%p271) target = $region36
      $region35: #{_lambda_.11} parent=11 // pred_region
        _
      $region36: #{_lambda_.11} parent=11 // pred_fallthru
        _
      // Predicated region
      $region37: #{_lambda_.11} parent=11 // pred_check
        %p274 = pneg %p189
      $region38: #{_lambda_.11} parent=11 // pred_check_branch
        %276 = sbr.rel (%p274) target = $region40
      $region39: #{_lambda_.11} parent=11 // pred_region
        _
      $region40: #{_lambda_.11} parent=11 // pred_fallthru
        _
    $region12: #{_lambda_.11} parent=5 // pred_fallthru
      _
    %p277 = scmp.lt.s32.totalorder %s16, 8
    // Predicated region
    $region41: #{_lambda_.11} parent=5 // pred_check
      %p278 = pneg %p277
    $region42: #{_lambda_.11} parent=5 // pred_check_branch
      %280 = sbr.rel (%p278) target = $region44
    $region43: #{_lambda_.11} parent=5 // pred_region
      // Predicated region
      $region45: #{_lambda_.11} parent=43 // pred_check
        %p281 = pneg %p36
      $region46: #{_lambda_.11} parent=43 // pred_check_branch
        %283 = sbr.rel (%p281) target = $region48
      $region47: #{_lambda_.11} parent=43 // pred_region
        %p284 = scmp.lt.s32.totalorder %s16, 7
        %s285 = scalar_select %p284, %s16, 7
        %s286 = smul.addr %s285, 2
        %s287 = smul.addr %s286, 8
        %s288 = scalar_lea.vmem %s0, %s287
      $region48: #{_lambda_.11} parent=43 // pred_fallthru
        _
    $region44: #{_lambda_.11} parent=5 // pred_fallthru
      _
    %p289 = scmp.le.s32.totalorder 1, %s16
    %p290 = scmp.lt.s32.totalorder %s16, 9
    %p291 = pnand %p289, %p290
    %p292 = pneg %p291
    // Predicated region
    $region49: #{_lambda_.11} parent=5 // pred_check
      _
    $region50: #{_lambda_.11} parent=5 // pred_check_branch
      %294 = sbr.rel (%p291) target = $region52
    $region51: #{_lambda_.11} parent=5 // pred_region
      %s295 = ssub.s32 %s16, 1
      %p296 = scmp.lt.s32.totalorder %s21, 7
      %s297 = scalar_select %p296, %s21, 7
      %s298 = smul.addr %s297, 2
      %s299 = smul.addr %s298, 8
      %s300 = scalar_lea.vmem %s0, %s299
      %p301 = pneg %p42
      %p302 = pneg %p39
      %p303 = pneg %p63
      %p304 = pneg %p60
      %p305 = pneg %p84
      %p306 = pneg %p81
      %p307 = pneg %p105
      %p308 = pneg %p102
      %p309 = pneg %p126
      %p310 = pneg %p123
      %p311 = pneg %p147
      %p312 = pneg %p144
      %p313 = pneg %p168
      %p314 = pneg %p165
      %p315 = pneg %p189
      %p316 = pneg %p186
      %p317 = pneg %p215
      %p318 = pneg %p212
      %p319 = scmp.lt.s32.totalorder %s21, 7
      %s320 = scalar_select %p319, %s21, 7
      %s321 = smul.addr %s320, 2
      %s322 = smul.addr %s321, 8
      %s323 = scalar_lea.vmem %s8, %s322
      %p324 = pneg %p241
      %p325 = pneg %p238
      %p326 = scmp.lt.s32.totalorder %s21, 7
      %s327 = scalar_select %p326, %s21, 7
      %s328 = smul.addr %s327, 2
      %s329 = scalar_lea.vmem %s9, %s328
      %p330 = scmp.lt.s32.totalorder %s21, 7
      %s331 = scalar_select %p330, %s21, 7
      %s332 = smul.addr %s331, 2
      %s333 = smul.addr %s332, 8
      %s334 = scalar_lea.vmem %s0, %s333
      %p335 = scmp.lt.s32.totalorder %s21, 7
      %s336 = scalar_select %p335, %s21, 7
      %s337 = smul.addr %s336, 2
      %s338 = smul.addr %s337, 8
      %s339 = scalar_lea.vmem %s8, %s338
      %p340 = scmp.lt.s32.totalorder %s21, 7
      %s341 = scalar_select %p340, %s21, 7
      %s342 = smul.addr %s341, 2
      %s343 = scalar_lea.vmem %s9, %s342
      %v345 = vld [vmem:[%s334] sm:$0xff]
      %v346 = vld [vmem:[%s334 + $0x8] sm:$0xf]
      %v347 = vpack.c.bf16 %v346, %v345
      %v348 = vld [vmem:[%s1] sm:$0xf]
      %v349 = vld [vmem:[%s1 + $0x4] sm:$0xf]
      %v350 = vld [vmem:[%s1 + $0x8] sm:$0xf]
      %v351 = vld [vmem:[%s1 + $0xc] sm:$0xf]
      %v352 = vld [vmem:[%s2] sm:$0xf]
      %v353 = vld [vmem:[%s2 + $0x4] sm:$0xf]
      %v354 = vld [vmem:[%s2 + $0x8] sm:$0xf]
      %v355 = vld [vmem:[%s2 + $0xc] sm:$0xf]
      %v357 = vshrl.u32 %v347, 16
      %v359 = vshll.u32 %v347, 16
      %v361 = vrot.slane %v359, 1
      %v362 = vor.u32 %v357, %v361
      %v367 = vunpack.c.l.b16 %v352
      %v368 = vunpack.c.l.b16 %v353
      %v369 = vunpack.c.l.b16 %v354
      %v370 = vunpack.c.l.b16 %v355
      %v371 = vpack.c.b16 %v368, %v367
      %v372 = vpack.c.b16 %v370, %v369
      %vm375 = vcmask 261120
      %v377 = vsel %vm375, %v362, 0
      %379 = vmatprep.subr.bf16.mxu0 0
      %380 = vmatpush1.bf16.msra.mxu0 0
      %381 = vmatprep.subr.bf16.mxu0 0
      %382 = vmatpush1.bf16.msra.mxu0 0
      %383 = vmatprep.subr.bf16.mxu0 0
      %384 = vmatpush1.bf16.msra.mxu0 0
      %385 = vmatprep.subr.bf16.mxu0 0
      %386 = vmatpush1.bf16.msra.mxu0 0
      %387 = vmatprep.subr.bf16.mxu0 0
      %388 = vmatpush1.bf16.msra.mxu0 0
      %389 = vmatprep.subr.bf16.mxu0 0
      %390 = vmatpush1.bf16.msra.mxu0 0
      %391 = vmatprep.subr.bf16.mxu0 0
      %392 = vmatpush1.bf16.msra.mxu0 %v372
      %393 = vmatprep.subr.bf16.mxu0 0
      %394 = vmatpush1.bf16.msra.mxu0 %v371
      %395 = vmatprep.subr.bf16.mxu0 0
      %396 = vmatpush2.bf16.msra.mxu0 0
      %397 = vmatprep.subr.bf16.mxu0 0
      %398 = vmatpush2.bf16.msra.mxu0 0
      %399 = vmatprep.subr.bf16.mxu0 0
      %400 = vmatpush2.bf16.msra.mxu0 0
      %401 = vmatprep.subr.bf16.mxu0 0
      %402 = vmatpush2.bf16.msra.mxu0 0
      %403 = vmatprep.subr.bf16.mxu0 0
      %404 = vmatpush2.bf16.msra.mxu0 0
      %405 = vmatprep.subr.bf16.mxu0 0
      %406 = vmatpush2.bf16.msra.mxu0 0
      %407 = vmatprep.subr.bf16.mxu0 0
      %408 = vmatpush2.bf16.msra.mxu0 0
      %409 = vmatprep.subr.bf16.mxu0 0
      %410 = vmatpush2.bf16.msra.mxu0 0
      %411 = vmatprep.mubr.bf16.mxu0 0
      %412 = vmatmul.mubr.bf16.gmra.mxu0 %v377
      %v413 = vpop.f32.mrf.mxu0
      %v414 = vadd.f32 0.0, %v413
      %v415 = vpop.f32.mrf.mxu0
      %v416 = vpop.f32.mrf.mxu0
      %v417 = vadd.f32 0.0, %v416
      %v418 = vpop.f32.mrf.mxu0
      %419 = vdwg.mxu0
      %v424 = vunpack.c.l.b16 %v348
      %v425 = vunpack.c.l.b16 %v349
      %v426 = vunpack.c.l.b16 %v350
      %v427 = vunpack.c.l.b16 %v351
      %v428 = vpack.c.b16 %v425, %v424
      %v429 = vpack.c.b16 %v427, %v426
      %v432 = vsel %vm375, %v347, 0
      %434 = vmatprep.subr.bf16.mxu0 0
      %435 = vmatpush1.bf16.msra.mxu0 0
      %436 = vmatprep.subr.bf16.mxu0 0
      %437 = vmatpush1.bf16.msra.mxu0 0
      %438 = vmatprep.subr.bf16.mxu0 0
      %439 = vmatpush1.bf16.msra.mxu0 0
      %440 = vmatprep.subr.bf16.mxu0 0
      %441 = vmatpush1.bf16.msra.mxu0 0
      %442 = vmatprep.subr.bf16.mxu0 0
      %443 = vmatpush1.bf16.msra.mxu0 0
      %444 = vmatprep.subr.bf16.mxu0 0
      %445 = vmatpush1.bf16.msra.mxu0 0
      %446 = vmatprep.subr.bf16.mxu0 0
      %447 = vmatpush1.bf16.msra.mxu0 %v429
      %448 = vmatprep.subr.bf16.mxu0 0
      %449 = vmatpush1.bf16.msra.mxu0 %v428
      %450 = vmatprep.subr.bf16.mxu0 0
      %451 = vmatpush2.bf16.msra.mxu0 0
      %452 = vmatprep.subr.bf16.mxu0 0
      %453 = vmatpush2.bf16.msra.mxu0 0
      %454 = vmatprep.subr.bf16.mxu0 0
      %455 = vmatpush2.bf16.msra.mxu0 0
      %456 = vmatprep.subr.bf16.mxu0 0
      %457 = vmatpush2.bf16.msra.mxu0 0
      %458 = vmatprep.subr.bf16.mxu0 0
      %459 = vmatpush2.bf16.msra.mxu0 0
      %460 = vmatprep.subr.bf16.mxu0 0
      %461 = vmatpush2.bf16.msra.mxu0 0
      %462 = vmatprep.subr.bf16.mxu0 0
      %463 = vmatpush2.bf16.msra.mxu0 0
      %464 = vmatprep.subr.bf16.mxu0 0
      %465 = vmatpush2.bf16.msra.mxu0 0
      %466 = vmatprep.mubr.bf16.mxu0 0
      %467 = vmatmul.mubr.bf16.gmra.mxu0 %v432
      %v468 = vpop.f32.mrf.mxu0
      %v469 = vadd.f32 %v414, %v468
      %v470 = vpop.f32.mrf.mxu0
      %v471 = vpop.f32.mrf.mxu0
      %v472 = vadd.f32 %v417, %v471
      %v473 = vpop.f32.mrf.mxu0
      %474 = vdwg.mxu0
      %v475 = vld [vmem:[%s3] sm:$0x1]
      %v477 = vlaneseq
      %v478 = vshrl.u32 %v477, 7
      %v479 = vsub.s32 0, %v478
      %v480 = vrot.slane %v475, %v479
      %v482 = vadd.f32 %v469, %v480
      %v483 = vadd.f32 %v472, %v480
      %v484 = vtanh.pop %v482
      %v485 = vtanh.pop %v483
      %v486 = vmul.f32 %v482, 0.5
      %v487 = vmul.f32 %v483, 0.5
      %v488 = vtanh.pop %v486
      %v489 = vtanh.pop %v487
      %v490 = vmul.f32 %v488, 0.5
      %v491 = vmul.f32 %v489, 0.5
      %v492 = vadd.f32 %v490, 0.5
      %v493 = vadd.f32 %v491, 0.5
      %496 = vrot.lane.b32.xlu0 %v492, 96
      %v497 = vpop.permute.xlu0 %496
      %498 = vrot.lane.b32.xlu0 %v493, 96
      %v499 = vpop.permute.xlu0 %498
      %v502 = vmul.f32 %v484, %v497
      %v503 = vmul.f32 %v485, %v499
      %v504 = vpack.c.bf16 %v503, %v502
      %v505 = vld [vmem:[%s6] sm:$0xf]
      %v506 = vld [vmem:[%s6 + $0x4] sm:$0xf]
      %v507 = vld [vmem:[%s6 + $0x8] sm:$0xf]
      %v508 = vld [vmem:[%s6 + $0xc] sm:$0xf]
      %v509 = vld [vmem:[%s7] sm:$0x1]
      %v511 = vlaneseq
      %v512 = vshrl.u32 %v511, 7
      %v513 = vsub.s32 0, %v512
      %v514 = vrot.slane %v509, %v513
      %v520 = vunpack.c.l.b16 %v505
      %v521 = vunpack.c.l.b16 %v506
      %v522 = vunpack.c.l.b16 %v507
      %v523 = vunpack.c.l.b16 %v508
      %v524 = vpack.c.b16 %v521, %v520
      %v525 = vpack.c.b16 %v523, %v522
      %v529 = vsel %vm375, %v504, 0
      %531 = vmatprep.subr.bf16.mxu0 0
      %532 = vmatpush1.bf16.msra.mxu0 0
      %533 = vmatprep.subr.bf16.mxu0 0
      %534 = vmatpush1.bf16.msra.mxu0 0
      %535 = vmatprep.subr.bf16.mxu0 0
      %536 = vmatpush1.bf16.msra.mxu0 0
      %537 = vmatprep.subr.bf16.mxu0 0
      %538 = vmatpush1.bf16.msra.mxu0 0
      %539 = vmatprep.subr.bf16.mxu0 0
      %540 = vmatpush1.bf16.msra.mxu0 0
      %541 = vmatprep.subr.bf16.mxu0 0
      %542 = vmatpush1.bf16.msra.mxu0 0
      %543 = vmatprep.subr.bf16.mxu0 0
      %544 = vmatpush1.bf16.msra.mxu0 %v525
      %545 = vmatprep.subr.bf16.mxu0 0
      %546 = vmatpush1.bf16.msra.mxu0 %v524
      %547 = vmatprep.subr.bf16.mxu0 0
      %548 = vmatpush2.bf16.msra.mxu0 0
      %549 = vmatprep.subr.bf16.mxu0 0
      %550 = vmatpush2.bf16.msra.mxu0 0
      %551 = vmatprep.subr.bf16.mxu0 0
      %552 = vmatpush2.bf16.msra.mxu0 0
      %553 = vmatprep.subr.bf16.mxu0 0
      %554 = vmatpush2.bf16.msra.mxu0 0
      %555 = vmatprep.subr.bf16.mxu0 0
      %556 = vmatpush2.bf16.msra.mxu0 0
      %557 = vmatprep.subr.bf16.mxu0 0
      %558 = vmatpush2.bf16.msra.mxu0 0
      %559 = vmatprep.subr.bf16.mxu0 0
      %560 = vmatpush2.bf16.msra.mxu0 0
      %561 = vmatprep.subr.bf16.mxu0 0
      %562 = vmatpush2.bf16.msra.mxu0 0
      %563 = vmatprep.mubr.bf16.mxu0 0
      %564 = vmatmul.mubr.bf16.gmra.mxu0 %v529
      %v565 = vpop.f32.mrf.mxu0
      %v566 = vadd.f32 %v514, %v565
      %v567 = vpop.f32.mrf.mxu0
      %v568 = vpop.f32.mrf.mxu0
      %v569 = vadd.f32 %v514, %v568
      %v570 = vpop.f32.mrf.mxu0
      %571 = vdwg.mxu0
      %vm574 = vcmask 1046528
      %v575 = vrot.slane %v345, 1
      %v576 = vrot.slane %v346, 1
      %v577 = vsel %vm574, %v575, %v576
      %v580 = vadd.f32 %v566, %v577
      %v581 = vadd.f32 %v569, %v576
      %582 = vst.msk [vmem:[%s339] sm:$0xff] %vm375, %v580
      %vm583 = vcmask 256000
      %584 = vst.msk [vmem:[%s339 + $0x8] sm:$0x7] %vm583, %v581
      %v585 = vld [vmem:[%s4] sm:$0xf]
      %v586 = vld [vmem:[%s4 + $0x4] sm:$0xf]
      %v587 = vld [vmem:[%s4 + $0x8] sm:$0xf]
      %v588 = vld [vmem:[%s4 + $0xc] sm:$0xf]
      %v589 = vld [vmem:[%s5] sm:$0x1]
      %v591 = vlaneseq
      %v592 = vshrl.u32 %v591, 7
      %v593 = vsub.s32 0, %v592
      %v594 = vrot.slane %v589, %v593
      %v596 = vshrl.u32 %v504, 16
      %v598 = vrot.slane %v596, 4
      %v599 = vshll.u32 %v504, 16
      %v601 = vrot.slane %v599, 5
      %v602 = vor.u32 %v598, %v601
      %v607 = vunpack.c.l.b16 %v585
      %v608 = vunpack.c.l.b16 %v586
      %v609 = vunpack.c.l.b16 %v587
      %v610 = vunpack.c.l.b16 %v588
      %v611 = vpack.c.b16 %v608, %v607
      %v612 = vpack.c.b16 %v610, %v609
      %v616 = vsel %vm375, %v602, 0
      %618 = vmatprep.subr.bf16.mxu0 0
      %619 = vmatpush1.bf16.msra.mxu0 0
      %620 = vmatprep.subr.bf16.mxu0 0
      %621 = vmatpush1.bf16.msra.mxu0 0
      %622 = vmatprep.subr.bf16.mxu0 0
      %623 = vmatpush1.bf16.msra.mxu0 0
      %624 = vmatprep.subr.bf16.mxu0 0
      %625 = vmatpush1.bf16.msra.mxu0 0
      %626 = vmatprep.subr.bf16.mxu0 0
      %627 = vmatpush1.bf16.msra.mxu0 0
      %628 = vmatprep.subr.bf16.mxu0 0
      %629 = vmatpush1.bf16.msra.mxu0 0
      %630 = vmatprep.subr.bf16.mxu0 0
      %631 = vmatpush1.bf16.msra.mxu0 %v612
      %632 = vmatprep.subr.bf16.mxu0 0
      %633 = vmatpush1.bf16.msra.mxu0 %v611
      %634 = vmatprep.subr.bf16.mxu0 0
      %635 = vmatpush2.bf16.msra.mxu0 0
      %636 = vmatprep.subr.bf16.mxu0 0
      %637 = vmatpush2.bf16.msra.mxu0 0
      %638 = vmatprep.subr.bf16.mxu0 0
      %639 = vmatpush2.bf16.msra.mxu0 0
      %640 = vmatprep.subr.bf16.mxu0 0
      %641 = vmatpush2.bf16.msra.mxu0 0
      %642 = vmatprep.subr.bf16.mxu0 0
      %643 = vmatpush2.bf16.msra.mxu0 0
      %644 = vmatprep.subr.bf16.mxu0 0
      %645 = vmatpush2.bf16.msra.mxu0 0
      %646 = vmatprep.subr.bf16.mxu0 0
      %647 = vmatpush2.bf16.msra.mxu0 0
      %648 = vmatprep.subr.bf16.mxu0 0
      %649 = vmatpush2.bf16.msra.mxu0 0
      %650 = vmatprep.mubr.bf16.mxu0 0
      %651 = vmatmul.mubr.bf16.gmra.mxu0 %v616
      %v652 = vpop.f32.mrf.mxu0
      %v653 = vadd.f32 %v594, %v652
      %v654 = vpop.f32.mrf.mxu0
      %v655 = vpop.f32.mrf.mxu0
      %v656 = vpop.f32.mrf.mxu0
      %657 = vdwg.mxu0
      %vm658 = vcmask 517120
      %659 = vst.msk [vmem:[%s343] sm:$0x3] %vm658, %v653
      %p660 = scmp.lt.s32.totalorder %s21, 7
      %s661 = scalar_select %p660, %s21, 7
      %s662 = smul.addr %s661, 2
      %s663 = smul.addr %s662, 8
      %s664 = scalar_lea.vmem %s8, %s663
      %p665 = scmp.lt.s32.totalorder %s21, 7
      %s666 = scalar_select %p665, %s21, 7
      %s667 = smul.addr %s666, 2
      %s668 = scalar_lea.vmem %s9, %s667
      // Predicated region
      $region53: #{_lambda_.11} parent=51 // pred_check
        %p669 = pneg %p212
      $region54: #{_lambda_.11} parent=51 // pred_check_branch
        %671 = sbr.rel (%p669) target = $region56
      $region55: #{_lambda_.11} parent=51 // pred_region
        _
      $region56: #{_lambda_.11} parent=51 // pred_fallthru
        _
      // Predicated region
      $region57: #{_lambda_.11} parent=51 // pred_check
        %p672 = pneg %p238
      $region58: #{_lambda_.11} parent=51 // pred_check_branch
        %674 = sbr.rel (%p672) target = $region60
      $region59: #{_lambda_.11} parent=51 // pred_region
        _
      $region60: #{_lambda_.11} parent=51 // pred_fallthru
        _
    $region52: #{_lambda_.11} parent=5 // pred_fallthru
      _
    %p675 = scmp.le.s32.totalorder 2, %s16
    // Predicated region
    $region61: #{_lambda_.11} parent=5 // pred_check
      %p676 = pneg %p675
    $region62: #{_lambda_.11} parent=5 // pred_check_branch
      %678 = sbr.rel (%p676) target = $region64
    $region63: #{_lambda_.11} parent=5 // pred_region
      %s679 = ssub.s32 %s16, 2
      // Predicated region
      $region65: #{_lambda_.11} parent=63 // pred_check
        %p680 = pneg %p218
      $region66: #{_lambda_.11} parent=63 // pred_check_branch
        %682 = sbr.rel (%p680) target = $region68
      $region67: #{_lambda_.11} parent=63 // pred_region
        %p683 = scmp.lt.s32.totalorder %s22, 7
        %s684 = scalar_select %p683, %s22, 7
        %s685 = smul.addr %s684, 2
        %s686 = smul.addr %s685, 8
        %s687 = scalar_lea.vmem %s8, %s686
      $region68: #{_lambda_.11} parent=63 // pred_fallthru
        _
      // Predicated region
      $region69: #{_lambda_.11} parent=63 // pred_check
        %p688 = pneg %p244
      $region70: #{_lambda_.11} parent=63 // pred_check_branch
        %690 = sbr.rel (%p688) target = $region72
      $region71: #{_lambda_.11} parent=63 // pred_region
        %p691 = scmp.lt.s32.totalorder %s22, 7
        %s692 = scalar_select %p691, %s22, 7
        %s693 = smul.addr %s692, 2
        %s694 = scalar_lea.vmem %s9, %s693
      $region72: #{_lambda_.11} parent=63 // pred_fallthru
        _
    $region64: #{_lambda_.11} parent=5 // pred_fallthru
      _
  $region6: #{_lambda_.11} parent=0 // loop_footer
    %s20 = sadd.s32 1, %s16
  $region7: #{_lambda_.11} parent=0 // loop_footer_branch
    %15 = sbr.rel target = $region3
  $region8: #{_lambda_.11} parent=0 // loop_exit
    _

// kernel: _lambda_.12
$region0: #{_lambda_.12}
  #allocation0 [shape = 'u32[]', space=smem, size = 0x4, offset = 0x4, fixed_abs, tag = 'smem constant byte address 0x4 - core index']
  #allocation1 [shape = 'u32[144,128]{1,0:T(1,128)}', space=vmem, size = 0x12000, scoped, tag = 'internal scratch']
  %s0 = inlined_call_operand.vmem [shape: f32[2,44,32], index: 0, kind: input, shape index: {}]
  %s1 = inlined_call_operand.vmem [shape: bf16[32,64], index: 1, kind: input, shape index: {}]
  %s2 = inlined_call_operand.vmem [shape: bf16[32,64], index: 2, kind: input, shape index: {}]
  %s3 = inlined_call_operand.vmem [shape: f32[1,64], index: 3, kind: input, shape index: {}]
  %s4 = inlined_call_operand.vmem [shape: bf16[32,64], index: 4, kind: input, shape index: {}]
  %s5 = inlined_call_operand.vmem [shape: f32[1,64], index: 5, kind: input, shape index: {}]
  %s6 = inlined_call_operand.vmem [shape: bf16[32,32], index: 6, kind: input, shape index: {}]
  %s7 = inlined_call_operand.vmem [shape: f32[1,32], index: 7, kind: input, shape index: {}]
  %s8 = inlined_call_operand.vmem [shape: f32[2,43,32], index: 8, kind: output, shape index: {0}]
  %s9 = inlined_call_operand.vmem [shape: f32[2,8,64], index: 9, kind: output, shape index: {1}]
  %10 = xla_tuple %s8, %s9
  %s11 = sld [smem:[#allocation0]]
  $region73: #{_lambda_.12} parent=0
    _
  %s13 = ssub.s32 1, %s11
  %s14 = scalar_select 0, %s13, %s11
  loop: start=0, step=1, limit=4
  $region2: #{_lambda_.12} parent=0 // loop_pre_header
    _
  $region3: #{_lambda_.12} parent=0 // loop_header
    %s16 = sphi 0, %s20
    %p17 = scmp.ge.s32.totalorder %s16, 4
    %s26 = sphi 0, %s28
    %s29 = sphi 0, %s26
    %s30 = sphi 0, %s29
    %s46 = sphi 0, %s30
    %s50 = sphi 0, %s50
    %s52 = sphi 0, %s50
    %s53 = sphi 0, %s52
    %s67 = sphi 0, %s53
    %s71 = sphi 0, %s71
    %s73 = sphi 0, %s71
    %s74 = sphi 0, %s73
    %s88 = sphi 0, %s74
    %s92 = sphi 0, %s92
    %s94 = sphi 0, %s92
    %s95 = sphi 0, %s94
    %s109 = sphi 0, %s95
    %s113 = sphi 0, %s113
    %s115 = sphi 0, %s113
    %s116 = sphi 0, %s115
    %s130 = sphi 0, %s116
    %s134 = sphi 0, %s134
    %s136 = sphi 0, %s134
    %s137 = sphi 0, %s136
    %s151 = sphi 0, %s137
    %s155 = sphi 0, %s155
    %s157 = sphi 0, %s155
    %s158 = sphi 0, %s157
    %s172 = sphi 0, %s158
    %s176 = sphi 0, %s176
    %s178 = sphi 0, %s176
    %s179 = sphi 0, %s178
    %s193 = sphi 0, %s179
    %s199 = sphi 0, %s201
    %s202 = sphi 0, %s199
    %s203 = sphi 0, %s202
    %s219 = sphi 0, %s203
    %s225 = sphi 0, %s227
    %s228 = sphi 0, %s225
    %s229 = sphi 0, %s228
    %s245 = sphi 0, %s229
  $region4: #{_lambda_.12} parent=0 // loop_header_branch
    %19 = sbr.rel (%p17) target = $region8
  $region5: #{_lambda_.12} parent=0 // loop_body
    %s21 = ssub.s32 %s16, 1
    %s22 = ssub.s32 %s16, 2
    %s23 = sadd.s32 %s16, 1
    %s24 = ssub.s32 %s16, %s23
    %p25 = scmp.eq.s32.totalorder %s24, 0
    %s27 = sadd.s32 %s26, 1
    %s28 = scalar_select %p25, %s26, %s27
    %p31 = pneg %p25
    %p32 = scmp.eq.s32.totalorder %s16, 1
    %p33 = por %p31, %p32
    %p34 = scmp.ne.s32.totalorder %s26, %s29
    %p35 = scmp.eq.s32.totalorder %s16, 0
    %p36 = por %p34, %p35
    %p37 = scmp.ne.s32.totalorder %s26, %s29
    %p38 = scmp.eq.s32.totalorder %s21, 1
    %p39 = por %p37, %p38
    %p40 = scmp.ne.s32.totalorder %s29, %s30
    %p41 = scmp.eq.s32.totalorder %s21, 0
    %p42 = por %p40, %p41
    %p43 = scmp.ne.s32.totalorder %s29, %s30
    %p44 = scmp.eq.s32.totalorder %s22, 1
    %p45 = por %p43, %p44
    %p47 = scmp.ne.s32.totalorder %s30, %s46
    %p48 = scmp.eq.s32.totalorder %s22, 0
    %p49 = por %p47, %p48
    %s51 = sadd.s32 %s50, 1
    %p54 = scmp.eq.s32.totalorder %s16, 1
    %p55 = scmp.ne.s32.totalorder %s50, %s52
    %p56 = scmp.eq.s32.totalorder %s16, 0
    %p57 = por %p55, %p56
    %p58 = scmp.ne.s32.totalorder %s50, %s52
    %p59 = scmp.eq.s32.totalorder %s21, 1
    %p60 = por %p58, %p59
    %p61 = scmp.ne.s32.totalorder %s52, %s53
    %p62 = scmp.eq.s32.totalorder %s21, 0
    %p63 = por %p61, %p62
    %p64 = scmp.ne.s32.totalorder %s52, %s53
    %p65 = scmp.eq.s32.totalorder %s22, 1
    %p66 = por %p64, %p65
    %p68 = scmp.ne.s32.totalorder %s53, %s67
    %p69 = scmp.eq.s32.totalorder %s22, 0
    %p70 = por %p68, %p69
    %s72 = sadd.s32 %s71, 1
    %p75 = scmp.eq.s32.totalorder %s16, 1
    %p76 = scmp.ne.s32.totalorder %s71, %s73
    %p77 = scmp.eq.s32.totalorder %s16, 0
    %p78 = por %p76, %p77
    %p79 = scmp.ne.s32.totalorder %s71, %s73
    %p80 = scmp.eq.s32.totalorder %s21, 1
    %p81 = por %p79, %p80
    %p82 = scmp.ne.s32.totalorder %s73, %s74
    %p83 = scmp.eq.s32.totalorder %s21, 0
    %p84 = por %p82, %p83
    %p85 = scmp.ne.s32.totalorder %s73, %s74
    %p86 = scmp.eq.s32.totalorder %s22, 1
    %p87 = por %p85, %p86
    %p89 = scmp.ne.s32.totalorder %s74, %s88
    %p90 = scmp.eq.s32.totalorder %s22, 0
    %p91 = por %p89, %p90
    %s93 = sadd.s32 %s92, 1
    %p96 = scmp.eq.s32.totalorder %s16, 1
    %p97 = scmp.ne.s32.totalorder %s92, %s94
    %p98 = scmp.eq.s32.totalorder %s16, 0
    %p99 = por %p97, %p98
    %p100 = scmp.ne.s32.totalorder %s92, %s94
    %p101 = scmp.eq.s32.totalorder %s21, 1
    %p102 = por %p100, %p101
    %p103 = scmp.ne.s32.totalorder %s94, %s95
    %p104 = scmp.eq.s32.totalorder %s21, 0
    %p105 = por %p103, %p104
    %p106 = scmp.ne.s32.totalorder %s94, %s95
    %p107 = scmp.eq.s32.totalorder %s22, 1
    %p108 = por %p106, %p107
    %p110 = scmp.ne.s32.totalorder %s95, %s109
    %p111 = scmp.eq.s32.totalorder %s22, 0
    %p112 = por %p110, %p111
    %s114 = sadd.s32 %s113, 1
    %p117 = scmp.eq.s32.totalorder %s16, 1
    %p118 = scmp.ne.s32.totalorder %s113, %s115
    %p119 = scmp.eq.s32.totalorder %s16, 0
    %p120 = por %p118, %p119
    %p121 = scmp.ne.s32.totalorder %s113, %s115
    %p122 = scmp.eq.s32.totalorder %s21, 1
    %p123 = por %p121, %p122
    %p124 = scmp.ne.s32.totalorder %s115, %s116
    %p125 = scmp.eq.s32.totalorder %s21, 0
    %p126 = por %p124, %p125
    %p127 = scmp.ne.s32.totalorder %s115, %s116
    %p128 = scmp.eq.s32.totalorder %s22, 1
    %p129 = por %p127, %p128
    %p131 = scmp.ne.s32.totalorder %s116, %s130
    %p132 = scmp.eq.s32.totalorder %s22, 0
    %p133 = por %p131, %p132
    %s135 = sadd.s32 %s134, 1
    %p138 = scmp.eq.s32.totalorder %s16, 1
    %p139 = scmp.ne.s32.totalorder %s134, %s136
    %p140 = scmp.eq.s32.totalorder %s16, 0
    %p141 = por %p139, %p140
    %p142 = scmp.ne.s32.totalorder %s134, %s136
    %p143 = scmp.eq.s32.totalorder %s21, 1
    %p144 = por %p142, %p143
    %p145 = scmp.ne.s32.totalorder %s136, %s137
    %p146 = scmp.eq.s32.totalorder %s21, 0
    %p147 = por %p145, %p146
    %p148 = scmp.ne.s32.totalorder %s136, %s137
    %p149 = scmp.eq.s32.totalorder %s22, 1
    %p150 = por %p148, %p149
    %p152 = scmp.ne.s32.totalorder %s137, %s151
    %p153 = scmp.eq.s32.totalorder %s22, 0
    %p154 = por %p152, %p153
    %s156 = sadd.s32 %s155, 1
    %p159 = scmp.eq.s32.totalorder %s16, 1
    %p160 = scmp.ne.s32.totalorder %s155, %s157
    %p161 = scmp.eq.s32.totalorder %s16, 0
    %p162 = por %p160, %p161
    %p163 = scmp.ne.s32.totalorder %s155, %s157
    %p164 = scmp.eq.s32.totalorder %s21, 1
    %p165 = por %p163, %p164
    %p166 = scmp.ne.s32.totalorder %s157, %s158
    %p167 = scmp.eq.s32.totalorder %s21, 0
    %p168 = por %p166, %p167
    %p169 = scmp.ne.s32.totalorder %s157, %s158
    %p170 = scmp.eq.s32.totalorder %s22, 1
    %p171 = por %p169, %p170
    %p173 = scmp.ne.s32.totalorder %s158, %s172
    %p174 = scmp.eq.s32.totalorder %s22, 0
    %p175 = por %p173, %p174
    %s177 = sadd.s32 %s176, 1
    %p180 = scmp.eq.s32.totalorder %s16, 1
    %p181 = scmp.ne.s32.totalorder %s176, %s178
    %p182 = scmp.eq.s32.totalorder %s16, 0
    %p183 = por %p181, %p182
    %p184 = scmp.ne.s32.totalorder %s176, %s178
    %p185 = scmp.eq.s32.totalorder %s21, 1
    %p186 = por %p184, %p185
    %p187 = scmp.ne.s32.totalorder %s178, %s179
    %p188 = scmp.eq.s32.totalorder %s21, 0
    %p189 = por %p187, %p188
    %p190 = scmp.ne.s32.totalorder %s178, %s179
    %p191 = scmp.eq.s32.totalorder %s22, 1
    %p192 = por %p190, %p191
    %p194 = scmp.ne.s32.totalorder %s179, %s193
    %p195 = scmp.eq.s32.totalorder %s22, 0
    %p196 = por %p194, %p195
    %s197 = ssub.s32 %s16, %s23
    %p198 = scmp.eq.s32.totalorder %s197, 0
    %s200 = sadd.s32 %s199, 1
    %s201 = scalar_select %p198, %s199, %s200
    %p204 = pneg %p198
    %p205 = scmp.eq.s32.totalorder %s16, 1
    %p206 = por %p204, %p205
    %p207 = scmp.ne.s32.totalorder %s199, %s202
    %p208 = scmp.eq.s32.totalorder %s16, 0
    %p209 = por %p207, %p208
    %p210 = scmp.ne.s32.totalorder %s199, %s202
    %p211 = scmp.eq.s32.totalorder %s21, 1
    %p212 = por %p210, %p211
    %p213 = scmp.ne.s32.totalorder %s202, %s203
    %p214 = scmp.eq.s32.totalorder %s21, 0
    %p215 = por %p213, %p214
    %p216 = scmp.ne.s32.totalorder %s202, %s203
    %p217 = scmp.eq.s32.totalorder %s22, 1
    %p218 = por %p216, %p217
    %p220 = scmp.ne.s32.totalorder %s203, %s219
    %p221 = scmp.eq.s32.totalorder %s22, 0
    %p222 = por %p220, %p221
    %s223 = ssub.s32 %s16, %s23
    %p224 = scmp.eq.s32.totalorder %s223, 0
    %s226 = sadd.s32 %s225, 1
    %s227 = scalar_select %p224, %s225, %s226
    %p230 = pneg %p224
    %p231 = scmp.eq.s32.totalorder %s16, 1
    %p232 = por %p230, %p231
    %p233 = scmp.ne.s32.totalorder %s225, %s228
    %p234 = scmp.eq.s32.totalorder %s16, 0
    %p235 = por %p233, %p234
    %p236 = scmp.ne.s32.totalorder %s225, %s228
    %p237 = scmp.eq.s32.totalorder %s21, 1
    %p238 = por %p236, %p237
    %p239 = scmp.ne.s32.totalorder %s228, %s229
    %p240 = scmp.eq.s32.totalorder %s21, 0
    %p241 = por %p239, %p240
    %p242 = scmp.ne.s32.totalorder %s228, %s229
    %p243 = scmp.eq.s32.totalorder %s22, 1
    %p244 = por %p242, %p243
    %p246 = scmp.ne.s32.totalorder %s229, %s245
    %p247 = scmp.eq.s32.totalorder %s22, 0
    %p248 = por %p246, %p247
    %p249 = scmp.le.s32.totalorder 1, %s16
    %p250 = scmp.lt.s32.totalorder %s16, 3
    %p251 = pnand %p249, %p250
    %p252 = pneg %p251
    // Predicated region
    $region9: #{_lambda_.12} parent=5 // pred_check
      _
    $region10: #{_lambda_.12} parent=5 // pred_check_branch
      %254 = sbr.rel (%p251) target = $region12
    $region11: #{_lambda_.12} parent=5 // pred_region
      %s255 = ssub.s32 %s16, 1
      // Predicated region
      $region13: #{_lambda_.12} parent=11 // pred_check
        %p256 = pneg %p63
      $region14: #{_lambda_.12} parent=11 // pred_check_branch
        %258 = sbr.rel (%p256) target = $region16
      $region15: #{_lambda_.12} parent=11 // pred_region
        _
      $region16: #{_lambda_.12} parent=11 // pred_fallthru
        _
      // Predicated region
      $region17: #{_lambda_.12} parent=11 // pred_check
        %p259 = pneg %p84
      $region18: #{_lambda_.12} parent=11 // pred_check_branch
        %261 = sbr.rel (%p259) target = $region20
      $region19: #{_lambda_.12} parent=11 // pred_region
        _
      $region20: #{_lambda_.12} parent=11 // pred_fallthru
        _
      // Predicated region
      $region21: #{_lambda_.12} parent=11 // pred_check
        %p262 = pneg %p105
      $region22: #{_lambda_.12} parent=11 // pred_check_branch
        %264 = sbr.rel (%p262) target = $region24
      $region23: #{_lambda_.12} parent=11 // pred_region
        _
      $region24: #{_lambda_.12} parent=11 // pred_fallthru
        _
      // Predicated region
      $region25: #{_lambda_.12} parent=11 // pred_check
        %p265 = pneg %p126
      $region26: #{_lambda_.12} parent=11 // pred_check_branch
        %267 = sbr.rel (%p265) target = $region28
      $region27: #{_lambda_.12} parent=11 // pred_region
        _
      $region28: #{_lambda_.12} parent=11 // pred_fallthru
        _
      // Predicated region
      $region29: #{_lambda_.12} parent=11 // pred_check
        %p268 = pneg %p147
      $region30: #{_lambda_.12} parent=11 // pred_check_branch
        %270 = sbr.rel (%p268) target = $region32
      $region31: #{_lambda_.12} parent=11 // pred_region
        _
      $region32: #{_lambda_.12} parent=11 // pred_fallthru
        _
      // Predicated region
      $region33: #{_lambda_.12} parent=11 // pred_check
        %p271 = pneg %p168
      $region34: #{_lambda_.12} parent=11 // pred_check_branch
        %273 = sbr.rel (%p271) target = $region36
      $region35: #{_lambda_.12} parent=11 // pred_region
        _
      $region36: #{_lambda_.12} parent=11 // pred_fallthru
        _
      // Predicated region
      $region37: #{_lambda_.12} parent=11 // pred_check
        %p274 = pneg %p189
      $region38: #{_lambda_.12} parent=11 // pred_check_branch
        %276 = sbr.rel (%p274) target = $region40
      $region39: #{_lambda_.12} parent=11 // pred_region
        _
      $region40: #{_lambda_.12} parent=11 // pred_fallthru
        _
    $region12: #{_lambda_.12} parent=5 // pred_fallthru
      _
    %p277 = scmp.lt.s32.totalorder %s16, 2
    // Predicated region
    $region41: #{_lambda_.12} parent=5 // pred_check
      %p278 = pneg %p277
    $region42: #{_lambda_.12} parent=5 // pred_check_branch
      %280 = sbr.rel (%p278) target = $region44
    $region43: #{_lambda_.12} parent=5 // pred_region
      // Predicated region
      $region45: #{_lambda_.12} parent=43 // pred_check
        %p281 = pneg %p36
      $region46: #{_lambda_.12} parent=43 // pred_check_branch
        %283 = sbr.rel (%p281) target = $region48
      $region47: #{_lambda_.12} parent=43 // pred_region
        %p284 = scmp.lt.s32.totalorder %s16, 1
        %s285 = scalar_select %p284, %s16, 1
        %s286 = smul.addr %s285, 6
        %s287 = smul.addr %s286, 8
        %s288 = scalar_lea.vmem %s0, %s287
      $region48: #{_lambda_.12} parent=43 // pred_fallthru
        _
    $region44: #{_lambda_.12} parent=5 // pred_fallthru
      _
    %p289 = scmp.le.s32.totalorder 1, %s16
    %p290 = scmp.lt.s32.totalorder %s16, 3
    %p291 = pnand %p289, %p290
    %p292 = pneg %p291
    // Predicated region
    $region49: #{_lambda_.12} parent=5 // pred_check
      _
    $region50: #{_lambda_.12} parent=5 // pred_check_branch
      %294 = sbr.rel (%p291) target = $region52
    $region51: #{_lambda_.12} parent=5 // pred_region
      %s295 = ssub.s32 %s16, 1
      %p296 = scmp.lt.s32.totalorder %s21, 1
      %s297 = scalar_select %p296, %s21, 1
      %s298 = smul.addr %s297, 6
      %s299 = smul.addr %s298, 8
      %s300 = scalar_lea.vmem %s0, %s299
      %p301 = pneg %p42
      %p302 = pneg %p39
      %p303 = pneg %p63
      %p304 = pneg %p60
      %p305 = pneg %p84
      %p306 = pneg %p81
      %p307 = pneg %p105
      %p308 = pneg %p102
      %p309 = pneg %p126
      %p310 = pneg %p123
      %p311 = pneg %p147
      %p312 = pneg %p144
      %p313 = pneg %p168
      %p314 = pneg %p165
      %p315 = pneg %p189
      %p316 = pneg %p186
      %p317 = pneg %p215
      %p318 = pneg %p212
      %p319 = scmp.lt.s32.totalorder %s21, 1
      %s320 = scalar_select %p319, %s21, 1
      %s321 = smul.addr %s320, 6
      %s322 = smul.addr %s321, 8
      %s323 = scalar_lea.vmem %s8, %s322
      %p324 = pneg %p241
      %p325 = pneg %p238
      %p326 = scmp.lt.s32.totalorder %s21, 1
      %s327 = scalar_select %p326, %s21, 1
      %s328 = smul.addr %s327, 8
      %s329 = scalar_lea.vmem %s9, %s328
      %p330 = scmp.lt.s32.totalorder %s21, 1
      %s331 = scalar_select %p330, %s21, 1
      %s332 = smul.addr %s331, 6
      %s333 = smul.addr %s332, 8
      %s334 = scalar_lea.vmem %s0, %s333
      %p335 = scmp.lt.s32.totalorder %s21, 1
      %s336 = scalar_select %p335, %s21, 1
      %s337 = smul.addr %s336, 6
      %s338 = smul.addr %s337, 8
      %s339 = scalar_lea.vmem %s8, %s338
      %p340 = scmp.lt.s32.totalorder %s21, 1
      %s341 = scalar_select %p340, %s21, 1
      %s342 = smul.addr %s341, 8
      %s343 = scalar_lea.vmem %s9, %s342
      %v345 = vld [vmem:[%s334] sm:$0xff]
      %v346 = vld [vmem:[%s334 + $0x8] sm:$0xff]
      %v347 = vld [vmem:[%s334 + $0x10] sm:$0xff]
      %v348 = vld [vmem:[%s334 + $0x18] sm:$0xff]
      %v349 = vld [vmem:[%s334 + $0x20] sm:$0xff]
      %v350 = vld [vmem:[%s334 + $0x28] sm:$0xf]
      %v351 = vpack.c.bf16 %v346, %v345
      %v352 = vpack.c.bf16 %v348, %v347
      %v353 = vpack.c.bf16 %v350, %v349
      %v354 = vld [vmem:[%s1] sm:$0xf]
      %v355 = vld [vmem:[%s1 + $0x4] sm:$0xf]
      %v356 = vld [vmem:[%s1 + $0x8] sm:$0xf]
      %v357 = vld [vmem:[%s1 + $0xc] sm:$0xf]
      %v358 = vld [vmem:[%s2] sm:$0xf]
      %v359 = vld [vmem:[%s2 + $0x4] sm:$0xf]
      %v360 = vld [vmem:[%s2 + $0x8] sm:$0xf]
      %v361 = vld [vmem:[%s2 + $0xc] sm:$0xf]
      %vm362 = vsmask.f32 7424
      %v364 = vshrl.u32 %v351, 16
      %v366 = vshll.u32 %v351, 16
      %v368 = vrot.slane %v366, 1
      %v369 = vor.u32 %v364, %v368
      %v371 = vshll.u32 %v352, 16
      %v373 = vrot.slane %v371, 1
      %v374 = vsel %vm362, %v369, %v373
      %v375 = vshrl.u32 %v352, 16
      %v377 = vor.u32 %v375, %v373
      %v379 = vshll.u32 %v353, 16
      %v381 = vrot.slane %v379, 1
      %v382 = vsel %vm362, %v377, %v381
      %v383 = vshrl.u32 %v353, 16
      %v385 = vor.u32 %v383, %v381
      %v390 = vunpack.c.l.b16 %v358
      %v391 = vunpack.c.l.b16 %v359
      %v392 = vunpack.c.l.b16 %v360
      %v393 = vunpack.c.l.b16 %v361
      %v394 = vpack.c.b16 %v391, %v390
      %v395 = vpack.c.b16 %v393, %v392
      %vm398 = vcmask 261120
      %v400 = vsel %vm398, %v374, 0
      %v403 = vsel %vm398, %v382, 0
      %v406 = vsel %vm398, %v385, 0
      %408 = vmatprep.subr.bf16.mxu0 0
      %409 = vmatpush1.bf16.msra.mxu0 0
      %410 = vmatprep.subr.bf16.mxu0 0
      %411 = vmatpush1.bf16.msra.mxu0 0
      %412 = vmatprep.subr.bf16.mxu0 0
      %413 = vmatpush1.bf16.msra.mxu0 0
      %414 = vmatprep.subr.bf16.mxu0 0
      %415 = vmatpush1.bf16.msra.mxu0 0
      %416 = vmatprep.subr.bf16.mxu0 0
      %417 = vmatpush1.bf16.msra.mxu0 0
      %418 = vmatprep.subr.bf16.mxu0 0
      %419 = vmatpush1.bf16.msra.mxu0 0
      %420 = vmatprep.subr.bf16.mxu0 0
      %421 = vmatpush1.bf16.msra.mxu0 %v395
      %422 = vmatprep.subr.bf16.mxu0 0
      %423 = vmatpush1.bf16.msra.mxu0 %v394
      %424 = vmatprep.subr.bf16.mxu0 0
      %425 = vmatpush2.bf16.msra.mxu0 0
      %426 = vmatprep.subr.bf16.mxu0 0
      %427 = vmatpush2.bf16.msra.mxu0 0
      %428 = vmatprep.subr.bf16.mxu0 0
      %429 = vmatpush2.bf16.msra.mxu0 0
      %430 = vmatprep.subr.bf16.mxu0 0
      %431 = vmatpush2.bf16.msra.mxu0 0
      %432 = vmatprep.subr.bf16.mxu0 0
      %433 = vmatpush2.bf16.msra.mxu0 0
      %434 = vmatprep.subr.bf16.mxu0 0
      %435 = vmatpush2.bf16.msra.mxu0 0
      %436 = vmatprep.subr.bf16.mxu0 0
      %437 = vmatpush2.bf16.msra.mxu0 0
      %438 = vmatprep.subr.bf16.mxu0 0
      %439 = vmatpush2.bf16.msra.mxu0 0
      %440 = vmatprep.mubr.bf16.mxu0 0
      %441 = vmatmul.mubr.bf16.gmra.mxu0 %v400
      %v442 = vpop.f32.mrf.mxu0
      %v443 = vadd.f32 0.0, %v442
      %v444 = vpop.f32.mrf.mxu0
      %v445 = vpop.f32.mrf.mxu0
      %v446 = vadd.f32 0.0, %v445
      %v447 = vpop.f32.mrf.mxu0
      %448 = vmatprep.mubr.bf16.mxu0 0
      %449 = vmatmul.mubr.bf16.gmra.mxu0 %v403
      %v450 = vpop.f32.mrf.mxu0
      %v451 = vadd.f32 0.0, %v450
      %v452 = vpop.f32.mrf.mxu0
      %v453 = vpop.f32.mrf.mxu0
      %v454 = vadd.f32 0.0, %v453
      %v455 = vpop.f32.mrf.mxu0
      %456 = vmatprep.mubr.bf16.mxu0 0
      %457 = vmatmul.mubr.bf16.gmra.mxu0 %v406
      %v458 = vpop.f32.mrf.mxu0
      %v459 = vadd.f32 0.0, %v458
      %v460 = vpop.f32.mrf.mxu0
      %v461 = vpop.f32.mrf.mxu0
      %v462 = vadd.f32 0.0, %v461
      %v463 = vpop.f32.mrf.mxu0
      %464 = vdwg.mxu0
      %v469 = vunpack.c.l.b16 %v354
      %v470 = vunpack.c.l.b16 %v355
      %v471 = vunpack.c.l.b16 %v356
      %v472 = vunpack.c.l.b16 %v357
      %v473 = vpack.c.b16 %v470, %v469
      %v474 = vpack.c.b16 %v472, %v471
      %v477 = vsel %vm398, %v351, 0
      %v479 = vsel %vm398, %v352, 0
      %v481 = vsel %vm398, %v353, 0
      %483 = vmatprep.subr.bf16.mxu0 0
      %484 = vmatpush1.bf16.msra.mxu0 0
      %485 = vmatprep.subr.bf16.mxu0 0
      %486 = vmatpush1.bf16.msra.mxu0 0
      %487 = vmatprep.subr.bf16.mxu0 0
      %488 = vmatpush1.bf16.msra.mxu0 0
      %489 = vmatprep.subr.bf16.mxu0 0
      %490 = vmatpush1.bf16.msra.mxu0 0
      %491 = vmatprep.subr.bf16.mxu0 0
      %492 = vmatpush1.bf16.msra.mxu0 0
      %493 = vmatprep.subr.bf16.mxu0 0
      %494 = vmatpush1.bf16.msra.mxu0 0
      %495 = vmatprep.subr.bf16.mxu0 0
      %496 = vmatpush1.bf16.msra.mxu0 %v474
      %497 = vmatprep.subr.bf16.mxu0 0
      %498 = vmatpush1.bf16.msra.mxu0 %v473
      %499 = vmatprep.subr.bf16.mxu0 0
      %500 = vmatpush2.bf16.msra.mxu0 0
      %501 = vmatprep.subr.bf16.mxu0 0
      %502 = vmatpush2.bf16.msra.mxu0 0
      %503 = vmatprep.subr.bf16.mxu0 0
      %504 = vmatpush2.bf16.msra.mxu0 0
      %505 = vmatprep.subr.bf16.mxu0 0
      %506 = vmatpush2.bf16.msra.mxu0 0
      %507 = vmatprep.subr.bf16.mxu0 0
      %508 = vmatpush2.bf16.msra.mxu0 0
      %509 = vmatprep.subr.bf16.mxu0 0
      %510 = vmatpush2.bf16.msra.mxu0 0
      %511 = vmatprep.subr.bf16.mxu0 0
      %512 = vmatpush2.bf16.msra.mxu0 0
      %513 = vmatprep.subr.bf16.mxu0 0
      %514 = vmatpush2.bf16.msra.mxu0 0
      %515 = vmatprep.mubr.bf16.mxu0 0
      %516 = vmatmul.mubr.bf16.gmra.mxu0 %v477
      %v517 = vpop.f32.mrf.mxu0
      %v518 = vadd.f32 %v443, %v517
      %v519 = vpop.f32.mrf.mxu0
      %v520 = vpop.f32.mrf.mxu0
      %v521 = vadd.f32 %v446, %v520
      %v522 = vpop.f32.mrf.mxu0
      %523 = vmatprep.mubr.bf16.mxu0 0
      %524 = vmatmul.mubr.bf16.gmra.mxu0 %v479
      %v525 = vpop.f32.mrf.mxu0
      %v526 = vadd.f32 %v451, %v525
      %v527 = vpop.f32.mrf.mxu0
      %v528 = vpop.f32.mrf.mxu0
      %v529 = vadd.f32 %v454, %v528
      %v530 = vpop.f32.mrf.mxu0
      %531 = vmatprep.mubr.bf16.mxu0 0
      %532 = vmatmul.mubr.bf16.gmra.mxu0 %v481
      %v533 = vpop.f32.mrf.mxu0
      %v534 = vadd.f32 %v459, %v533
      %v535 = vpop.f32.mrf.mxu0
      %v536 = vpop.f32.mrf.mxu0
      %v537 = vadd.f32 %v462, %v536
      %v538 = vpop.f32.mrf.mxu0
      %539 = vdwg.mxu0
      %v540 = vld [vmem:[%s3] sm:$0x1]
      %v542 = vlaneseq
      %v543 = vshrl.u32 %v542, 7
      %v544 = vsub.s32 0, %v543
      %v545 = vrot.slane %v540, %v544
      %v547 = vadd.f32 %v518, %v545
      %v548 = vadd.f32 %v521, %v545
      %v549 = vadd.f32 %v526, %v545
      %v550 = vadd.f32 %v529, %v545
      %v551 = vadd.f32 %v534, %v545
      %v552 = vadd.f32 %v537, %v545
      %v553 = vtanh.pop %v547
      %v554 = vtanh.pop %v548
      %v555 = vtanh.pop %v549
      %v556 = vtanh.pop %v550
      %v557 = vtanh.pop %v551
      %v558 = vtanh.pop %v552
      %v559 = vmul.f32 %v547, 0.5
      %v560 = vmul.f32 %v548, 0.5
      %v561 = vmul.f32 %v549, 0.5
      %v562 = vmul.f32 %v550, 0.5
      %v563 = vmul.f32 %v551, 0.5
      %v564 = vmul.f32 %v552, 0.5
      %v565 = vtanh.pop %v559
      %v566 = vtanh.pop %v560
      %v567 = vtanh.pop %v561
      %v568 = vtanh.pop %v562
      %v569 = vtanh.pop %v563
      %v570 = vtanh.pop %v564
      %v571 = vmul.f32 %v565, 0.5
      %v572 = vmul.f32 %v566, 0.5
      %v573 = vmul.f32 %v567, 0.5
      %v574 = vmul.f32 %v568, 0.5
      %v575 = vmul.f32 %v569, 0.5
      %v576 = vmul.f32 %v570, 0.5
      %v577 = vadd.f32 %v571, 0.5
      %v578 = vadd.f32 %v572, 0.5
      %v579 = vadd.f32 %v573, 0.5
      %v580 = vadd.f32 %v574, 0.5
      %v581 = vadd.f32 %v575, 0.5
      %v582 = vadd.f32 %v576, 0.5
      %589 = vrot.lane.b32.xlu0 %v577, 96
      %v590 = vpop.permute.xlu0 %589
      %591 = vrot.lane.b32.xlu0 %v578, 96
      %v592 = vpop.permute.xlu0 %591
      %593 = vrot.lane.b32.xlu0 %v579, 96
      %v594 = vpop.permute.xlu0 %593
      %595 = vrot.lane.b32.xlu0 %v580, 96
      %v596 = vpop.permute.xlu0 %595
      %597 = vrot.lane.b32.xlu0 %v581, 96
      %v598 = vpop.permute.xlu0 %597
      %599 = vrot.lane.b32.xlu0 %v582, 96
      %v600 = vpop.permute.xlu0 %599
      %v607 = vmul.f32 %v553, %v590
      %v608 = vmul.f32 %v554, %v592
      %v609 = vmul.f32 %v555, %v594
      %v610 = vmul.f32 %v556, %v596
      %v611 = vmul.f32 %v557, %v598
      %v612 = vmul.f32 %v558, %v600
      %v613 = vpack.c.bf16 %v608, %v607
      %v614 = vpack.c.bf16 %v610, %v609
      %v615 = vpack.c.bf16 %v612, %v611
      %v616 = vld [vmem:[%s6] sm:$0xf]
      %v617 = vld [vmem:[%s6 + $0x4] sm:$0xf]
      %v618 = vld [vmem:[%s6 + $0x8] sm:$0xf]
      %v619 = vld [vmem:[%s6 + $0xc] sm:$0xf]
      %v620 = vld [vmem:[%s7] sm:$0x1]
      %v622 = vlaneseq
      %v623 = vshrl.u32 %v622, 7
      %v624 = vsub.s32 0, %v623
      %v625 = vrot.slane %v620, %v624
      %v631 = vunpack.c.l.b16 %v616
      %v632 = vunpack.c.l.b16 %v617
      %v633 = vunpack.c.l.b16 %v618
      %v634 = vunpack.c.l.b16 %v619
      %v635 = vpack.c.b16 %v632, %v631
      %v636 = vpack.c.b16 %v634, %v633
      %v640 = vsel %vm398, %v613, 0
      %v643 = vsel %vm398, %v614, 0
      %v646 = vsel %vm398, %v615, 0
      %648 = vmatprep.subr.bf16.mxu0 0
      %649 = vmatpush1.bf16.msra.mxu0 0
      %650 = vmatprep.subr.bf16.mxu0 0
      %651 = vmatpush1.bf16.msra.mxu0 0
      %652 = vmatprep.subr.bf16.mxu0 0
      %653 = vmatpush1.bf16.msra.mxu0 0
      %654 = vmatprep.subr.bf16.mxu0 0
      %655 = vmatpush1.bf16.msra.mxu0 0
      %656 = vmatprep.subr.bf16.mxu0 0
      %657 = vmatpush1.bf16.msra.mxu0 0
      %658 = vmatprep.subr.bf16.mxu0 0
      %659 = vmatpush1.bf16.msra.mxu0 0
      %660 = vmatprep.subr.bf16.mxu0 0
      %661 = vmatpush1.bf16.msra.mxu0 %v636
      %662 = vmatprep.subr.bf16.mxu0 0
      %663 = vmatpush1.bf16.msra.mxu0 %v635
      %664 = vmatprep.subr.bf16.mxu0 0
      %665 = vmatpush2.bf16.msra.mxu0 0
      %666 = vmatprep.subr.bf16.mxu0 0
      %667 = vmatpush2.bf16.msra.mxu0 0
      %668 = vmatprep.subr.bf16.mxu0 0
      %669 = vmatpush2.bf16.msra.mxu0 0
      %670 = vmatprep.subr.bf16.mxu0 0
      %671 = vmatpush2.bf16.msra.mxu0 0
      %672 = vmatprep.subr.bf16.mxu0 0
      %673 = vmatpush2.bf16.msra.mxu0 0
      %674 = vmatprep.subr.bf16.mxu0 0
      %675 = vmatpush2.bf16.msra.mxu0 0
      %676 = vmatprep.subr.bf16.mxu0 0
      %677 = vmatpush2.bf16.msra.mxu0 0
      %678 = vmatprep.subr.bf16.mxu0 0
      %679 = vmatpush2.bf16.msra.mxu0 0
      %680 = vmatprep.mubr.bf16.mxu0 0
      %681 = vmatmul.mubr.bf16.gmra.mxu0 %v640
      %v682 = vpop.f32.mrf.mxu0
      %v683 = vadd.f32 %v625, %v682
      %v684 = vpop.f32.mrf.mxu0
      %v685 = vpop.f32.mrf.mxu0
      %v686 = vadd.f32 %v625, %v685
      %v687 = vpop.f32.mrf.mxu0
      %688 = vmatprep.mubr.bf16.mxu0 0
      %689 = vmatmul.mubr.bf16.gmra.mxu0 %v643
      %v690 = vpop.f32.mrf.mxu0
      %v691 = vadd.f32 %v625, %v690
      %v692 = vpop.f32.mrf.mxu0
      %v693 = vpop.f32.mrf.mxu0
      %v694 = vadd.f32 %v625, %v693
      %v695 = vpop.f32.mrf.mxu0
      %696 = vmatprep.mubr.bf16.mxu0 0
      %697 = vmatmul.mubr.bf16.gmra.mxu0 %v646
      %v698 = vpop.f32.mrf.mxu0
      %v699 = vadd.f32 %v625, %v698
      %v700 = vpop.f32.mrf.mxu0
      %v701 = vpop.f32.mrf.mxu0
      %v702 = vadd.f32 %v625, %v701
      %v703 = vpop.f32.mrf.mxu0
      %704 = vdwg.mxu0
      %vm711 = vcmask 1046528
      %v712 = vrot.slane %v345, 1
      %v713 = vrot.slane %v346, 1
      %v714 = vsel %vm711, %v712, %v713
      %v715 = vrot.slane %v347, 1
      %v716 = vsel %vm711, %v713, %v715
      %v717 = vrot.slane %v348, 1
      %v718 = vsel %vm711, %v715, %v717
      %v719 = vrot.slane %v349, 1
      %v720 = vsel %vm711, %v717, %v719
      %v721 = vrot.slane %v350, 1
      %v722 = vsel %vm711, %v719, %v721
      %v729 = vadd.f32 %v683, %v714
      %v730 = vadd.f32 %v686, %v716
      %v731 = vadd.f32 %v691, %v718
      %v732 = vadd.f32 %v694, %v720
      %v733 = vadd.f32 %v699, %v722
      %v734 = vadd.f32 %v702, %v721
      %735 = vst.msk [vmem:[%s339] sm:$0xff] %vm398, %v729
      %736 = vst.msk [vmem:[%s339 + $0x8] sm:$0xff] %vm398, %v730
      %737 = vst.msk [vmem:[%s339 + $0x10] sm:$0xff] %vm398, %v731
      %738 = vst.msk [vmem:[%s339 + $0x18] sm:$0xff] %vm398, %v732
      %739 = vst.msk [vmem:[%s339 + $0x20] sm:$0xff] %vm398, %v733
      %vm740 = vcmask 256000
      %741 = vst.msk [vmem:[%s339 + $0x28] sm:$0x7] %vm740, %v734
      %v742 = vld [vmem:[%s4] sm:$0xf]
      %v743 = vld [vmem:[%s4 + $0x4] sm:$0xf]
      %v744 = vld [vmem:[%s4 + $0x8] sm:$0xf]
      %v745 = vld [vmem:[%s4 + $0xc] sm:$0xf]
      %v746 = vld [vmem:[%s5] sm:$0x1]
      %v748 = vlaneseq
      %v749 = vshrl.u32 %v748, 7
      %v750 = vsub.s32 0, %v749
      %v751 = vrot.slane %v746, %v750
      %v753 = vshrl.u32 %v615, 16
      %v755 = vrot.slane %v753, 1
      %v756 = vshll.u32 %v615, 16
      %v758 = vrot.slane %v756, 2
      %v759 = vor.u32 %v755, %v758
      %v764 = vunpack.c.l.b16 %v742
      %v765 = vunpack.c.l.b16 %v743
      %v766 = vunpack.c.l.b16 %v744
      %v767 = vunpack.c.l.b16 %v745
      %v768 = vpack.c.b16 %v765, %v764
      %v769 = vpack.c.b16 %v767, %v766
      %v773 = vsel %vm398, %v759, 0
      %775 = vmatprep.subr.bf16.mxu0 0
      %776 = vmatpush1.bf16.msra.mxu0 0
      %777 = vmatprep.subr.bf16.mxu0 0
      %778 = vmatpush1.bf16.msra.mxu0 0
      %779 = vmatprep.subr.bf16.mxu0 0
      %780 = vmatpush1.bf16.msra.mxu0 0
      %781 = vmatprep.subr.bf16.mxu0 0
      %782 = vmatpush1.bf16.msra.mxu0 0
      %783 = vmatprep.subr.bf16.mxu0 0
      %784 = vmatpush1.bf16.msra.mxu0 0
      %785 = vmatprep.subr.bf16.mxu0 0
      %786 = vmatpush1.bf16.msra.mxu0 0
      %787 = vmatprep.subr.bf16.mxu0 0
      %788 = vmatpush1.bf16.msra.mxu0 %v769
      %789 = vmatprep.subr.bf16.mxu0 0
      %790 = vmatpush1.bf16.msra.mxu0 %v768
      %791 = vmatprep.subr.bf16.mxu0 0
      %792 = vmatpush2.bf16.msra.mxu0 0
      %793 = vmatprep.subr.bf16.mxu0 0
      %794 = vmatpush2.bf16.msra.mxu0 0
      %795 = vmatprep.subr.bf16.mxu0 0
      %796 = vmatpush2.bf16.msra.mxu0 0
      %797 = vmatprep.subr.bf16.mxu0 0
      %798 = vmatpush2.bf16.msra.mxu0 0
      %799 = vmatprep.subr.bf16.mxu0 0
      %800 = vmatpush2.bf16.msra.mxu0 0
      %801 = vmatprep.subr.bf16.mxu0 0
      %802 = vmatpush2.bf16.msra.mxu0 0
      %803 = vmatprep.subr.bf16.mxu0 0
      %804 = vmatpush2.bf16.msra.mxu0 0
      %805 = vmatprep.subr.bf16.mxu0 0
      %806 = vmatpush2.bf16.msra.mxu0 0
      %807 = vmatprep.mubr.bf16.mxu0 0
      %808 = vmatmul.mubr.bf16.gmra.mxu0 %v773
      %v809 = vpop.f32.mrf.mxu0
      %v810 = vadd.f32 %v751, %v809
      %v811 = vpop.f32.mrf.mxu0
      %v812 = vpop.f32.mrf.mxu0
      %v813 = vpop.f32.mrf.mxu0
      %814 = vdwg.mxu0
      %vm815 = vcmask 523264
      %816 = vst.msk [vmem:[%s343] sm:$0xff] %vm815, %v810
      %p817 = scmp.lt.s32.totalorder %s21, 1
      %s818 = scalar_select %p817, %s21, 1
      %s819 = smul.addr %s818, 6
      %s820 = smul.addr %s819, 8
      %s821 = scalar_lea.vmem %s8, %s820
      %p822 = scmp.lt.s32.totalorder %s21, 1
      %s823 = scalar_select %p822, %s21, 1
      %s824 = smul.addr %s823, 8
      %s825 = scalar_lea.vmem %s9, %s824
      // Predicated region
      $region53: #{_lambda_.12} parent=51 // pred_check
        %p826 = pneg %p212
      $region54: #{_lambda_.12} parent=51 // pred_check_branch
        %828 = sbr.rel (%p826) target = $region56
      $region55: #{_lambda_.12} parent=51 // pred_region
        _
      $region56: #{_lambda_.12} parent=51 // pred_fallthru
        _
      // Predicated region
      $region57: #{_lambda_.12} parent=51 // pred_check
        %p829 = pneg %p238
      $region58: #{_lambda_.12} parent=51 // pred_check_branch
        %831 = sbr.rel (%p829) target = $region60
      $region59: #{_lambda_.12} parent=51 // pred_region
        _
      $region60: #{_lambda_.12} parent=51 // pred_fallthru
        _
    $region52: #{_lambda_.12} parent=5 // pred_fallthru
      _
    %p832 = scmp.le.s32.totalorder 2, %s16
    // Predicated region
    $region61: #{_lambda_.12} parent=5 // pred_check
      %p833 = pneg %p832
    $region62: #{_lambda_.12} parent=5 // pred_check_branch
      %835 = sbr.rel (%p833) target = $region64
    $region63: #{_lambda_.12} parent=5 // pred_region
      %s836 = ssub.s32 %s16, 2
      // Predicated region
      $region65: #{_lambda_.12} parent=63 // pred_check
        %p837 = pneg %p218
      $region66: #{_lambda_.12} parent=63 // pred_check_branch
        %839 = sbr.rel (%p837) target = $region68
      $region67: #{_lambda_.12} parent=63 // pred_region
        %p840 = scmp.lt.s32.totalorder %s22, 1
        %s841 = scalar_select %p840, %s22, 1
        %s842 = smul.addr %s841, 6
        %s843 = smul.addr %s842, 8
        %s844 = scalar_lea.vmem %s8, %s843
      $region68: #{_lambda_.12} parent=63 // pred_fallthru
        _
      // Predicated region
      $region69: #{_lambda_.12} parent=63 // pred_check
        %p845 = pneg %p244
      $region70: #{_lambda_.12} parent=63 // pred_check_branch
        %847 = sbr.rel (%p845) target = $region72
      $region71: #{_lambda_.12} parent=63 // pred_region
        %p848 = scmp.lt.s32.totalorder %s22, 1
        %s849 = scalar_select %p848, %s22, 1
        %s850 = smul.addr %s849, 8
        %s851 = scalar_lea.vmem %s9, %s850
      $region72: #{_lambda_.12} parent=63 // pred_fallthru
        _
    $region64: #{_lambda_.12} parent=5 // pred_fallthru
      _
  $region6: #{_lambda_.12} parent=0 // loop_footer
    %s20 = sadd.s32 1, %s16
  $region7: #{_lambda_.12} parent=0 // loop_footer_branch
    %15 = sbr.rel target = $region3
  $region8: #{_lambda_.12} parent=0 // loop_exit
    _

// kernel: _lambda_.14
$region0: #{_lambda_.14}
  #allocation0 [shape = 'u32[]', space=smem, size = 0x4, offset = 0x4, fixed_abs, tag = 'smem constant byte address 0x4 - core index']
  #allocation1 [shape = 'u32[144,128]{1,0:T(1,128)}', space=vmem, size = 0x12000, scoped, tag = 'internal scratch']
  %s0 = inlined_call_operand.vmem [shape: f32[8,11,32], index: 0, kind: input, shape index: {}]
  %s1 = inlined_call_operand.vmem [shape: bf16[32,64], index: 1, kind: input, shape index: {}]
  %s2 = inlined_call_operand.vmem [shape: bf16[32,64], index: 2, kind: input, shape index: {}]
  %s3 = inlined_call_operand.vmem [shape: f32[1,64], index: 3, kind: input, shape index: {}]
  %s4 = inlined_call_operand.vmem [shape: bf16[32,64], index: 4, kind: input, shape index: {}]
  %s5 = inlined_call_operand.vmem [shape: f32[1,64], index: 5, kind: input, shape index: {}]
  %s6 = inlined_call_operand.vmem [shape: bf16[32,32], index: 6, kind: input, shape index: {}]
  %s7 = inlined_call_operand.vmem [shape: f32[1,32], index: 7, kind: input, shape index: {}]
  %s8 = inlined_call_operand.hbm [shape: f32[8,10,32], index: 8, kind: output, shape index: {0}]
  %s9 = inlined_call_operand.vmem [shape: f32[8,2,64], index: 9, kind: output, shape index: {1}]
  %10 = xla_tuple %s8, %s9
  %s11 = sld [smem:[#allocation0]]
  $region73: #{_lambda_.14} parent=0
    _
  %s13 = ssub.s32 1, %s11
  %s14 = scalar_select 0, %s13, %s11
  $region1: #{_lambda_.14} parent=0
    #allocation2 [shape = 'u8[16384]{0}', space=vmem, size = 0x4000, scoped, tag = 'output window, operand 0']
    #allocation3 [shape = 's32[2]{0}', space=sflag, size = 0x8, scoped, tag = 'scoped memory for _lambda_.14']
    %15 = vsyncpa [#allocation3], 0
    %s16 = scalar_lea.sflag [#allocation3], 1
    %17 = vsyncpa %s16, 0
    loop: start=0, step=1, limit=10
    $region2: #{_lambda_.14} parent=1 // loop_pre_header
      _
    $region3: #{_lambda_.14} parent=1 // loop_header
      %s19 = sphi 0, %s23
      %p20 = scmp.ge.s32.totalorder %s19, 10
      %s29 = sphi 0, %s31
      %s32 = sphi 0, %s29
      %s33 = sphi 0, %s32
      %s49 = sphi 0, %s33
      %s53 = sphi 0, %s53
      %s55 = sphi 0, %s53
      %s56 = sphi 0, %s55
      %s70 = sphi 0, %s56
      %s74 = sphi 0, %s74
      %s76 = sphi 0, %s74
      %s77 = sphi 0, %s76
      %s91 = sphi 0, %s77
      %s95 = sphi 0, %s95
      %s97 = sphi 0, %s95
      %s98 = sphi 0, %s97
      %s112 = sphi 0, %s98
      %s116 = sphi 0, %s116
      %s118 = sphi 0, %s116
      %s119 = sphi 0, %s118
      %s133 = sphi 0, %s119
      %s137 = sphi 0, %s137
      %s139 = sphi 0, %s137
      %s140 = sphi 0, %s139
      %s154 = sphi 0, %s140
      %s158 = sphi 0, %s158
      %s160 = sphi 0, %s158
      %s161 = sphi 0, %s160
      %s175 = sphi 0, %s161
      %s179 = sphi 0, %s179
      %s181 = sphi 0, %s179
      %s182 = sphi 0, %s181
      %s196 = sphi 0, %s182
      %s202 = sphi 0, %s204
      %s205 = sphi 0, %s202
      %s206 = sphi 0, %s205
      %s222 = sphi 0, %s206
      %s228 = sphi 0, %s230
      %s231 = sphi 0, %s228
      %s232 = sphi 0, %s231
      %s248 = sphi 0, %s232
    $region4: #{_lambda_.14} parent=1 // loop_header_branch
      %22 = sbr.rel (%p20) target = $region8
    $region5: #{_lambda_.14} parent=1 // loop_body
      %s24 = ssub.s32 %s19, 1
      %s25 = ssub.s32 %s19, 2
      %s26 = sadd.s32 %s19, 1
      %s27 = ssub.s32 %s19, %s26
      %p28 = scmp.eq.s32.totalorder %s27, 0
      %s30 = sadd.s32 %s29, 1
      %s31 = scalar_select %p28, %s29, %s30
      %p34 = pneg %p28
      %p35 = scmp.eq.s32.totalorder %s19, 7
      %p36 = por %p34, %p35
      %p37 = scmp.ne.s32.totalorder %s29, %s32
      %p38 = scmp.eq.s32.totalorder %s19, 0
      %p39 = por %p37, %p38
      %p40 = scmp.ne.s32.totalorder %s29, %s32
      %p41 = scmp.eq.s32.totalorder %s24, 7
      %p42 = por %p40, %p41
      %p43 = scmp.ne.s32.totalorder %s32, %s33
      %p44 = scmp.eq.s32.totalorder %s24, 0
      %p45 = por %p43, %p44
      %p46 = scmp.ne.s32.totalorder %s32, %s33
      %p47 = scmp.eq.s32.totalorder %s25, 7
      %p48 = por %p46, %p47
      %p50 = scmp.ne.s32.totalorder %s33, %s49
      %p51 = scmp.eq.s32.totalorder %s25, 0
      %p52 = por %p50, %p51
      %s54 = sadd.s32 %s53, 1
      %p57 = scmp.eq.s32.totalorder %s19, 7
      %p58 = scmp.ne.s32.totalorder %s53, %s55
      %p59 = scmp.eq.s32.totalorder %s19, 0
      %p60 = por %p58, %p59
      %p61 = scmp.ne.s32.totalorder %s53, %s55
      %p62 = scmp.eq.s32.totalorder %s24, 7
      %p63 = por %p61, %p62
      %p64 = scmp.ne.s32.totalorder %s55, %s56
      %p65 = scmp.eq.s32.totalorder %s24, 0
      %p66 = por %p64, %p65
      %p67 = scmp.ne.s32.totalorder %s55, %s56
      %p68 = scmp.eq.s32.totalorder %s25, 7
      %p69 = por %p67, %p68
      %p71 = scmp.ne.s32.totalorder %s56, %s70
      %p72 = scmp.eq.s32.totalorder %s25, 0
      %p73 = por %p71, %p72
      %s75 = sadd.s32 %s74, 1
      %p78 = scmp.eq.s32.totalorder %s19, 7
      %p79 = scmp.ne.s32.totalorder %s74, %s76
      %p80 = scmp.eq.s32.totalorder %s19, 0
      %p81 = por %p79, %p80
      %p82 = scmp.ne.s32.totalorder %s74, %s76
      %p83 = scmp.eq.s32.totalorder %s24, 7
      %p84 = por %p82, %p83
      %p85 = scmp.ne.s32.totalorder %s76, %s77
      %p86 = scmp.eq.s32.totalorder %s24, 0
      %p87 = por %p85, %p86
      %p88 = scmp.ne.s32.totalorder %s76, %s77
      %p89 = scmp.eq.s32.totalorder %s25, 7
      %p90 = por %p88, %p89
      %p92 = scmp.ne.s32.totalorder %s77, %s91
      %p93 = scmp.eq.s32.totalorder %s25, 0
      %p94 = por %p92, %p93
      %s96 = sadd.s32 %s95, 1
      %p99 = scmp.eq.s32.totalorder %s19, 7
      %p100 = scmp.ne.s32.totalorder %s95, %s97
      %p101 = scmp.eq.s32.totalorder %s19, 0
      %p102 = por %p100, %p101
      %p103 = scmp.ne.s32.totalorder %s95, %s97
      %p104 = scmp.eq.s32.totalorder %s24, 7
      %p105 = por %p103, %p104
      %p106 = scmp.ne.s32.totalorder %s97, %s98
      %p107 = scmp.eq.s32.totalorder %s24, 0
      %p108 = por %p106, %p107
      %p109 = scmp.ne.s32.totalorder %s97, %s98
      %p110 = scmp.eq.s32.totalorder %s25, 7
      %p111 = por %p109, %p110
      %p113 = scmp.ne.s32.totalorder %s98, %s112
      %p114 = scmp.eq.s32.totalorder %s25, 0
      %p115 = por %p113, %p114
      %s117 = sadd.s32 %s116, 1
      %p120 = scmp.eq.s32.totalorder %s19, 7
      %p121 = scmp.ne.s32.totalorder %s116, %s118
      %p122 = scmp.eq.s32.totalorder %s19, 0
      %p123 = por %p121, %p122
      %p124 = scmp.ne.s32.totalorder %s116, %s118
      %p125 = scmp.eq.s32.totalorder %s24, 7
      %p126 = por %p124, %p125
      %p127 = scmp.ne.s32.totalorder %s118, %s119
      %p128 = scmp.eq.s32.totalorder %s24, 0
      %p129 = por %p127, %p128
      %p130 = scmp.ne.s32.totalorder %s118, %s119
      %p131 = scmp.eq.s32.totalorder %s25, 7
      %p132 = por %p130, %p131
      %p134 = scmp.ne.s32.totalorder %s119, %s133
      %p135 = scmp.eq.s32.totalorder %s25, 0
      %p136 = por %p134, %p135
      %s138 = sadd.s32 %s137, 1
      %p141 = scmp.eq.s32.totalorder %s19, 7
      %p142 = scmp.ne.s32.totalorder %s137, %s139
      %p143 = scmp.eq.s32.totalorder %s19, 0
      %p144 = por %p142, %p143
      %p145 = scmp.ne.s32.totalorder %s137, %s139
      %p146 = scmp.eq.s32.totalorder %s24, 7
      %p147 = por %p145, %p146
      %p148 = scmp.ne.s32.totalorder %s139, %s140
      %p149 = scmp.eq.s32.totalorder %s24, 0
      %p150 = por %p148, %p149
      %p151 = scmp.ne.s32.totalorder %s139, %s140
      %p152 = scmp.eq.s32.totalorder %s25, 7
      %p153 = por %p151, %p152
      %p155 = scmp.ne.s32.totalorder %s140, %s154
      %p156 = scmp.eq.s32.totalorder %s25, 0
      %p157 = por %p155, %p156
      %s159 = sadd.s32 %s158, 1
      %p162 = scmp.eq.s32.totalorder %s19, 7
      %p163 = scmp.ne.s32.totalorder %s158, %s160
      %p164 = scmp.eq.s32.totalorder %s19, 0
      %p165 = por %p163, %p164
      %p166 = scmp.ne.s32.totalorder %s158, %s160
      %p167 = scmp.eq.s32.totalorder %s24, 7
      %p168 = por %p166, %p167
      %p169 = scmp.ne.s32.totalorder %s160, %s161
      %p170 = scmp.eq.s32.totalorder %s24, 0
      %p171 = por %p169, %p170
      %p172 = scmp.ne.s32.totalorder %s160, %s161
      %p173 = scmp.eq.s32.totalorder %s25, 7
      %p174 = por %p172, %p173
      %p176 = scmp.ne.s32.totalorder %s161, %s175
      %p177 = scmp.eq.s32.totalorder %s25, 0
      %p178 = por %p176, %p177
      %s180 = sadd.s32 %s179, 1
      %p183 = scmp.eq.s32.totalorder %s19, 7
      %p184 = scmp.ne.s32.totalorder %s179, %s181
      %p185 = scmp.eq.s32.totalorder %s19, 0
      %p186 = por %p184, %p185
      %p187 = scmp.ne.s32.totalorder %s179, %s181
      %p188 = scmp.eq.s32.totalorder %s24, 7
      %p189 = por %p187, %p188
      %p190 = scmp.ne.s32.totalorder %s181, %s182
      %p191 = scmp.eq.s32.totalorder %s24, 0
      %p192 = por %p190, %p191
      %p193 = scmp.ne.s32.totalorder %s181, %s182
      %p194 = scmp.eq.s32.totalorder %s25, 7
      %p195 = por %p193, %p194
      %p197 = scmp.ne.s32.totalorder %s182, %s196
      %p198 = scmp.eq.s32.totalorder %s25, 0
      %p199 = por %p197, %p198
      %s200 = ssub.s32 %s19, %s26
      %p201 = scmp.eq.s32.totalorder %s200, 0
      %s203 = sadd.s32 %s202, 1
      %s204 = scalar_select %p201, %s202, %s203
      %p207 = pneg %p201
      %p208 = scmp.eq.s32.totalorder %s19, 7
      %p209 = por %p207, %p208
      %p210 = scmp.ne.s32.totalorder %s202, %s205
      %p211 = scmp.eq.s32.totalorder %s19, 0
      %p212 = por %p210, %p211
      %p213 = scmp.ne.s32.totalorder %s202, %s205
      %p214 = scmp.eq.s32.totalorder %s24, 7
      %p215 = por %p213, %p214
      %p216 = scmp.ne.s32.totalorder %s205, %s206
      %p217 = scmp.eq.s32.totalorder %s24, 0
      %p218 = por %p216, %p217
      %p219 = scmp.ne.s32.totalorder %s205, %s206
      %p220 = scmp.eq.s32.totalorder %s25, 7
      %p221 = por %p219, %p220
      %p223 = scmp.ne.s32.totalorder %s206, %s222
      %p224 = scmp.eq.s32.totalorder %s25, 0
      %p225 = por %p223, %p224
      %s226 = ssub.s32 %s19, %s26
      %p227 = scmp.eq.s32.totalorder %s226, 0
      %s229 = sadd.s32 %s228, 1
      %s230 = scalar_select %p227, %s228, %s229
      %p233 = pneg %p227
      %p234 = scmp.eq.s32.totalorder %s19, 7
      %p235 = por %p233, %p234
      %p236 = scmp.ne.s32.totalorder %s228, %s231
      %p237 = scmp.eq.s32.totalorder %s19, 0
      %p238 = por %p236, %p237
      %p239 = scmp.ne.s32.totalorder %s228, %s231
      %p240 = scmp.eq.s32.totalorder %s24, 7
      %p241 = por %p239, %p240
      %p242 = scmp.ne.s32.totalorder %s231, %s232
      %p243 = scmp.eq.s32.totalorder %s24, 0
      %p244 = por %p242, %p243
      %p245 = scmp.ne.s32.totalorder %s231, %s232
      %p246 = scmp.eq.s32.totalorder %s25, 7
      %p247 = por %p245, %p246
      %p249 = scmp.ne.s32.totalorder %s232, %s248
      %p250 = scmp.eq.s32.totalorder %s25, 0
      %p251 = por %p249, %p250
      %p252 = scmp.le.s32.totalorder 1, %s19
      %p253 = scmp.lt.s32.totalorder %s19, 9
      %p254 = pnand %p252, %p253
      %p255 = pneg %p254
      // Predicated region
      $region9: #{_lambda_.14} parent=5 // pred_check
        _
      $region10: #{_lambda_.14} parent=5 // pred_check_branch
        %257 = sbr.rel (%p254) target = $region12
      $region11: #{_lambda_.14} parent=5 // pred_region
        %s258 = ssub.s32 %s19, 1
        // Predicated region
        $region13: #{_lambda_.14} parent=11 // pred_check
          %p259 = pneg %p66
        $region14: #{_lambda_.14} parent=11 // pred_check_branch
          %261 = sbr.rel (%p259) target = $region16
        $region15: #{_lambda_.14} parent=11 // pred_region
          _
        $region16: #{_lambda_.14} parent=11 // pred_fallthru
          _
        // Predicated region
        $region17: #{_lambda_.14} parent=11 // pred_check
          %p262 = pneg %p87
        $region18: #{_lambda_.14} parent=11 // pred_check_branch
          %264 = sbr.rel (%p262) target = $region20
        $region19: #{_lambda_.14} parent=11 // pred_region
          _
        $region20: #{_lambda_.14} parent=11 // pred_fallthru
          _
        // Predicated region
        $region21: #{_lambda_.14} parent=11 // pred_check
          %p265 = pneg %p108
        $region22: #{_lambda_.14} parent=11 // pred_check_branch
          %267 = sbr.rel (%p265) target = $region24
        $region23: #{_lambda_.14} parent=11 // pred_region
          _
        $region24: #{_lambda_.14} parent=11 // pred_fallthru
          _
        // Predicated region
        $region25: #{_lambda_.14} parent=11 // pred_check
          %p268 = pneg %p129
        $region26: #{_lambda_.14} parent=11 // pred_check_branch
          %270 = sbr.rel (%p268) target = $region28
        $region27: #{_lambda_.14} parent=11 // pred_region
          _
        $region28: #{_lambda_.14} parent=11 // pred_fallthru
          _
        // Predicated region
        $region29: #{_lambda_.14} parent=11 // pred_check
          %p271 = pneg %p150
        $region30: #{_lambda_.14} parent=11 // pred_check_branch
          %273 = sbr.rel (%p271) target = $region32
        $region31: #{_lambda_.14} parent=11 // pred_region
          _
        $region32: #{_lambda_.14} parent=11 // pred_fallthru
          _
        // Predicated region
        $region33: #{_lambda_.14} parent=11 // pred_check
          %p274 = pneg %p171
        $region34: #{_lambda_.14} parent=11 // pred_check_branch
          %276 = sbr.rel (%p274) target = $region36
        $region35: #{_lambda_.14} parent=11 // pred_region
          _
        $region36: #{_lambda_.14} parent=11 // pred_fallthru
          _
        // Predicated region
        $region37: #{_lambda_.14} parent=11 // pred_check
          %p277 = pneg %p192
        $region38: #{_lambda_.14} parent=11 // pred_check_branch
          %279 = sbr.rel (%p277) target = $region40
        $region39: #{_lambda_.14} parent=11 // pred_region
          _
        $region40: #{_lambda_.14} parent=11 // pred_fallthru
          _
      $region12: #{_lambda_.14} parent=5 // pred_fallthru
        _
      %p280 = scmp.lt.s32.totalorder %s19, 8
      // Predicated region
      $region41: #{_lambda_.14} parent=5 // pred_check
        %p281 = pneg %p280
      $region42: #{_lambda_.14} parent=5 // pred_check_branch
        %283 = sbr.rel (%p281) target = $region44
      $region43: #{_lambda_.14} parent=5 // pred_region
        // Predicated region
        $region45: #{_lambda_.14} parent=43 // pred_check
          %p284 = pneg %p39
        $region46: #{_lambda_.14} parent=43 // pred_check_branch
          %286 = sbr.rel (%p284) target = $region48
        $region47: #{_lambda_.14} parent=43 // pred_region
          %p287 = scmp.lt.s32.totalorder %s19, 7
          %s288 = scalar_select %p287, %s19, 7
          %s289 = smul.addr %s288, 2
          %s290 = smul.addr %s289, 8
          %s291 = scalar_lea.vmem %s0, %s290
        $region48: #{_lambda_.14} parent=43 // pred_fallthru
          _
      $region44: #{_lambda_.14} parent=5 // pred_fallthru
        _
      %p292 = scmp.le.s32.totalorder 1, %s19
      %p293 = scmp.lt.s32.totalorder %s19, 9
      %p294 = pnand %p292, %p293
      %p295 = pneg %p294
      // Predicated region
      $region49: #{_lambda_.14} parent=5 // pred_check
        _
      $region50: #{_lambda_.14} parent=5 // pred_check_branch
        %297 = sbr.rel (%p294) target = $region52
      $region51: #{_lambda_.14} parent=5 // pred_region
        %s298 = ssub.s32 %s19, 1
        %p299 = scmp.lt.s32.totalorder %s24, 7
        %s300 = scalar_select %p299, %s24, 7
        %s301 = smul.addr %s300, 2
        %s302 = smul.addr %s301, 8
        %s303 = scalar_lea.vmem %s0, %s302
        %p304 = pneg %p45
        %p305 = pneg %p42
        %p306 = pneg %p66
        %p307 = pneg %p63
        %p308 = pneg %p87
        %p309 = pneg %p84
        %p310 = pneg %p108
        %p311 = pneg %p105
        %p312 = pneg %p129
        %p313 = pneg %p126
        %p314 = pneg %p150
        %p315 = pneg %p147
        %p316 = pneg %p171
        %p317 = pneg %p168
        %p318 = pneg %p192
        %p319 = pneg %p189
        %p320 = pneg %p218
        %p321 = pneg %p215
        %s322 = sand.u32 %s205, 1
        %s323 = scalar_lea.sflag [#allocation3], %s322
        %s324 = sand.u32 %s205, 1
        %s325 = smul.addr %s324, 16
        %s326 = scalar_lea.vmem [#allocation2], %s325
        %p327 = pneg %p244
        %p328 = pneg %p241
        %p329 = scmp.lt.s32.totalorder %s24, 7
        %s330 = scalar_select %p329, %s24, 7
        %s331 = smul.addr %s330, 2
        %s332 = scalar_lea.vmem %s9, %s331
        %p333 = scmp.lt.s32.totalorder %s24, 7
        %s334 = scalar_select %p333, %s24, 7
        %s335 = smul.addr %s334, 2
        %s336 = smul.addr %s335, 8
        %s337 = scalar_lea.vmem %s0, %s336
        %p338 = scmp.lt.s32.totalorder %s24, 7
        %s339 = scalar_select %p338, %s24, 7
        %s340 = smul.addr %s339, 2
        %s341 = scalar_lea.vmem %s9, %s340
        %v343 = vld [vmem:[%s337] sm:$0xff]
        %v344 = vld [vmem:[%s337 + $0x8] sm:$0x7]
        %v345 = vpack.c.bf16 %v344, %v343
        %v346 = vld [vmem:[%s1] sm:$0xf]
        %v347 = vld [vmem:[%s1 + $0x4] sm:$0xf]
        %v348 = vld [vmem:[%s1 + $0x8] sm:$0xf]
        %v349 = vld [vmem:[%s1 + $0xc] sm:$0xf]
        %v350 = vld [vmem:[%s2] sm:$0xf]
        %v351 = vld [vmem:[%s2 + $0x4] sm:$0xf]
        %v352 = vld [vmem:[%s2 + $0x8] sm:$0xf]
        %v353 = vld [vmem:[%s2 + $0xc] sm:$0xf]
        %v355 = vshrl.u32 %v345, 16
        %v357 = vshll.u32 %v345, 16
        %v359 = vrot.slane %v357, 1
        %v360 = vor.u32 %v355, %v359
        %v365 = vunpack.c.l.b16 %v350
        %v366 = vunpack.c.l.b16 %v351
        %v367 = vunpack.c.l.b16 %v352
        %v368 = vunpack.c.l.b16 %v353
        %v369 = vpack.c.b16 %v366, %v365
        %v370 = vpack.c.b16 %v368, %v367
        %vm373 = vcmask 261120
        %v375 = vsel %vm373, %v360, 0
        %377 = vmatprep.subr.bf16.mxu0 0
        %378 = vmatpush1.bf16.msra.mxu0 0
        %379 = vmatprep.subr.bf16.mxu0 0
        %380 = vmatpush1.bf16.msra.mxu0 0
        %381 = vmatprep.subr.bf16.mxu0 0
        %382 = vmatpush1.bf16.msra.mxu0 0
        %383 = vmatprep.subr.bf16.mxu0 0
        %384 = vmatpush1.bf16.msra.mxu0 0
        %385 = vmatprep.subr.bf16.mxu0 0
        %386 = vmatpush1.bf16.msra.mxu0 0
        %387 = vmatprep.subr.bf16.mxu0 0
        %388 = vmatpush1.bf16.msra.mxu0 0
        %389 = vmatprep.subr.bf16.mxu0 0
        %390 = vmatpush1.bf16.msra.mxu0 %v370
        %391 = vmatprep.subr.bf16.mxu0 0
        %392 = vmatpush1.bf16.msra.mxu0 %v369
        %393 = vmatprep.subr.bf16.mxu0 0
        %394 = vmatpush2.bf16.msra.mxu0 0
        %395 = vmatprep.subr.bf16.mxu0 0
        %396 = vmatpush2.bf16.msra.mxu0 0
        %397 = vmatprep.subr.bf16.mxu0 0
        %398 = vmatpush2.bf16.msra.mxu0 0
        %399 = vmatprep.subr.bf16.mxu0 0
        %400 = vmatpush2.bf16.msra.mxu0 0
        %401 = vmatprep.subr.bf16.mxu0 0
        %402 = vmatpush2.bf16.msra.mxu0 0
        %403 = vmatprep.subr.bf16.mxu0 0
        %404 = vmatpush2.bf16.msra.mxu0 0
        %405 = vmatprep.subr.bf16.mxu0 0
        %406 = vmatpush2.bf16.msra.mxu0 0
        %407 = vmatprep.subr.bf16.mxu0 0
        %408 = vmatpush2.bf16.msra.mxu0 0
        %409 = vmatprep.mubr.bf16.mxu0 0
        %410 = vmatmul.mubr.bf16.gmra.mxu0 %v375
        %v411 = vpop.f32.mrf.mxu0
        %v412 = vadd.f32 0.0, %v411
        %v413 = vpop.f32.mrf.mxu0
        %v414 = vpop.f32.mrf.mxu0
        %v415 = vadd.f32 0.0, %v414
        %v416 = vpop.f32.mrf.mxu0
        %417 = vdwg.mxu0
        %v422 = vunpack.c.l.b16 %v346
        %v423 = vunpack.c.l.b16 %v347
        %v424 = vunpack.c.l.b16 %v348
        %v425 = vunpack.c.l.b16 %v349
        %v426 = vpack.c.b16 %v423, %v422
        %v427 = vpack.c.b16 %v425, %v424
        %v430 = vsel %vm373, %v345, 0
        %432 = vmatprep.subr.bf16.mxu0 0
        %433 = vmatpush1.bf16.msra.mxu0 0
        %434 = vmatprep.subr.bf16.mxu0 0
        %435 = vmatpush1.bf16.msra.mxu0 0
        %436 = vmatprep.subr.bf16.mxu0 0
        %437 = vmatpush1.bf16.msra.mxu0 0
        %438 = vmatprep.subr.bf16.mxu0 0
        %439 = vmatpush1.bf16.msra.mxu0 0
        %440 = vmatprep.subr.bf16.mxu0 0
        %441 = vmatpush1.bf16.msra.mxu0 0
        %442 = vmatprep.subr.bf16.mxu0 0
        %443 = vmatpush1.bf16.msra.mxu0 0
        %444 = vmatprep.subr.bf16.mxu0 0
        %445 = vmatpush1.bf16.msra.mxu0 %v427
        %446 = vmatprep.subr.bf16.mxu0 0
        %447 = vmatpush1.bf16.msra.mxu0 %v426
        %448 = vmatprep.subr.bf16.mxu0 0
        %449 = vmatpush2.bf16.msra.mxu0 0
        %450 = vmatprep.subr.bf16.mxu0 0
        %451 = vmatpush2.bf16.msra.mxu0 0
        %452 = vmatprep.subr.bf16.mxu0 0
        %453 = vmatpush2.bf16.msra.mxu0 0
        %454 = vmatprep.subr.bf16.mxu0 0
        %455 = vmatpush2.bf16.msra.mxu0 0
        %456 = vmatprep.subr.bf16.mxu0 0
        %457 = vmatpush2.bf16.msra.mxu0 0
        %458 = vmatprep.subr.bf16.mxu0 0
        %459 = vmatpush2.bf16.msra.mxu0 0
        %460 = vmatprep.subr.bf16.mxu0 0
        %461 = vmatpush2.bf16.msra.mxu0 0
        %462 = vmatprep.subr.bf16.mxu0 0
        %463 = vmatpush2.bf16.msra.mxu0 0
        %464 = vmatprep.mubr.bf16.mxu0 0
        %465 = vmatmul.mubr.bf16.gmra.mxu0 %v430
        %v466 = vpop.f32.mrf.mxu0
        %v467 = vadd.f32 %v412, %v466
        %v468 = vpop.f32.mrf.mxu0
        %v469 = vpop.f32.mrf.mxu0
        %v470 = vadd.f32 %v415, %v469
        %v471 = vpop.f32.mrf.mxu0
        %472 = vdwg.mxu0
        %v473 = vld [vmem:[%s3] sm:$0x1]
        %v475 = vlaneseq
        %v476 = vshrl.u32 %v475, 7
        %v477 = vsub.s32 0, %v476
        %v478 = vrot.slane %v473, %v477
        %v480 = vadd.f32 %v467, %v478
        %v481 = vadd.f32 %v470, %v478
        %v482 = vtanh.pop %v480
        %v483 = vtanh.pop %v481
        %v484 = vmul.f32 %v480, 0.5
        %v485 = vmul.f32 %v481, 0.5
        %v486 = vtanh.pop %v484
        %v487 = vtanh.pop %v485
        %v488 = vmul.f32 %v486, 0.5
        %v489 = vmul.f32 %v487, 0.5
        %v490 = vadd.f32 %v488, 0.5
        %v491 = vadd.f32 %v489, 0.5
        %494 = vrot.lane.b32.xlu0 %v490, 96
        %v495 = vpop.permute.xlu0 %494
        %496 = vrot.lane.b32.xlu0 %v491, 96
        %v497 = vpop.permute.xlu0 %496
        %v500 = vmul.f32 %v482, %v495
        %v501 = vmul.f32 %v483, %v497
        %v502 = vpack.c.bf16 %v501, %v500
        %v503 = vld [vmem:[%s6] sm:$0xf]
        %v504 = vld [vmem:[%s6 + $0x4] sm:$0xf]
        %v505 = vld [vmem:[%s6 + $0x8] sm:$0xf]
        %v506 = vld [vmem:[%s6 + $0xc] sm:$0xf]
        %v507 = vld [vmem:[%s7] sm:$0x1]
        %v509 = vlaneseq
        %v510 = vshrl.u32 %v509, 7
        %v511 = vsub.s32 0, %v510
        %v512 = vrot.slane %v507, %v511
        %v518 = vunpack.c.l.b16 %v503
        %v519 = vunpack.c.l.b16 %v504
        %v520 = vunpack.c.l.b16 %v505
        %v521 = vunpack.c.l.b16 %v506
        %v522 = vpack.c.b16 %v519, %v518
        %v523 = vpack.c.b16 %v521, %v520
        %v527 = vsel %vm373, %v502, 0
        %529 = vmatprep.subr.bf16.mxu0 0
        %530 = vmatpush1.bf16.msra.mxu0 0
        %531 = vmatprep.subr.bf16.mxu0 0
        %532 = vmatpush1.bf16.msra.mxu0 0
        %533 = vmatprep.subr.bf16.mxu0 0
        %534 = vmatpush1.bf16.msra.mxu0 0
        %535 = vmatprep.subr.bf16.mxu0 0
        %536 = vmatpush1.bf16.msra.mxu0 0
        %537 = vmatprep.subr.bf16.mxu0 0
        %538 = vmatpush1.bf16.msra.mxu0 0
        %539 = vmatprep.subr.bf16.mxu0 0
        %540 = vmatpush1.bf16.msra.mxu0 0
        %541 = vmatprep.subr.bf16.mxu0 0
        %542 = vmatpush1.bf16.msra.mxu0 %v523
        %543 = vmatprep.subr.bf16.mxu0 0
        %544 = vmatpush1.bf16.msra.mxu0 %v522
        %545 = vmatprep.subr.bf16.mxu0 0
        %546 = vmatpush2.bf16.msra.mxu0 0
        %547 = vmatprep.subr.bf16.mxu0 0
        %548 = vmatpush2.bf16.msra.mxu0 0
        %549 = vmatprep.subr.bf16.mxu0 0
        %550 = vmatpush2.bf16.msra.mxu0 0
        %551 = vmatprep.subr.bf16.mxu0 0
        %552 = vmatpush2.bf16.msra.mxu0 0
        %553 = vmatprep.subr.bf16.mxu0 0
        %554 = vmatpush2.bf16.msra.mxu0 0
        %555 = vmatprep.subr.bf16.mxu0 0
        %556 = vmatpush2.bf16.msra.mxu0 0
        %557 = vmatprep.subr.bf16.mxu0 0
        %558 = vmatpush2.bf16.msra.mxu0 0
        %559 = vmatprep.subr.bf16.mxu0 0
        %560 = vmatpush2.bf16.msra.mxu0 0
        %561 = vmatprep.mubr.bf16.mxu0 0
        %562 = vmatmul.mubr.bf16.gmra.mxu0 %v527
        %v563 = vpop.f32.mrf.mxu0
        %v564 = vadd.f32 %v512, %v563
        %v565 = vpop.f32.mrf.mxu0
        %v566 = vpop.f32.mrf.mxu0
        %v567 = vadd.f32 %v512, %v566
        %v568 = vpop.f32.mrf.mxu0
        %569 = vdwg.mxu0
        %vm572 = vcmask 1046528
        %v573 = vrot.slane %v343, 1
        %v574 = vrot.slane %v344, 1
        %v575 = vsel %vm572, %v573, %v574
        %v578 = vadd.f32 %v564, %v575
        %v579 = vadd.f32 %v567, %v574
        %580 = vst.msk [vmem:[%s326] sm:$0xff] %vm373, %v578
        %vm581 = vcmask 254976
        %582 = vst.msk [vmem:[%s326 + $0x8] sm:$0x3] %vm581, %v579
        %v583 = vld [vmem:[%s4] sm:$0xf]
        %v584 = vld [vmem:[%s4 + $0x4] sm:$0xf]
        %v585 = vld [vmem:[%s4 + $0x8] sm:$0xf]
        %v586 = vld [vmem:[%s4 + $0xc] sm:$0xf]
        %v587 = vld [vmem:[%s5] sm:$0x1]
        %v589 = vlaneseq
        %v590 = vshrl.u32 %v589, 7
        %v591 = vsub.s32 0, %v590
        %v592 = vrot.slane %v587, %v591
        %v595 = vrot.slane %v502, 4
        %v600 = vunpack.c.l.b16 %v583
        %v601 = vunpack.c.l.b16 %v584
        %v602 = vunpack.c.l.b16 %v585
        %v603 = vunpack.c.l.b16 %v586
        %v604 = vpack.c.b16 %v601, %v600
        %v605 = vpack.c.b16 %v603, %v602
        %v609 = vsel %vm373, %v595, 0
        %611 = vmatprep.subr.bf16.mxu0 0
        %612 = vmatpush1.bf16.msra.mxu0 0
        %613 = vmatprep.subr.bf16.mxu0 0
        %614 = vmatpush1.bf16.msra.mxu0 0
        %615 = vmatprep.subr.bf16.mxu0 0
        %616 = vmatpush1.bf16.msra.mxu0 0
        %617 = vmatprep.subr.bf16.mxu0 0
        %618 = vmatpush1.bf16.msra.mxu0 0
        %619 = vmatprep.subr.bf16.mxu0 0
        %620 = vmatpush1.bf16.msra.mxu0 0
        %621 = vmatprep.subr.bf16.mxu0 0
        %622 = vmatpush1.bf16.msra.mxu0 0
        %623 = vmatprep.subr.bf16.mxu0 0
        %624 = vmatpush1.bf16.msra.mxu0 %v605
        %625 = vmatprep.subr.bf16.mxu0 0
        %626 = vmatpush1.bf16.msra.mxu0 %v604
        %627 = vmatprep.subr.bf16.mxu0 0
        %628 = vmatpush2.bf16.msra.mxu0 0
        %629 = vmatprep.subr.bf16.mxu0 0
        %630 = vmatpush2.bf16.msra.mxu0 0
        %631 = vmatprep.subr.bf16.mxu0 0
        %632 = vmatpush2.bf16.msra.mxu0 0
        %633 = vmatprep.subr.bf16.mxu0 0
        %634 = vmatpush2.bf16.msra.mxu0 0
        %635 = vmatprep.subr.bf16.mxu0 0
        %636 = vmatpush2.bf16.msra.mxu0 0
        %637 = vmatprep.subr.bf16.mxu0 0
        %638 = vmatpush2.bf16.msra.mxu0 0
        %639 = vmatprep.subr.bf16.mxu0 0
        %640 = vmatpush2.bf16.msra.mxu0 0
        %641 = vmatprep.subr.bf16.mxu0 0
        %642 = vmatpush2.bf16.msra.mxu0 0
        %643 = vmatprep.mubr.bf16.mxu0 0
        %644 = vmatmul.mubr.bf16.gmra.mxu0 %v609
        %v645 = vpop.f32.mrf.mxu0
        %v646 = vadd.f32 %v592, %v645
        %v647 = vpop.f32.mrf.mxu0
        %v648 = vpop.f32.mrf.mxu0
        %v649 = vpop.f32.mrf.mxu0
        %650 = vdwg.mxu0
        %vm651 = vcmask 517120
        %652 = vst.msk [vmem:[%s341] sm:$0x3] %vm651, %v646
        %s653 = sand.u32 %s205, 1
        %s654 = scalar_lea.sflag [#allocation3], %s653
        %s655 = sand.u32 %s205, 1
        %s656 = smul.addr %s655, 16
        %s657 = scalar_lea.vmem [#allocation2], %s656
        %p658 = scmp.lt.s32.totalorder %s24, 7
        %s659 = scalar_select %p658, %s24, 7
        %s660 = smul.addr %s659, 2
        %s661 = scalar_lea.vmem %s9, %s660
        // Predicated region
        $region53: #{_lambda_.14} parent=51 // pred_check
          %p662 = pneg %p215
        $region54: #{_lambda_.14} parent=51 // pred_check_branch
          %664 = sbr.rel (%p662) target = $region56
        $region55: #{_lambda_.14} parent=51 // pred_region
          %s666 = ssub.s32 256, 256
          %667 = vsyncadd %s654, %s666
          %s668 = smul.addr %s24, 2
          %s669 = smul.addr %s668, 128
          %s670 = scalar_lea.hbm %s8, %s669
          %s671 = sshll.u32 %s657, 4
          %s672 = int_to_ptr.vmem [resolvable:$true] %s671
          %677 = dma.vmem_to_hbm [thread:$0]  %s672, 256, %s670, %s654, 128, 128, 8
        $region56: #{_lambda_.14} parent=51 // pred_fallthru
          _
        // Predicated region
        $region57: #{_lambda_.14} parent=51 // pred_check
          %p678 = pneg %p241
        $region58: #{_lambda_.14} parent=51 // pred_check_branch
          %680 = sbr.rel (%p678) target = $region60
        $region59: #{_lambda_.14} parent=51 // pred_region
          _
        $region60: #{_lambda_.14} parent=51 // pred_fallthru
          _
      $region52: #{_lambda_.14} parent=5 // pred_fallthru
        _
      %p681 = scmp.le.s32.totalorder 2, %s19
      // Predicated region
      $region61: #{_lambda_.14} parent=5 // pred_check
        %p682 = pneg %p681
      $region62: #{_lambda_.14} parent=5 // pred_check_branch
        %684 = sbr.rel (%p682) target = $region64
      $region63: #{_lambda_.14} parent=5 // pred_region
        %s685 = ssub.s32 %s19, 2
        // Predicated region
        $region65: #{_lambda_.14} parent=63 // pred_check
          %p686 = pneg %p221
        $region66: #{_lambda_.14} parent=63 // pred_check_branch
          %688 = sbr.rel (%p686) target = $region68
        $region67: #{_lambda_.14} parent=63 // pred_region
          %s689 = sand.u32 %s206, 1
          %s690 = scalar_lea.sflag [#allocation3], %s689
          %s691 = sand.u32 %s206, 1
          %s692 = smul.addr %s691, 16
          %s693 = scalar_lea.vmem [#allocation2], %s692
          %694 = dma.done %s690, 256
        $region68: #{_lambda_.14} parent=63 // pred_fallthru
          _
        // Predicated region
        $region69: #{_lambda_.14} parent=63 // pred_check
          %p695 = pneg %p247
        $region70: #{_lambda_.14} parent=63 // pred_check_branch
          %697 = sbr.rel (%p695) target = $region72
        $region71: #{_lambda_.14} parent=63 // pred_region
          %p698 = scmp.lt.s32.totalorder %s25, 7
          %s699 = scalar_select %p698, %s25, 7
          %s700 = smul.addr %s699, 2
          %s701 = scalar_lea.vmem %s9, %s700
        $region72: #{_lambda_.14} parent=63 // pred_fallthru
          _
      $region64: #{_lambda_.14} parent=5 // pred_fallthru
        _
    $region6: #{_lambda_.14} parent=1 // loop_footer
      %s23 = sadd.s32 1, %s19
    $region7: #{_lambda_.14} parent=1 // loop_footer_branch
      %18 = sbr.rel target = $region3
    $region8: #{_lambda_.14} parent=1 // loop_exit
      _
    %702 = vsyncpa [#allocation3], 1
    %s703 = scalar_lea.sflag [#allocation3], 1
    %704 = vsyncpa %s703, 1

// kernel: _lambda_.13
$region0: #{_lambda_.13}
  #allocation0 [shape = 'u32[]', space=smem, size = 0x4, offset = 0x4, fixed_abs, tag = 'smem constant byte address 0x4 - core index']
  #allocation1 [shape = 'u32[144,128]{1,0:T(1,128)}', space=vmem, size = 0x12000, scoped, tag = 'internal scratch']
  %s0 = inlined_call_operand.vmem [shape: f32[4,22,32], index: 0, kind: input, shape index: {}]
  %s1 = inlined_call_operand.vmem [shape: bf16[32,64], index: 1, kind: input, shape index: {}]
  %s2 = inlined_call_operand.vmem [shape: bf16[32,64], index: 2, kind: input, shape index: {}]
  %s3 = inlined_call_operand.vmem [shape: f32[1,64], index: 3, kind: input, shape index: {}]
  %s4 = inlined_call_operand.vmem [shape: bf16[32,64], index: 4, kind: input, shape index: {}]
  %s5 = inlined_call_operand.vmem [shape: f32[1,64], index: 5, kind: input, shape index: {}]
  %s6 = inlined_call_operand.vmem [shape: bf16[32,32], index: 6, kind: input, shape index: {}]
  %s7 = inlined_call_operand.vmem [shape: f32[1,32], index: 7, kind: input, shape index: {}]
  %s8 = inlined_call_operand.vmem [shape: f32[4,21,32], index: 8, kind: output, shape index: {0}]
  %s9 = inlined_call_operand.vmem [shape: f32[4,4,64], index: 9, kind: output, shape index: {1}]
  %10 = xla_tuple %s8, %s9
  %s11 = sld [smem:[#allocation0]]
  $region73: #{_lambda_.13} parent=0
    _
  %s13 = ssub.s32 1, %s11
  %s14 = scalar_select 0, %s13, %s11
  loop: start=0, step=1, limit=6
  $region2: #{_lambda_.13} parent=0 // loop_pre_header
    _
  $region3: #{_lambda_.13} parent=0 // loop_header
    %s16 = sphi 0, %s20
    %p17 = scmp.ge.s32.totalorder %s16, 6
    %s26 = sphi 0, %s28
    %s29 = sphi 0, %s26
    %s30 = sphi 0, %s29
    %s46 = sphi 0, %s30
    %s50 = sphi 0, %s50
    %s52 = sphi 0, %s50
    %s53 = sphi 0, %s52
    %s67 = sphi 0, %s53
    %s71 = sphi 0, %s71
    %s73 = sphi 0, %s71
    %s74 = sphi 0, %s73
    %s88 = sphi 0, %s74
    %s92 = sphi 0, %s92
    %s94 = sphi 0, %s92
    %s95 = sphi 0, %s94
    %s109 = sphi 0, %s95
    %s113 = sphi 0, %s113
    %s115 = sphi 0, %s113
    %s116 = sphi 0, %s115
    %s130 = sphi 0, %s116
    %s134 = sphi 0, %s134
    %s136 = sphi 0, %s134
    %s137 = sphi 0, %s136
    %s151 = sphi 0, %s137
    %s155 = sphi 0, %s155
    %s157 = sphi 0, %s155
    %s158 = sphi 0, %s157
    %s172 = sphi 0, %s158
    %s176 = sphi 0, %s176
    %s178 = sphi 0, %s176
    %s179 = sphi 0, %s178
    %s193 = sphi 0, %s179
    %s199 = sphi 0, %s201
    %s202 = sphi 0, %s199
    %s203 = sphi 0, %s202
    %s219 = sphi 0, %s203
    %s225 = sphi 0, %s227
    %s228 = sphi 0, %s225
    %s229 = sphi 0, %s228
    %s245 = sphi 0, %s229
  $region4: #{_lambda_.13} parent=0 // loop_header_branch
    %19 = sbr.rel (%p17) target = $region8
  $region5: #{_lambda_.13} parent=0 // loop_body
    %s21 = ssub.s32 %s16, 1
    %s22 = ssub.s32 %s16, 2
    %s23 = sadd.s32 %s16, 1
    %s24 = ssub.s32 %s16, %s23
    %p25 = scmp.eq.s32.totalorder %s24, 0
    %s27 = sadd.s32 %s26, 1
    %s28 = scalar_select %p25, %s26, %s27
    %p31 = pneg %p25
    %p32 = scmp.eq.s32.totalorder %s16, 3
    %p33 = por %p31, %p32
    %p34 = scmp.ne.s32.totalorder %s26, %s29
    %p35 = scmp.eq.s32.totalorder %s16, 0
    %p36 = por %p34, %p35
    %p37 = scmp.ne.s32.totalorder %s26, %s29
    %p38 = scmp.eq.s32.totalorder %s21, 3
    %p39 = por %p37, %p38
    %p40 = scmp.ne.s32.totalorder %s29, %s30
    %p41 = scmp.eq.s32.totalorder %s21, 0
    %p42 = por %p40, %p41
    %p43 = scmp.ne.s32.totalorder %s29, %s30
    %p44 = scmp.eq.s32.totalorder %s22, 3
    %p45 = por %p43, %p44
    %p47 = scmp.ne.s32.totalorder %s30, %s46
    %p48 = scmp.eq.s32.totalorder %s22, 0
    %p49 = por %p47, %p48
    %s51 = sadd.s32 %s50, 1
    %p54 = scmp.eq.s32.totalorder %s16, 3
    %p55 = scmp.ne.s32.totalorder %s50, %s52
    %p56 = scmp.eq.s32.totalorder %s16, 0
    %p57 = por %p55, %p56
    %p58 = scmp.ne.s32.totalorder %s50, %s52
    %p59 = scmp.eq.s32.totalorder %s21, 3
    %p60 = por %p58, %p59
    %p61 = scmp.ne.s32.totalorder %s52, %s53
    %p62 = scmp.eq.s32.totalorder %s21, 0
    %p63 = por %p61, %p62
    %p64 = scmp.ne.s32.totalorder %s52, %s53
    %p65 = scmp.eq.s32.totalorder %s22, 3
    %p66 = por %p64, %p65
    %p68 = scmp.ne.s32.totalorder %s53, %s67
    %p69 = scmp.eq.s32.totalorder %s22, 0
    %p70 = por %p68, %p69
    %s72 = sadd.s32 %s71, 1
    %p75 = scmp.eq.s32.totalorder %s16, 3
    %p76 = scmp.ne.s32.totalorder %s71, %s73
    %p77 = scmp.eq.s32.totalorder %s16, 0
    %p78 = por %p76, %p77
    %p79 = scmp.ne.s32.totalorder %s71, %s73
    %p80 = scmp.eq.s32.totalorder %s21, 3
    %p81 = por %p79, %p80
    %p82 = scmp.ne.s32.totalorder %s73, %s74
    %p83 = scmp.eq.s32.totalorder %s21, 0
    %p84 = por %p82, %p83
    %p85 = scmp.ne.s32.totalorder %s73, %s74
    %p86 = scmp.eq.s32.totalorder %s22, 3
    %p87 = por %p85, %p86
    %p89 = scmp.ne.s32.totalorder %s74, %s88
    %p90 = scmp.eq.s32.totalorder %s22, 0
    %p91 = por %p89, %p90
    %s93 = sadd.s32 %s92, 1
    %p96 = scmp.eq.s32.totalorder %s16, 3
    %p97 = scmp.ne.s32.totalorder %s92, %s94
    %p98 = scmp.eq.s32.totalorder %s16, 0
    %p99 = por %p97, %p98
    %p100 = scmp.ne.s32.totalorder %s92, %s94
    %p101 = scmp.eq.s32.totalorder %s21, 3
    %p102 = por %p100, %p101
    %p103 = scmp.ne.s32.totalorder %s94, %s95
    %p104 = scmp.eq.s32.totalorder %s21, 0
    %p105 = por %p103, %p104
    %p106 = scmp.ne.s32.totalorder %s94, %s95
    %p107 = scmp.eq.s32.totalorder %s22, 3
    %p108 = por %p106, %p107
    %p110 = scmp.ne.s32.totalorder %s95, %s109
    %p111 = scmp.eq.s32.totalorder %s22, 0
    %p112 = por %p110, %p111
    %s114 = sadd.s32 %s113, 1
    %p117 = scmp.eq.s32.totalorder %s16, 3
    %p118 = scmp.ne.s32.totalorder %s113, %s115
    %p119 = scmp.eq.s32.totalorder %s16, 0
    %p120 = por %p118, %p119
    %p121 = scmp.ne.s32.totalorder %s113, %s115
    %p122 = scmp.eq.s32.totalorder %s21, 3
    %p123 = por %p121, %p122
    %p124 = scmp.ne.s32.totalorder %s115, %s116
    %p125 = scmp.eq.s32.totalorder %s21, 0
    %p126 = por %p124, %p125
    %p127 = scmp.ne.s32.totalorder %s115, %s116
    %p128 = scmp.eq.s32.totalorder %s22, 3
    %p129 = por %p127, %p128
    %p131 = scmp.ne.s32.totalorder %s116, %s130
    %p132 = scmp.eq.s32.totalorder %s22, 0
    %p133 = por %p131, %p132
    %s135 = sadd.s32 %s134, 1
    %p138 = scmp.eq.s32.totalorder %s16, 3
    %p139 = scmp.ne.s32.totalorder %s134, %s136
    %p140 = scmp.eq.s32.totalorder %s16, 0
    %p141 = por %p139, %p140
    %p142 = scmp.ne.s32.totalorder %s134, %s136
    %p143 = scmp.eq.s32.totalorder %s21, 3
    %p144 = por %p142, %p143
    %p145 = scmp.ne.s32.totalorder %s136, %s137
    %p146 = scmp.eq.s32.totalorder %s21, 0
    %p147 = por %p145, %p146
    %p148 = scmp.ne.s32.totalorder %s136, %s137
    %p149 = scmp.eq.s32.totalorder %s22, 3
    %p150 = por %p148, %p149
    %p152 = scmp.ne.s32.totalorder %s137, %s151
    %p153 = scmp.eq.s32.totalorder %s22, 0
    %p154 = por %p152, %p153
    %s156 = sadd.s32 %s155, 1
    %p159 = scmp.eq.s32.totalorder %s16, 3
    %p160 = scmp.ne.s32.totalorder %s155, %s157
    %p161 = scmp.eq.s32.totalorder %s16, 0
    %p162 = por %p160, %p161
    %p163 = scmp.ne.s32.totalorder %s155, %s157
    %p164 = scmp.eq.s32.totalorder %s21, 3
    %p165 = por %p163, %p164
    %p166 = scmp.ne.s32.totalorder %s157, %s158
    %p167 = scmp.eq.s32.totalorder %s21, 0
    %p168 = por %p166, %p167
    %p169 = scmp.ne.s32.totalorder %s157, %s158
    %p170 = scmp.eq.s32.totalorder %s22, 3
    %p171 = por %p169, %p170
    %p173 = scmp.ne.s32.totalorder %s158, %s172
    %p174 = scmp.eq.s32.totalorder %s22, 0
    %p175 = por %p173, %p174
    %s177 = sadd.s32 %s176, 1
    %p180 = scmp.eq.s32.totalorder %s16, 3
    %p181 = scmp.ne.s32.totalorder %s176, %s178
    %p182 = scmp.eq.s32.totalorder %s16, 0
    %p183 = por %p181, %p182
    %p184 = scmp.ne.s32.totalorder %s176, %s178
    %p185 = scmp.eq.s32.totalorder %s21, 3
    %p186 = por %p184, %p185
    %p187 = scmp.ne.s32.totalorder %s178, %s179
    %p188 = scmp.eq.s32.totalorder %s21, 0
    %p189 = por %p187, %p188
    %p190 = scmp.ne.s32.totalorder %s178, %s179
    %p191 = scmp.eq.s32.totalorder %s22, 3
    %p192 = por %p190, %p191
    %p194 = scmp.ne.s32.totalorder %s179, %s193
    %p195 = scmp.eq.s32.totalorder %s22, 0
    %p196 = por %p194, %p195
    %s197 = ssub.s32 %s16, %s23
    %p198 = scmp.eq.s32.totalorder %s197, 0
    %s200 = sadd.s32 %s199, 1
    %s201 = scalar_select %p198, %s199, %s200
    %p204 = pneg %p198
    %p205 = scmp.eq.s32.totalorder %s16, 3
    %p206 = por %p204, %p205
    %p207 = scmp.ne.s32.totalorder %s199, %s202
    %p208 = scmp.eq.s32.totalorder %s16, 0
    %p209 = por %p207, %p208
    %p210 = scmp.ne.s32.totalorder %s199, %s202
    %p211 = scmp.eq.s32.totalorder %s21, 3
    %p212 = por %p210, %p211
    %p213 = scmp.ne.s32.totalorder %s202, %s203
    %p214 = scmp.eq.s32.totalorder %s21, 0
    %p215 = por %p213, %p214
    %p216 = scmp.ne.s32.totalorder %s202, %s203
    %p217 = scmp.eq.s32.totalorder %s22, 3
    %p218 = por %p216, %p217
    %p220 = scmp.ne.s32.totalorder %s203, %s219
    %p221 = scmp.eq.s32.totalorder %s22, 0
    %p222 = por %p220, %p221
    %s223 = ssub.s32 %s16, %s23
    %p224 = scmp.eq.s32.totalorder %s223, 0
    %s226 = sadd.s32 %s225, 1
    %s227 = scalar_select %p224, %s225, %s226
    %p230 = pneg %p224
    %p231 = scmp.eq.s32.totalorder %s16, 3
    %p232 = por %p230, %p231
    %p233 = scmp.ne.s32.totalorder %s225, %s228
    %p234 = scmp.eq.s32.totalorder %s16, 0
    %p235 = por %p233, %p234
    %p236 = scmp.ne.s32.totalorder %s225, %s228
    %p237 = scmp.eq.s32.totalorder %s21, 3
    %p238 = por %p236, %p237
    %p239 = scmp.ne.s32.totalorder %s228, %s229
    %p240 = scmp.eq.s32.totalorder %s21, 0
    %p241 = por %p239, %p240
    %p242 = scmp.ne.s32.totalorder %s228, %s229
    %p243 = scmp.eq.s32.totalorder %s22, 3
    %p244 = por %p242, %p243
    %p246 = scmp.ne.s32.totalorder %s229, %s245
    %p247 = scmp.eq.s32.totalorder %s22, 0
    %p248 = por %p246, %p247
    %p249 = scmp.le.s32.totalorder 1, %s16
    %p250 = scmp.lt.s32.totalorder %s16, 5
    %p251 = pnand %p249, %p250
    %p252 = pneg %p251
    // Predicated region
    $region9: #{_lambda_.13} parent=5 // pred_check
      _
    $region10: #{_lambda_.13} parent=5 // pred_check_branch
      %254 = sbr.rel (%p251) target = $region12
    $region11: #{_lambda_.13} parent=5 // pred_region
      %s255 = ssub.s32 %s16, 1
      // Predicated region
      $region13: #{_lambda_.13} parent=11 // pred_check
        %p256 = pneg %p63
      $region14: #{_lambda_.13} parent=11 // pred_check_branch
        %258 = sbr.rel (%p256) target = $region16
      $region15: #{_lambda_.13} parent=11 // pred_region
        _
      $region16: #{_lambda_.13} parent=11 // pred_fallthru
        _
      // Predicated region
      $region17: #{_lambda_.13} parent=11 // pred_check
        %p259 = pneg %p84
      $region18: #{_lambda_.13} parent=11 // pred_check_branch
        %261 = sbr.rel (%p259) target = $region20
      $region19: #{_lambda_.13} parent=11 // pred_region
        _
      $region20: #{_lambda_.13} parent=11 // pred_fallthru
        _
      // Predicated region
      $region21: #{_lambda_.13} parent=11 // pred_check
        %p262 = pneg %p105
      $region22: #{_lambda_.13} parent=11 // pred_check_branch
        %264 = sbr.rel (%p262) target = $region24
      $region23: #{_lambda_.13} parent=11 // pred_region
        _
      $region24: #{_lambda_.13} parent=11 // pred_fallthru
        _
      // Predicated region
      $region25: #{_lambda_.13} parent=11 // pred_check
        %p265 = pneg %p126
      $region26: #{_lambda_.13} parent=11 // pred_check_branch
        %267 = sbr.rel (%p265) target = $region28
      $region27: #{_lambda_.13} parent=11 // pred_region
        _
      $region28: #{_lambda_.13} parent=11 // pred_fallthru
        _
      // Predicated region
      $region29: #{_lambda_.13} parent=11 // pred_check
        %p268 = pneg %p147
      $region30: #{_lambda_.13} parent=11 // pred_check_branch
        %270 = sbr.rel (%p268) target = $region32
      $region31: #{_lambda_.13} parent=11 // pred_region
        _
      $region32: #{_lambda_.13} parent=11 // pred_fallthru
        _
      // Predicated region
      $region33: #{_lambda_.13} parent=11 // pred_check
        %p271 = pneg %p168
      $region34: #{_lambda_.13} parent=11 // pred_check_branch
        %273 = sbr.rel (%p271) target = $region36
      $region35: #{_lambda_.13} parent=11 // pred_region
        _
      $region36: #{_lambda_.13} parent=11 // pred_fallthru
        _
      // Predicated region
      $region37: #{_lambda_.13} parent=11 // pred_check
        %p274 = pneg %p189
      $region38: #{_lambda_.13} parent=11 // pred_check_branch
        %276 = sbr.rel (%p274) target = $region40
      $region39: #{_lambda_.13} parent=11 // pred_region
        _
      $region40: #{_lambda_.13} parent=11 // pred_fallthru
        _
    $region12: #{_lambda_.13} parent=5 // pred_fallthru
      _
    %p277 = scmp.lt.s32.totalorder %s16, 4
    // Predicated region
    $region41: #{_lambda_.13} parent=5 // pred_check
      %p278 = pneg %p277
    $region42: #{_lambda_.13} parent=5 // pred_check_branch
      %280 = sbr.rel (%p278) target = $region44
    $region43: #{_lambda_.13} parent=5 // pred_region
      // Predicated region
      $region45: #{_lambda_.13} parent=43 // pred_check
        %p281 = pneg %p36
      $region46: #{_lambda_.13} parent=43 // pred_check_branch
        %283 = sbr.rel (%p281) target = $region48
      $region47: #{_lambda_.13} parent=43 // pred_region
        %p284 = scmp.lt.s32.totalorder %s16, 3
        %s285 = scalar_select %p284, %s16, 3
        %s286 = smul.addr %s285, 3
        %s287 = smul.addr %s286, 8
        %s288 = scalar_lea.vmem %s0, %s287
      $region48: #{_lambda_.13} parent=43 // pred_fallthru
        _
    $region44: #{_lambda_.13} parent=5 // pred_fallthru
      _
    %p289 = scmp.le.s32.totalorder 1, %s16
    %p290 = scmp.lt.s32.totalorder %s16, 5
    %p291 = pnand %p289, %p290
    %p292 = pneg %p291
    // Predicated region
    $region49: #{_lambda_.13} parent=5 // pred_check
      _
    $region50: #{_lambda_.13} parent=5 // pred_check_branch
      %294 = sbr.rel (%p291) target = $region52
    $region51: #{_lambda_.13} parent=5 // pred_region
      %s295 = ssub.s32 %s16, 1
      %p296 = scmp.lt.s32.totalorder %s21, 3
      %s297 = scalar_select %p296, %s21, 3
      %s298 = smul.addr %s297, 3
      %s299 = smul.addr %s298, 8
      %s300 = scalar_lea.vmem %s0, %s299
      %p301 = pneg %p42
      %p302 = pneg %p39
      %p303 = pneg %p63
      %p304 = pneg %p60
      %p305 = pneg %p84
      %p306 = pneg %p81
      %p307 = pneg %p105
      %p308 = pneg %p102
      %p309 = pneg %p126
      %p310 = pneg %p123
      %p311 = pneg %p147
      %p312 = pneg %p144
      %p313 = pneg %p168
      %p314 = pneg %p165
      %p315 = pneg %p189
      %p316 = pneg %p186
      %p317 = pneg %p215
      %p318 = pneg %p212
      %p319 = scmp.lt.s32.totalorder %s21, 3
      %s320 = scalar_select %p319, %s21, 3
      %s321 = smul.addr %s320, 3
      %s322 = smul.addr %s321, 8
      %s323 = scalar_lea.vmem %s8, %s322
      %p324 = pneg %p241
      %p325 = pneg %p238
      %p326 = scmp.lt.s32.totalorder %s21, 3
      %s327 = scalar_select %p326, %s21, 3
      %s328 = smul.addr %s327, 4
      %s329 = scalar_lea.vmem %s9, %s328
      %p330 = scmp.lt.s32.totalorder %s21, 3
      %s331 = scalar_select %p330, %s21, 3
      %s332 = smul.addr %s331, 3
      %s333 = smul.addr %s332, 8
      %s334 = scalar_lea.vmem %s0, %s333
      %p335 = scmp.lt.s32.totalorder %s21, 3
      %s336 = scalar_select %p335, %s21, 3
      %s337 = smul.addr %s336, 3
      %s338 = smul.addr %s337, 8
      %s339 = scalar_lea.vmem %s8, %s338
      %p340 = scmp.lt.s32.totalorder %s21, 3
      %s341 = scalar_select %p340, %s21, 3
      %s342 = smul.addr %s341, 4
      %s343 = scalar_lea.vmem %s9, %s342
      %v345 = vld [vmem:[%s334] sm:$0xff]
      %v346 = vld [vmem:[%s334 + $0x8] sm:$0xff]
      %v347 = vld [vmem:[%s334 + $0x10] sm:$0x3f]
      %v348 = vpack.c.bf16 %v346, %v345
      %v349 = vpack.c.bf16 %v347, %v347
      %v350 = vld [vmem:[%s1] sm:$0xf]
      %v351 = vld [vmem:[%s1 + $0x4] sm:$0xf]
      %v352 = vld [vmem:[%s1 + $0x8] sm:$0xf]
      %v353 = vld [vmem:[%s1 + $0xc] sm:$0xf]
      %v354 = vld [vmem:[%s2] sm:$0xf]
      %v355 = vld [vmem:[%s2 + $0x4] sm:$0xf]
      %v356 = vld [vmem:[%s2 + $0x8] sm:$0xf]
      %v357 = vld [vmem:[%s2 + $0xc] sm:$0xf]
      %vm358 = vsmask.f32 7424
      %v360 = vshrl.u32 %v348, 16
      %v362 = vshll.u32 %v348, 16
      %v364 = vrot.slane %v362, 1
      %v365 = vor.u32 %v360, %v364
      %v367 = vshll.u32 %v349, 16
      %v369 = vrot.slane %v367, 1
      %v370 = vsel %vm358, %v365, %v369
      %v371 = vshrl.u32 %v349, 16
      %v373 = vor.u32 %v371, %v369
      %v378 = vunpack.c.l.b16 %v354
      %v379 = vunpack.c.l.b16 %v355
      %v380 = vunpack.c.l.b16 %v356
      %v381 = vunpack.c.l.b16 %v357
      %v382 = vpack.c.b16 %v379, %v378
      %v383 = vpack.c.b16 %v381, %v380
      %vm386 = vcmask 261120
      %v388 = vsel %vm386, %v370, 0
      %v391 = vsel %vm386, %v373, 0
      %393 = vmatprep.subr.bf16.mxu0 0
      %394 = vmatpush1.bf16.msra.mxu0 0
      %395 = vmatprep.subr.bf16.mxu0 0
      %396 = vmatpush1.bf16.msra.mxu0 0
      %397 = vmatprep.subr.bf16.mxu0 0
      %398 = vmatpush1.bf16.msra.mxu0 0
      %399 = vmatprep.subr.bf16.mxu0 0
      %400 = vmatpush1.bf16.msra.mxu0 0
      %401 = vmatprep.subr.bf16.mxu0 0
      %402 = vmatpush1.bf16.msra.mxu0 0
      %403 = vmatprep.subr.bf16.mxu0 0
      %404 = vmatpush1.bf16.msra.mxu0 0
      %405 = vmatprep.subr.bf16.mxu0 0
      %406 = vmatpush1.bf16.msra.mxu0 %v383
      %407 = vmatprep.subr.bf16.mxu0 0
      %408 = vmatpush1.bf16.msra.mxu0 %v382
      %409 = vmatprep.subr.bf16.mxu0 0
      %410 = vmatpush2.bf16.msra.mxu0 0
      %411 = vmatprep.subr.bf16.mxu0 0
      %412 = vmatpush2.bf16.msra.mxu0 0
      %413 = vmatprep.subr.bf16.mxu0 0
      %414 = vmatpush2.bf16.msra.mxu0 0
      %415 = vmatprep.subr.bf16.mxu0 0
      %416 = vmatpush2.bf16.msra.mxu0 0
      %417 = vmatprep.subr.bf16.mxu0 0
      %418 = vmatpush2.bf16.msra.mxu0 0
      %419 = vmatprep.subr.bf16.mxu0 0
      %420 = vmatpush2.bf16.msra.mxu0 0
      %421 = vmatprep.subr.bf16.mxu0 0
      %422 = vmatpush2.bf16.msra.mxu0 0
      %423 = vmatprep.subr.bf16.mxu0 0
      %424 = vmatpush2.bf16.msra.mxu0 0
      %425 = vmatprep.mubr.bf16.mxu0 0
      %426 = vmatmul.mubr.bf16.gmra.mxu0 %v388
      %v427 = vpop.f32.mrf.mxu0
      %v428 = vadd.f32 0.0, %v427
      %v429 = vpop.f32.mrf.mxu0
      %v430 = vpop.f32.mrf.mxu0
      %v431 = vadd.f32 0.0, %v430
      %v432 = vpop.f32.mrf.mxu0
      %433 = vmatprep.mubr.bf16.mxu0 0
      %434 = vmatmul.mubr.bf16.gmra.mxu0 %v391
      %v435 = vpop.f32.mrf.mxu0
      %v436 = vadd.f32 0.0, %v435
      %v437 = vpop.f32.mrf.mxu0
      %v438 = vpop.f32.mrf.mxu0
      %v439 = vpop.f32.mrf.mxu0
      %440 = vdwg.mxu0
      %v445 = vunpack.c.l.b16 %v350
      %v446 = vunpack.c.l.b16 %v351
      %v447 = vunpack.c.l.b16 %v352
      %v448 = vunpack.c.l.b16 %v353
      %v449 = vpack.c.b16 %v446, %v445
      %v450 = vpack.c.b16 %v448, %v447
      %v453 = vsel %vm386, %v348, 0
      %v455 = vsel %vm386, %v349, 0
      %457 = vmatprep.subr.bf16.mxu0 0
      %458 = vmatpush1.bf16.msra.mxu0 0
      %459 = vmatprep.subr.bf16.mxu0 0
      %460 = vmatpush1.bf16.msra.mxu0 0
      %461 = vmatprep.subr.bf16.mxu0 0
      %462 = vmatpush1.bf16.msra.mxu0 0
      %463 = vmatprep.subr.bf16.mxu0 0
      %464 = vmatpush1.bf16.msra.mxu0 0
      %465 = vmatprep.subr.bf16.mxu0 0
      %466 = vmatpush1.bf16.msra.mxu0 0
      %467 = vmatprep.subr.bf16.mxu0 0
      %468 = vmatpush1.bf16.msra.mxu0 0
      %469 = vmatprep.subr.bf16.mxu0 0
      %470 = vmatpush1.bf16.msra.mxu0 %v450
      %471 = vmatprep.subr.bf16.mxu0 0
      %472 = vmatpush1.bf16.msra.mxu0 %v449
      %473 = vmatprep.subr.bf16.mxu0 0
      %474 = vmatpush2.bf16.msra.mxu0 0
      %475 = vmatprep.subr.bf16.mxu0 0
      %476 = vmatpush2.bf16.msra.mxu0 0
      %477 = vmatprep.subr.bf16.mxu0 0
      %478 = vmatpush2.bf16.msra.mxu0 0
      %479 = vmatprep.subr.bf16.mxu0 0
      %480 = vmatpush2.bf16.msra.mxu0 0
      %481 = vmatprep.subr.bf16.mxu0 0
      %482 = vmatpush2.bf16.msra.mxu0 0
      %483 = vmatprep.subr.bf16.mxu0 0
      %484 = vmatpush2.bf16.msra.mxu0 0
      %485 = vmatprep.subr.bf16.mxu0 0
      %486 = vmatpush2.bf16.msra.mxu0 0
      %487 = vmatprep.subr.bf16.mxu0 0
      %488 = vmatpush2.bf16.msra.mxu0 0
      %489 = vmatprep.mubr.bf16.mxu0 0
      %490 = vmatmul.mubr.bf16.gmra.mxu0 %v453
      %v491 = vpop.f32.mrf.mxu0
      %v492 = vadd.f32 %v428, %v491
      %v493 = vpop.f32.mrf.mxu0
      %v494 = vpop.f32.mrf.mxu0
      %v495 = vadd.f32 %v431, %v494
      %v496 = vpop.f32.mrf.mxu0
      %497 = vmatprep.mubr.bf16.mxu0 0
      %498 = vmatmul.mubr.bf16.gmra.mxu0 %v455
      %v499 = vpop.f32.mrf.mxu0
      %v500 = vadd.f32 %v436, %v499
      %v501 = vpop.f32.mrf.mxu0
      %v502 = vpop.f32.mrf.mxu0
      %v503 = vpop.f32.mrf.mxu0
      %504 = vdwg.mxu0
      %v505 = vld [vmem:[%s3] sm:$0x1]
      %v507 = vlaneseq
      %v508 = vshrl.u32 %v507, 7
      %v509 = vsub.s32 0, %v508
      %v510 = vrot.slane %v505, %v509
      %v512 = vadd.f32 %v492, %v510
      %v513 = vadd.f32 %v495, %v510
      %v514 = vadd.f32 %v500, %v510
      %v515 = vtanh.pop %v512
      %v516 = vtanh.pop %v513
      %v517 = vtanh.pop %v514
      %v518 = vmul.f32 %v512, 0.5
      %v519 = vmul.f32 %v513, 0.5
      %v520 = vmul.f32 %v514, 0.5
      %v521 = vtanh.pop %v518
      %v522 = vtanh.pop %v519
      %v523 = vtanh.pop %v520
      %v524 = vmul.f32 %v521, 0.5
      %v525 = vmul.f32 %v522, 0.5
      %v526 = vmul.f32 %v523, 0.5
      %v527 = vadd.f32 %v524, 0.5
      %v528 = vadd.f32 %v525, 0.5
      %v529 = vadd.f32 %v526, 0.5
      %533 = vrot.lane.b32.xlu0 %v527, 96
      %v534 = vpop.permute.xlu0 %533
      %535 = vrot.lane.b32.xlu0 %v528, 96
      %v536 = vpop.permute.xlu0 %535
      %537 = vrot.lane.b32.xlu0 %v529, 96
      %v538 = vpop.permute.xlu0 %537
      %v542 = vmul.f32 %v515, %v534
      %v543 = vmul.f32 %v516, %v536
      %v544 = vmul.f32 %v517, %v538
      %v545 = vpack.c.bf16 %v543, %v542
      %v546 = vpack.c.bf16 %v544, %v544
      %v547 = vld [vmem:[%s6] sm:$0xf]
      %v548 = vld [vmem:[%s6 + $0x4] sm:$0xf]
      %v549 = vld [vmem:[%s6 + $0x8] sm:$0xf]
      %v550 = vld [vmem:[%s6 + $0xc] sm:$0xf]
      %v551 = vld [vmem:[%s7] sm:$0x1]
      %v553 = vlaneseq
      %v554 = vshrl.u32 %v553, 7
      %v555 = vsub.s32 0, %v554
      %v556 = vrot.slane %v551, %v555
      %v562 = vunpack.c.l.b16 %v547
      %v563 = vunpack.c.l.b16 %v548
      %v564 = vunpack.c.l.b16 %v549
      %v565 = vunpack.c.l.b16 %v550
      %v566 = vpack.c.b16 %v563, %v562
      %v567 = vpack.c.b16 %v565, %v564
      %v571 = vsel %vm386, %v545, 0
      %v574 = vsel %vm386, %v546, 0
      %576 = vmatprep.subr.bf16.mxu0 0
      %577 = vmatpush1.bf16.msra.mxu0 0
      %578 = vmatprep.subr.bf16.mxu0 0
      %579 = vmatpush1.bf16.msra.mxu0 0
      %580 = vmatprep.subr.bf16.mxu0 0
      %581 = vmatpush1.bf16.msra.mxu0 0
      %582 = vmatprep.subr.bf16.mxu0 0
      %583 = vmatpush1.bf16.msra.mxu0 0
      %584 = vmatprep.subr.bf16.mxu0 0
      %585 = vmatpush1.bf16.msra.mxu0 0
      %586 = vmatprep.subr.bf16.mxu0 0
      %587 = vmatpush1.bf16.msra.mxu0 0
      %588 = vmatprep.subr.bf16.mxu0 0
      %589 = vmatpush1.bf16.msra.mxu0 %v567
      %590 = vmatprep.subr.bf16.mxu0 0
      %591 = vmatpush1.bf16.msra.mxu0 %v566
      %592 = vmatprep.subr.bf16.mxu0 0
      %593 = vmatpush2.bf16.msra.mxu0 0
      %594 = vmatprep.subr.bf16.mxu0 0
      %595 = vmatpush2.bf16.msra.mxu0 0
      %596 = vmatprep.subr.bf16.mxu0 0
      %597 = vmatpush2.bf16.msra.mxu0 0
      %598 = vmatprep.subr.bf16.mxu0 0
      %599 = vmatpush2.bf16.msra.mxu0 0
      %600 = vmatprep.subr.bf16.mxu0 0
      %601 = vmatpush2.bf16.msra.mxu0 0
      %602 = vmatprep.subr.bf16.mxu0 0
      %603 = vmatpush2.bf16.msra.mxu0 0
      %604 = vmatprep.subr.bf16.mxu0 0
      %605 = vmatpush2.bf16.msra.mxu0 0
      %606 = vmatprep.subr.bf16.mxu0 0
      %607 = vmatpush2.bf16.msra.mxu0 0
      %608 = vmatprep.mubr.bf16.mxu0 0
      %609 = vmatmul.mubr.bf16.gmra.mxu0 %v571
      %v610 = vpop.f32.mrf.mxu0
      %v611 = vadd.f32 %v556, %v610
      %v612 = vpop.f32.mrf.mxu0
      %v613 = vpop.f32.mrf.mxu0
      %v614 = vadd.f32 %v556, %v613
      %v615 = vpop.f32.mrf.mxu0
      %616 = vmatprep.mubr.bf16.mxu0 0
      %617 = vmatmul.mubr.bf16.gmra.mxu0 %v574
      %v618 = vpop.f32.mrf.mxu0
      %v619 = vadd.f32 %v556, %v618
      %v620 = vpop.f32.mrf.mxu0
      %v621 = vpop.f32.mrf.mxu0
      %v622 = vpop.f32.mrf.mxu0
      %623 = vdwg.mxu0
      %vm627 = vcmask 1046528
      %v628 = vrot.slane %v345, 1
      %v629 = vrot.slane %v346, 1
      %v630 = vsel %vm627, %v628, %v629
      %v631 = vrot.slane %v347, 1
      %v632 = vsel %vm627, %v629, %v631
      %v636 = vadd.f32 %v611, %v630
      %v637 = vadd.f32 %v614, %v632
      %v638 = vadd.f32 %v619, %v631
      %639 = vst.msk [vmem:[%s339] sm:$0xff] %vm386, %v636
      %640 = vst.msk [vmem:[%s339 + $0x8] sm:$0xff] %vm386, %v637
      %vm641 = vcmask 258048
      %642 = vst.msk [vmem:[%s339 + $0x10] sm:$0x1f] %vm641, %v638
      %v643 = vld [vmem:[%s4] sm:$0xf]
      %v644 = vld [vmem:[%s4 + $0x4] sm:$0xf]
      %v645 = vld [vmem:[%s4 + $0x8] sm:$0xf]
      %v646 = vld [vmem:[%s4 + $0xc] sm:$0xf]
      %v647 = vld [vmem:[%s5] sm:$0x1]
      %v649 = vlaneseq
      %v650 = vshrl.u32 %v649, 7
      %v651 = vsub.s32 0, %v650
      %v652 = vrot.slane %v647, %v651
      %v654 = vshrl.u32 %v546, 16
      %v656 = vshll.u32 %v546, 16
      %v658 = vrot.slane %v656, 1
      %v659 = vor.u32 %v654, %v658
      %v664 = vunpack.c.l.b16 %v643
      %v665 = vunpack.c.l.b16 %v644
      %v666 = vunpack.c.l.b16 %v645
      %v667 = vunpack.c.l.b16 %v646
      %v668 = vpack.c.b16 %v665, %v664
      %v669 = vpack.c.b16 %v667, %v666
      %v673 = vsel %vm386, %v659, 0
      %675 = vmatprep.subr.bf16.mxu0 0
      %676 = vmatpush1.bf16.msra.mxu0 0
      %677 = vmatprep.subr.bf16.mxu0 0
      %678 = vmatpush1.bf16.msra.mxu0 0
      %679 = vmatprep.subr.bf16.mxu0 0
      %680 = vmatpush1.bf16.msra.mxu0 0
      %681 = vmatprep.subr.bf16.mxu0 0
      %682 = vmatpush1.bf16.msra.mxu0 0
      %683 = vmatprep.subr.bf16.mxu0 0
      %684 = vmatpush1.bf16.msra.mxu0 0
      %685 = vmatprep.subr.bf16.mxu0 0
      %686 = vmatpush1.bf16.msra.mxu0 0
      %687 = vmatprep.subr.bf16.mxu0 0
      %688 = vmatpush1.bf16.msra.mxu0 %v669
      %689 = vmatprep.subr.bf16.mxu0 0
      %690 = vmatpush1.bf16.msra.mxu0 %v668
      %691 = vmatprep.subr.bf16.mxu0 0
      %692 = vmatpush2.bf16.msra.mxu0 0
      %693 = vmatprep.subr.bf16.mxu0 0
      %694 = vmatpush2.bf16.msra.mxu0 0
      %695 = vmatprep.subr.bf16.mxu0 0
      %696 = vmatpush2.bf16.msra.mxu0 0
      %697 = vmatprep.subr.bf16.mxu0 0
      %698 = vmatpush2.bf16.msra.mxu0 0
      %699 = vmatprep.subr.bf16.mxu0 0
      %700 = vmatpush2.bf16.msra.mxu0 0
      %701 = vmatprep.subr.bf16.mxu0 0
      %702 = vmatpush2.bf16.msra.mxu0 0
      %703 = vmatprep.subr.bf16.mxu0 0
      %704 = vmatpush2.bf16.msra.mxu0 0
      %705 = vmatprep.subr.bf16.mxu0 0
      %706 = vmatpush2.bf16.msra.mxu0 0
      %707 = vmatprep.mubr.bf16.mxu0 0
      %708 = vmatmul.mubr.bf16.gmra.mxu0 %v673
      %v709 = vpop.f32.mrf.mxu0
      %v710 = vadd.f32 %v652, %v709
      %v711 = vpop.f32.mrf.mxu0
      %v712 = vpop.f32.mrf.mxu0
      %v713 = vpop.f32.mrf.mxu0
      %714 = vdwg.mxu0
      %vm715 = vcmask 519168
      %716 = vst.msk [vmem:[%s343] sm:$0xf] %vm715, %v710
      %p717 = scmp.lt.s32.totalorder %s21, 3
      %s718 = scalar_select %p717, %s21, 3
      %s719 = smul.addr %s718, 3
      %s720 = smul.addr %s719, 8
      %s721 = scalar_lea.vmem %s8, %s720
      %p722 = scmp.lt.s32.totalorder %s21, 3
      %s723 = scalar_select %p722, %s21, 3
      %s724 = smul.addr %s723, 4
      %s725 = scalar_lea.vmem %s9, %s724
      // Predicated region
      $region53: #{_lambda_.13} parent=51 // pred_check
        %p726 = pneg %p212
      $region54: #{_lambda_.13} parent=51 // pred_check_branch
        %728 = sbr.rel (%p726) target = $region56
      $region55: #{_lambda_.13} parent=51 // pred_region
        _
      $region56: #{_lambda_.13} parent=51 // pred_fallthru
        _
      // Predicated region
      $region57: #{_lambda_.13} parent=51 // pred_check
        %p729 = pneg %p238
      $region58: #{_lambda_.13} parent=51 // pred_check_branch
        %731 = sbr.rel (%p729) target = $region60
      $region59: #{_lambda_.13} parent=51 // pred_region
        _
      $region60: #{_lambda_.13} parent=51 // pred_fallthru
        _
    $region52: #{_lambda_.13} parent=5 // pred_fallthru
      _
    %p732 = scmp.le.s32.totalorder 2, %s16
    // Predicated region
    $region61: #{_lambda_.13} parent=5 // pred_check
      %p733 = pneg %p732
    $region62: #{_lambda_.13} parent=5 // pred_check_branch
      %735 = sbr.rel (%p733) target = $region64
    $region63: #{_lambda_.13} parent=5 // pred_region
      %s736 = ssub.s32 %s16, 2
      // Predicated region
      $region65: #{_lambda_.13} parent=63 // pred_check
        %p737 = pneg %p218
      $region66: #{_lambda_.13} parent=63 // pred_check_branch
        %739 = sbr.rel (%p737) target = $region68
      $region67: #{_lambda_.13} parent=63 // pred_region
        %p740 = scmp.lt.s32.totalorder %s22, 3
        %s741 = scalar_select %p740, %s22, 3
        %s742 = smul.addr %s741, 3
        %s743 = smul.addr %s742, 8
        %s744 = scalar_lea.vmem %s8, %s743
      $region68: #{_lambda_.13} parent=63 // pred_fallthru
        _
      // Predicated region
      $region69: #{_lambda_.13} parent=63 // pred_check
        %p745 = pneg %p244
      $region70: #{_lambda_.13} parent=63 // pred_check_branch
        %747 = sbr.rel (%p745) target = $region72
      $region71: #{_lambda_.13} parent=63 // pred_region
        %p748 = scmp.lt.s32.totalorder %s22, 3
        %s749 = scalar_select %p748, %s22, 3
        %s750 = smul.addr %s749, 4
        %s751 = scalar_lea.vmem %s9, %s750
      $region72: #{_lambda_.13} parent=63 // pred_fallthru
        _
    $region64: #{_lambda_.13} parent=5 // pred_fallthru
      _
  $region6: #{_lambda_.13} parent=0 // loop_footer
    %s20 = sadd.s32 1, %s16
  $region7: #{_lambda_.13} parent=0 // loop_footer_branch
    %15 = sbr.rel target = $region3
  $region8: #{_lambda_.13} parent=0 // loop_exit
    _

// kernel: _lambda_.15
$region0: #{_lambda_.15}
  #allocation0 [shape = 'u32[]', space=smem, size = 0x4, offset = 0x4, fixed_abs, tag = 'smem constant byte address 0x4 - core index']
  #allocation1 [shape = 'u32[144,128]{1,0:T(1,128)}', space=vmem, size = 0x12000, scoped, tag = 'internal scratch']
  %s0 = inlined_call_operand.vmem [shape: f32[16,64], index: 0, kind: input, shape index: {}]
  %s1 = inlined_call_operand.vmem [shape: bf16[64,64], index: 1, kind: input, shape index: {}]
  %s2 = inlined_call_operand.vmem [shape: f32[1,64], index: 2, kind: input, shape index: {}]
  %s3 = inlined_call_operand.vmem [shape: bf16[64,64], index: 3, kind: input, shape index: {}]
  %s4 = inlined_call_operand.vmem [shape: f32[1,64], index: 4, kind: input, shape index: {}]
  %s5 = inlined_call_operand.hbm [shape: f32[16,64], index: 5, kind: output, shape index: {}]
  %s6 = sld [smem:[#allocation0]]
  $region30: #{_lambda_.15} parent=0
    _
  %s8 = ssub.s32 1, %s6
  %s9 = scalar_select 0, %s8, %s6
  $region1: #{_lambda_.15} parent=0
    #allocation2 [shape = 'u8[8192]{0}', space=vmem, size = 0x2000, scoped, tag = 'output window, operand 0, single buffered']
    #allocation3 [shape = 's32[1]{0}', space=sflag, size = 0x4, scoped, tag = 'scoped memory for _lambda_.15']
    %10 = vsyncpa [#allocation3], 0
    // Predicated region
    $region2: #{_lambda_.15} parent=1 // pred_check
      _
    $region3: #{_lambda_.15} parent=1 // pred_check_branch
      %12 = sbr.rel (0) target = $region5
    $region4: #{_lambda_.15} parent=1 // pred_region
      _
    $region5: #{_lambda_.15} parent=1 // pred_fallthru
      _
    // Predicated region
    $region6: #{_lambda_.15} parent=1 // pred_check
      _
    $region7: #{_lambda_.15} parent=1 // pred_check_branch
      %14 = sbr.rel (0) target = $region9
    $region8: #{_lambda_.15} parent=1 // pred_region
      _
    $region9: #{_lambda_.15} parent=1 // pred_fallthru
      _
    // Predicated region
    $region10: #{_lambda_.15} parent=1 // pred_check
      _
    $region11: #{_lambda_.15} parent=1 // pred_check_branch
      %16 = sbr.rel (0) target = $region13
    $region12: #{_lambda_.15} parent=1 // pred_region
      _
    $region13: #{_lambda_.15} parent=1 // pred_fallthru
      _
    // Predicated region
    $region14: #{_lambda_.15} parent=1 // pred_check
      _
    $region15: #{_lambda_.15} parent=1 // pred_check_branch
      %18 = sbr.rel (0) target = $region17
    $region16: #{_lambda_.15} parent=1 // pred_region
      _
    $region17: #{_lambda_.15} parent=1 // pred_fallthru
      _
    // Predicated region
    $region18: #{_lambda_.15} parent=1 // pred_check
      _
    $region19: #{_lambda_.15} parent=1 // pred_check_branch
      %20 = sbr.rel (0) target = $region21
    $region20: #{_lambda_.15} parent=1 // pred_region
      _
    $region21: #{_lambda_.15} parent=1 // pred_fallthru
      _
    %v22 = vld [vmem:[%s0] sm:$0xff]
    %v23 = vld [vmem:[%s0 + $0x8] sm:$0xff]
    %v24 = vmax.f32 %v22, 0.0
    %v25 = vmax.f32 %v23, 0.0
    %v26 = vpack.c.bf16 %v25, %v24
    %v27 = vld [vmem:[%s1] sm:$0xf]
    %v28 = vld [vmem:[%s1 + $0x4] sm:$0xf]
    %v29 = vld [vmem:[%s1 + $0x8] sm:$0xf]
    %v30 = vld [vmem:[%s1 + $0xc] sm:$0xf]
    %v31 = vld [vmem:[%s1 + $0x10] sm:$0xf]
    %v32 = vld [vmem:[%s1 + $0x14] sm:$0xf]
    %v33 = vld [vmem:[%s1 + $0x18] sm:$0xf]
    %v34 = vld [vmem:[%s1 + $0x1c] sm:$0xf]
    %v35 = vld [vmem:[%s2] sm:$0x1]
    %v37 = vlaneseq
    %v38 = vshrl.u32 %v37, 7
    %v39 = vsub.s32 0, %v38
    %v40 = vrot.slane %v35, %v39
    %v50 = vunpack.c.l.b16 %v27
    %v51 = vunpack.c.l.b16 %v28
    %v52 = vunpack.c.l.b16 %v29
    %v53 = vunpack.c.l.b16 %v30
    %v54 = vunpack.c.l.b16 %v31
    %v55 = vunpack.c.l.b16 %v32
    %v56 = vunpack.c.l.b16 %v33
    %v57 = vunpack.c.l.b16 %v34
    %v58 = vpack.c.b16 %v51, %v50
    %v59 = vpack.c.b16 %v53, %v52
    %v60 = vpack.c.b16 %v55, %v54
    %v61 = vpack.c.b16 %v57, %v56
    %vm66 = vcmask 523264
    %v68 = vsel %vm66, %v26, 0
    %70 = vmatprep.subr.bf16.mxu0 0
    %71 = vmatpush1.bf16.msra.mxu0 0
    %72 = vmatprep.subr.bf16.mxu0 0
    %73 = vmatpush1.bf16.msra.mxu0 0
    %74 = vmatprep.subr.bf16.mxu0 0
    %75 = vmatpush1.bf16.msra.mxu0 0
    %76 = vmatprep.subr.bf16.mxu0 0
    %77 = vmatpush1.bf16.msra.mxu0 0
    %78 = vmatprep.subr.bf16.mxu0 0
    %79 = vmatpush1.bf16.msra.mxu0 %v61
    %80 = vmatprep.subr.bf16.mxu0 0
    %81 = vmatpush1.bf16.msra.mxu0 %v60
    %82 = vmatprep.subr.bf16.mxu0 0
    %83 = vmatpush1.bf16.msra.mxu0 %v59
    %84 = vmatprep.subr.bf16.mxu0 0
    %85 = vmatpush1.bf16.msra.mxu0 %v58
    %86 = vmatprep.subr.bf16.mxu0 0
    %87 = vmatpush2.bf16.msra.mxu0 0
    %88 = vmatprep.subr.bf16.mxu0 0
    %89 = vmatpush2.bf16.msra.mxu0 0
    %90 = vmatprep.subr.bf16.mxu0 0
    %91 = vmatpush2.bf16.msra.mxu0 0
    %92 = vmatprep.subr.bf16.mxu0 0
    %93 = vmatpush2.bf16.msra.mxu0 0
    %94 = vmatprep.subr.bf16.mxu0 0
    %95 = vmatpush2.bf16.msra.mxu0 0
    %96 = vmatprep.subr.bf16.mxu0 0
    %97 = vmatpush2.bf16.msra.mxu0 0
    %98 = vmatprep.subr.bf16.mxu0 0
    %99 = vmatpush2.bf16.msra.mxu0 0
    %100 = vmatprep.subr.bf16.mxu0 0
    %101 = vmatpush2.bf16.msra.mxu0 0
    %102 = vmatprep.mubr.bf16.mxu0 0
    %103 = vmatmul.mubr.bf16.gmra.mxu0 %v68
    %v104 = vpop.f32.mrf.mxu0
    %v105 = vadd.f32 %v40, %v104
    %v106 = vpop.f32.mrf.mxu0
    %v107 = vpop.f32.mrf.mxu0
    %v108 = vadd.f32 %v40, %v107
    %v109 = vpop.f32.mrf.mxu0
    %110 = vdwg.mxu0
    %v111 = vmax.f32 %v105, 0.0
    %v112 = vmax.f32 %v108, 0.0
    %v113 = vpack.c.bf16 %v112, %v111
    %v114 = vld [vmem:[%s3] sm:$0xf]
    %v115 = vld [vmem:[%s3 + $0x4] sm:$0xf]
    %v116 = vld [vmem:[%s3 + $0x8] sm:$0xf]
    %v117 = vld [vmem:[%s3 + $0xc] sm:$0xf]
    %v118 = vld [vmem:[%s3 + $0x10] sm:$0xf]
    %v119 = vld [vmem:[%s3 + $0x14] sm:$0xf]
    %v120 = vld [vmem:[%s3 + $0x18] sm:$0xf]
    %v121 = vld [vmem:[%s3 + $0x1c] sm:$0xf]
    %v122 = vld [vmem:[%s4] sm:$0x1]
    %v124 = vlaneseq
    %v125 = vshrl.u32 %v124, 7
    %v126 = vsub.s32 0, %v125
    %v127 = vrot.slane %v122, %v126
    %v137 = vunpack.c.l.b16 %v114
    %v138 = vunpack.c.l.b16 %v115
    %v139 = vunpack.c.l.b16 %v116
    %v140 = vunpack.c.l.b16 %v117
    %v141 = vunpack.c.l.b16 %v118
    %v142 = vunpack.c.l.b16 %v119
    %v143 = vunpack.c.l.b16 %v120
    %v144 = vunpack.c.l.b16 %v121
    %v145 = vpack.c.b16 %v138, %v137
    %v146 = vpack.c.b16 %v140, %v139
    %v147 = vpack.c.b16 %v142, %v141
    %v148 = vpack.c.b16 %v144, %v143
    %v154 = vsel %vm66, %v113, 0
    %156 = vmatprep.subr.bf16.mxu0 0
    %157 = vmatpush1.bf16.msra.mxu0 0
    %158 = vmatprep.subr.bf16.mxu0 0
    %159 = vmatpush1.bf16.msra.mxu0 0
    %160 = vmatprep.subr.bf16.mxu0 0
    %161 = vmatpush1.bf16.msra.mxu0 0
    %162 = vmatprep.subr.bf16.mxu0 0
    %163 = vmatpush1.bf16.msra.mxu0 0
    %164 = vmatprep.subr.bf16.mxu0 0
    %165 = vmatpush1.bf16.msra.mxu0 %v148
    %166 = vmatprep.subr.bf16.mxu0 0
    %167 = vmatpush1.bf16.msra.mxu0 %v147
    %168 = vmatprep.subr.bf16.mxu0 0
    %169 = vmatpush1.bf16.msra.mxu0 %v146
    %170 = vmatprep.subr.bf16.mxu0 0
    %171 = vmatpush1.bf16.msra.mxu0 %v145
    %172 = vmatprep.subr.bf16.mxu0 0
    %173 = vmatpush2.bf16.msra.mxu0 0
    %174 = vmatprep.subr.bf16.mxu0 0
    %175 = vmatpush2.bf16.msra.mxu0 0
    %176 = vmatprep.subr.bf16.mxu0 0
    %177 = vmatpush2.bf16.msra.mxu0 0
    %178 = vmatprep.subr.bf16.mxu0 0
    %179 = vmatpush2.bf16.msra.mxu0 0
    %180 = vmatprep.subr.bf16.mxu0 0
    %181 = vmatpush2.bf16.msra.mxu0 0
    %182 = vmatprep.subr.bf16.mxu0 0
    %183 = vmatpush2.bf16.msra.mxu0 0
    %184 = vmatprep.subr.bf16.mxu0 0
    %185 = vmatpush2.bf16.msra.mxu0 0
    %186 = vmatprep.subr.bf16.mxu0 0
    %187 = vmatpush2.bf16.msra.mxu0 0
    %188 = vmatprep.mubr.bf16.mxu0 0
    %189 = vmatmul.mubr.bf16.gmra.mxu0 %v154
    %v190 = vpop.f32.mrf.mxu0
    %v191 = vadd.f32 %v127, %v190
    %v192 = vpop.f32.mrf.mxu0
    %v193 = vpop.f32.mrf.mxu0
    %v194 = vadd.f32 %v127, %v193
    %v195 = vpop.f32.mrf.mxu0
    %196 = vdwg.mxu0
    %197 = vst.msk [vmem:[#allocation2] sm:$0xff] %vm66, %v191
    %198 = vst.msk [vmem:[#allocation2 + $0x8] sm:$0xff] %vm66, %v194
    // Predicated region
    $region22: #{_lambda_.15} parent=1 // pred_check
      _
    $region23: #{_lambda_.15} parent=1 // pred_check_branch
      %200 = sbr.rel (0) target = $region25
    $region24: #{_lambda_.15} parent=1 // pred_region
      %s202 = ssub.s32 256, 256
      %203 = vsyncadd [#allocation3], %s202
      %s204 = sshll.u32 [#allocation2], 4
      %s205 = int_to_ptr.vmem [resolvable:$true] %s204
      %210 = dma.vmem_to_hbm [thread:$0]  %s205, 256, %s5, [#allocation3], 128, 128, 8
    $region25: #{_lambda_.15} parent=1 // pred_fallthru
      _
    // Predicated region
    $region26: #{_lambda_.15} parent=1 // pred_check
      _
    $region27: #{_lambda_.15} parent=1 // pred_check_branch
      %212 = sbr.rel (0) target = $region29
    $region28: #{_lambda_.15} parent=1 // pred_region
      %213 = dma.done [#allocation3], 256
    $region29: #{_lambda_.15} parent=1 // pred_fallthru
      _
    %214 = vsyncpa [#allocation3], 1

</llo_original>
